<compile_context>
chip_gen: v5e
topology: v5e:2x2
jax: 0.10.0
libtpu: 0.0.40
codegen_flags: <defaults>
</compile_context>

<pallas_src>
import functools
import math

import jax
import jax.numpy as jnp
from jax.experimental import pallas as pl
from jax.experimental.pallas import tpu as pltpu

_MM_DTYPE = jnp.bfloat16          # MXU operand dtype (jnp.float32 for exact parity tests)
_VMEM_LIMIT = 32 * 1024 * 1024    # safe on v5e/v6e (128 MiB) and v7x (64 MiB)
_LN_EPS = 1e-5                    # PyTorch nn.LayerNorm default
_MASK_FILL = -1e10                # matches energy.masked_fill(mask == 0, -1e10)

# Bias/LayerNorm slab row indices (one [1, width] row per vector, width<=128 here).
_B_SA_QKV, _B_SA_O, _B_LN1_G, _B_LN1_B = 0, 1, 2, 3
_B_CA_Q, _B_CA_KV, _B_CA_O, _B_LN2_G, _B_LN2_B = 4, 5, 6, 7, 8
_B_FF1, _B_FF2, _B_LN3_G, _B_LN3_B = 9, 10, 11, 12
_N_BIAS_ROWS = 13


# ----------------------------------------------------------------------------
# Fused decoder-stack kernel (all layers + vocab projection in one pallas_call)
# ----------------------------------------------------------------------------

def _decoder_stack_kernel(
        trg0_ref, enc_ref, tmask_ref, smask_ref,
        w_sa_qkv_ref, w_sa_o_ref, w_ca_q_ref, w_ca_kv_ref, w_ca_o_ref,
        w_ff1_ref, w_ff2_ref, bias_ref, w_out_ref, b_out_ref,
        logits_ref, attn_ref, carry_ref, *, n_heads, batch):
    """One DecoderLayer per grid step; residual stream carried in carry_ref.

    trg0_ref : [B*S, H] f32        embedded target (read at layer 0 only)
    enc_ref  : [B*Skv, H] bf16     encoder memory (source length padded to 128)
    tmask_ref: [B, S, S] f32       additive self-attention mask
    smask_ref: [B, 1, Skv] f32     additive cross-attention mask (pads = -1e10)
    per-layer weight blocks are bf16; bias_ref is the [13, 128] f32 slab.
    logits/attn are written only on the last layer iteration.
    """
    f32 = jnp.float32
    layer = pl.program_id(0)
    is_last = layer == pl.num_programs(0) - 1

    M, H = carry_ref.shape
    hd = H // n_heads
    pf = w_ff1_ref.shape[-1]

    @pl.when(layer == 0)
    def _():
        carry_ref[...] = trg0_ref[...]

    bias = bias_ref[...]                               # [13, Wb] f32, loaded once

    def brow(r, w):                                    # one bias/LN vector as [1, w]
        return bias[r:r + 1, :w]

    def layer_norm(y, g, b):
        mu = jnp.mean(y, axis=-1, keepdims=True)
        c = y - mu
        var = jnp.mean(c * c, axis=-1, keepdims=True)
        return c * jax.lax.rsqrt(var + _LN_EPS) * g + b

    def mha(q16, k16, v16, add_mask, wo_ref, collect):
        # q16:[B*sq,H]  k16,v16:[B*skv,H] (bf16);  add_mask:[B, sq or 1, skv] f32
        s_q = q16.shape[0] // batch
        s_kv = k16.shape[0] // batch
        out = jnp.zeros((batch * s_q, H), f32)
        probs = []
        for h in range(n_heads):
            sl = slice(h * hd, (h + 1) * hd)
            qh = q16[:, sl].reshape(batch, s_q, hd)
            kh = k16[:, sl].reshape(batch, s_kv, hd)
            vh = v16[:, sl].reshape(batch, s_kv, hd)
            # batched over B in a single dot_general (1/sqrt(hd) folded into Q)
            energy = jnp.einsum('bqd,bkd->bqk', qh, kh,
                                preferred_element_type=f32) + add_mask
            e = jnp.exp(energy - jnp.max(energy, axis=-1, keepdims=True))
            p = e * pl.reciprocal(jnp.sum(e, axis=-1, keepdims=True), approx=True)
            if collect:
                probs.append(p)
            oh = jnp.einsum('bqk,bkd->bqd', p.astype(_MM_DTYPE), vh,
                            preferred_element_type=f32)
            # per-head output projection (sublane slice of W_o) -> no lane concat
            out = out + jnp.dot(oh.reshape(batch * s_q, hd).astype(_MM_DTYPE),
                                wo_ref[sl, :], preferred_element_type=f32)
        return out, probs

    trg = carry_ref[...]                               # [B*S, H] f32 residual stream
    x16 = trg.astype(_MM_DTYPE)

    # ---- self attention (fused QKV) + residual + LayerNorm -------------------
    qkv = jnp.dot(x16, w_sa_qkv_ref[...],
                  preferred_element_type=f32) + brow(_B_SA_QKV, 3 * H)
    qkv16 = qkv.astype(_MM_DTYPE)
    sa, _ = mha(qkv16[:, :H], qkv16[:, H:2 * H], qkv16[:, 2 * H:],
                tmask_ref[...], w_sa_o_ref, collect=False)
    trg = layer_norm(trg + sa + brow(_B_SA_O, H),
                     brow(_B_LN1_G, H), brow(_B_LN1_B, H))

    # ---- encoder (cross) attention (fused KV) + residual + LayerNorm ---------
    x16 = trg.astype(_MM_DTYPE)
    q = jnp.dot(x16, w_ca_q_ref[...],
                preferred_element_type=f32) + brow(_B_CA_Q, H)
    kv = jnp.dot(enc_ref[...], w_ca_kv_ref[...],
                 preferred_element_type=f32) + brow(_B_CA_KV, 2 * H)
    q16 = q.astype(_MM_DTYPE)
    kv16 = kv.astype(_MM_DTYPE)
    ca, probs = mha(q16, kv16[:, :H], kv16[:, H:], smask_ref[...],
                    w_ca_o_ref, collect=True)
    trg = layer_norm(trg + ca + brow(_B_CA_O, H),
                     brow(_B_LN2_G, H), brow(_B_LN2_B, H))

    # ---- position-wise feed-forward + residual + LayerNorm -------------------
    x16 = trg.astype(_MM_DTYPE)
    ff_h = jnp.maximum(jnp.dot(x16, w_ff1_ref[...],
                               preferred_element_type=f32) + brow(_B_FF1, pf), 0.0)
    ff = jnp.dot(ff_h.astype(_MM_DTYPE), w_ff2_ref[...],
                 preferred_element_type=f32) + brow(_B_FF2, H)
    trg = layer_norm(trg + ff, brow(_B_LN3_G, H), brow(_B_LN3_B, H))

    carry_ref[...] = trg                               # carry to next layer (VMEM)

    # ---- last layer only: emit attention probs + fused vocab projection ------
    @pl.when(is_last)
    def _():
        for h in range(n_heads):                       # lane-dense [B, S, Skv] stores
            attn_ref[h, :, :, :] = probs[h]
        logits_ref[...] = (jnp.dot(trg.astype(_MM_DTYPE), w_out_ref[...],
                                   preferred_element_type=f32) + b_out_ref[...])


def _decoder_stack(fused, trg0, enc_p, tmask, smask, *, n_heads, batch):
    M, H = trg0.shape
    S = M // batch
    Skv = enc_p.shape[0] // batch
    L = fused["w_sa_qkv"].shape[0]
    P = fused["w_ff1"].shape[-1]
    NB, Wb = fused["bias_slab"].shape[1:]
    Vp = fused["w_out"].shape[-1]

    weights = (fused["w_sa_qkv"], fused["w_sa_o"], fused["w_ca_q"],
               fused["w_ca_kv"], fused["w_ca_o"], fused["w_ff1"],
               fused["w_ff2"], fused["bias_slab"])

    def per_layer(shape):          # streamed per layer (double-buffered by Pallas)
        return pl.BlockSpec((None,) + shape, lambda l: (l,) + (0,) * len(shape))

    def resident(shape):           # fetched once, resident across all layers
        return pl.BlockSpec(shape, lambda l: (0,) * len(shape))

    in_specs = [
        resident((M, H)),                  # trg0
        resident((batch * Skv, H)),        # encoder memory (bf16, padded)
        resident((batch, S, S)),           # additive self-attn mask
        resident((batch, 1, Skv)),         # additive cross-attn mask
        per_layer((H, 3 * H)),             # W_qkv (self)
        per_layer((H, H)),                 # W_o   (self)
        per_layer((H, H)),                 # W_q   (cross)
        per_layer((H, 2 * H)),             # W_kv  (cross)
        per_layer((H, H)),                 # W_o   (cross)
        per_layer((H, P)),                 # W_ff1
        per_layer((P, H)),                 # W_ff2
        per_layer((NB, Wb)),               # bias / LayerNorm slab
        resident((H, Vp)),                 # padded vocab projection weight
        resident((1, Vp)),                 # padded vocab projection bias
    ]
    out_shape = (jax.ShapeDtypeStruct((M, Vp), jnp.float32),
                 jax.ShapeDtypeStruct((n_heads, batch, S, Skv), jnp.float32))
    out_specs = (resident((M, Vp)),
                 resident((n_heads, batch, S, Skv)))

    return pl.pallas_call(
        functools.partial(_decoder_stack_kernel, n_heads=n_heads, batch=batch),
        out_shape=out_shape,
        grid=(L,),
        in_specs=in_specs,
        out_specs=out_specs,
        scratch_shapes=[pltpu.VMEM((M, H), jnp.float32)],   # residual-stream carry
        compiler_params=pltpu.CompilerParams(
            dimension_semantics=("arbitrary",),              # layer axis is sequential
            vmem_limit_bytes=_VMEM_LIMIT),
    )(trg0, enc_p, tmask, smask, *weights, fused["w_out"], fused["b_out"])


# ----------------------------------------------------------------------------
# Forward pass (plain-JAX glue around the single fused Pallas call)
# ----------------------------------------------------------------------------

def decoder_forward(fused, trg_ids, enc_src, trg_mask, src_mask, *, n_heads, out_dim):
    B, S = trg_ids.shape
    Ssrc = enc_src.shape[1]
    H = fused["tok_emb"].shape[1]
    Ssrc_p = ((Ssrc + 127) // 128) * 128

    # Token/positional embedding: plain-JAX row gather (per perf review);
    # dropout = identity in eval mode.
    trg0 = (jnp.take(fused["tok_emb"], trg_ids, axis=0) * jnp.float32(math.sqrt(H))
            + fused["pos_emb"][:S][None, :, :])
    trg0 = trg0.reshape(B * S, H).astype(jnp.float32)

    # Additive masks, precomputed once, reused by every layer / head.
    tmask = jnp.where(trg_mask[:, 0] == 0,
                      jnp.float32(_MASK_FILL), jnp.float32(0.0))       # [B,S,S]
    smask_core = jnp.where(src_mask[:, 0] == 0,
                           jnp.float32(_MASK_FILL), jnp.float32(0.0))  # [B,1,Ssrc]
    smask = jnp.full((B, 1, Ssrc_p), _MASK_FILL,
                     jnp.float32).at[:, :, :Ssrc].set(smask_core)

    # Encoder memory zero-padded along source length to a lane-dense 128 multiple
    # (padded columns carry -1e10 in the mask -> exactly zero attention weight).
    enc_p = jnp.zeros((B, Ssrc_p, H), jnp.float32).at[:, :Ssrc, :].set(enc_src)
    enc_p = enc_p.reshape(B * Ssrc_p, H).astype(_MM_DTYPE)

    logits_p, attn_p = _decoder_stack(fused, trg0, enc_p, tmask, smask,
                                      n_heads=n_heads, batch=B)

    output = logits_p[:, :out_dim].reshape(B, S, out_dim)
    attention = jnp.transpose(attn_p, (1, 0, 2, 3))[:, :, :, :Ssrc]
    return output, attention


# ----------------------------------------------------------------------------
# Parameter initialization (nn.Module-shaped) and kernel-friendly preparation
# ----------------------------------------------------------------------------

def _init_linear(key, din, dout):
    k1, k2 = jax.random.split(key)
    bound = 1.0 / math.sqrt(din)
    w = jax.random.uniform(k1, (din, dout), jnp.float32, -bound, bound)
    b = jax.random.uniform(k2, (dout,), jnp.float32, -bound, bound)
    return w, b


def init_decoder_params(key, output_dim, hid_dim, n_layers, pf_dim, max_length):
    keys = jax.random.split(key, 4 + n_layers)
    params = {
        "tok_emb": jax.random.normal(keys[0], (output_dim, hid_dim), jnp.float32),
        "pos_emb": jax.random.normal(keys[1], (max_length, hid_dim), jnp.float32),
    }
    ow, ob = _init_linear(keys[2], hid_dim, output_dim)
    params["out_w"], params["out_b"] = ow, ob
    layers = []
    for li in range(n_layers):
        lk = jax.random.split(keys[4 + li], 10)

        def attn_params(k0, k1, k2, k3):
            wq, bq = _init_linear(k0, hid_dim, hid_dim)
            wk, bk = _init_linear(k1, hid_dim, hid_dim)
            wv, bv = _init_linear(k2, hid_dim, hid_dim)
            wo, bo = _init_linear(k3, hid_dim, hid_dim)
            return {"wq": wq, "bq": bq, "wk": wk, "bk": bk,
                    "wv": wv, "bv": bv, "wo": wo, "bo": bo}

        w1, b1 = _init_linear(lk[8], hid_dim, pf_dim)
        w2, b2 = _init_linear(lk[9], pf_dim, hid_dim)
        layers.append({
            "self_attn": attn_params(lk[0], lk[1], lk[2], lk[3]),
            "enc_attn": attn_params(lk[4], lk[5], lk[6], lk[7]),
            "ff_w1": w1, "ff_b1": b1, "ff_w2": w2, "ff_b2": b2,
            "ln1_g": jnp.ones((hid_dim,), jnp.float32), "ln1_b": jnp.zeros((hid_dim,), jnp.float32),
            "ln2_g": jnp.ones((hid_dim,), jnp.float32), "ln2_b": jnp.zeros((hid_dim,), jnp.float32),
            "ln3_g": jnp.ones((hid_dim,), jnp.float32), "ln3_b": jnp.zeros((hid_dim,), jnp.float32),
        })
    params["layers"] = layers
    return params


def prepare_decoder_params(params, n_heads):
    """Stack per-layer weights along a leading layer dim, fuse QKV/KV, fold
    1/sqrt(head_dim) into Q, pack all biases/LayerNorm params into one padded
    f32 slab per layer, cast MXU operands to bf16, and lane-pad the vocab
    projection to a multiple of 128."""
    H = params["tok_emb"].shape[1]
    P = params["layers"][0]["ff_w1"].shape[1]
    q_scale = 1.0 / math.sqrt(H // n_heads)
    Wb = max(128, ((max(3 * H, 2 * H, P) + 127) // 128) * 128)

    def pad_row(v):
        v = v.reshape(-1).astype(jnp.float32)
        return jnp.zeros((Wb,), jnp.float32).at[:v.shape[0]].set(v)

    w_sa_qkv, w_sa_o, w_ca_q, w_ca_kv, w_ca_o = [], [], [], [], []
    w_ff1, w_ff2, bias_rows = [], [], []
    for p in params["layers"]:
        sa, ca = p["self_attn"], p["enc_attn"]
        w_sa_qkv.append(jnp.concatenate([sa["wq"] * q_scale, sa["wk"], sa["wv"]], axis=1))
        w_sa_o.append(sa["wo"])
        w_ca_q.append(ca["wq"] * q_scale)
        w_ca_kv.append(jnp.concatenate([ca["wk"], ca["wv"]], axis=1))
        w_ca_o.append(ca["wo"])
        w_ff1.append(p["ff_w1"])
        w_ff2.append(p["ff_w2"])
        rows = [
            jnp.concatenate([sa["bq"] * q_scale, sa["bk"], sa["bv"]]),   # _B_SA_QKV
            sa["bo"], p["ln1_g"], p["ln1_b"],                            # _B_SA_O.._B_LN1_B
            ca["bq"] * q_scale,                                          # _B_CA_Q
            jnp.concatenate([ca["bk"], ca["bv"]]),                       # _B_CA_KV
            ca["bo"], p["ln2_g"], p["ln2_b"],                            # _B_CA_O.._B_LN2_B
            p["ff_b1"], p["ff_b2"], p["ln3_g"], p["ln3_b"],              # _B_FF1.._B_LN3_B
        ]
        bias_rows.append(jnp.stack([pad_row(r) for r in rows]))

    V = params["out_w"].shape[1]
    Vp = ((V + 127) // 128) * 128
    w_out = jnp.zeros((H, Vp), jnp.float32).at[:, :V].set(params["out_w"])
    b_out = jnp.zeros((1, Vp), jnp.float32).at[:, :V].set(params["out_b"].reshape(1, -1))

    return {
        "tok_emb": params["tok_emb"].astype(jnp.float32),
        "pos_emb": params["pos_emb"].astype(jnp.float32),
        "w_sa_qkv": jnp.stack(w_sa_qkv).astype(_MM_DTYPE),
        "w_sa_o": jnp.stack(w_sa_o).astype(_MM_DTYPE),
        "w_ca_q": jnp.stack(w_ca_q).astype(_MM_DTYPE),
        "w_ca_kv": jnp.stack(w_ca_kv).astype(_MM_DTYPE),
        "w_ca_o": jnp.stack(w_ca_o).astype(_MM_DTYPE),
        "w_ff1": jnp.stack(w_ff1).astype(_MM_DTYPE),
        "w_ff2": jnp.stack(w_ff2).astype(_MM_DTYPE),
        "bias_slab": jnp.stack(bias_rows).astype(jnp.float32),
        "w_out": w_out.astype(_MM_DTYPE),
        "b_out": b_out,
    }


# ----------------------------------------------------------------------------
# Main
# ----------------------------------------------------------------------------

if __name__ == "__main__":
    output_dim = 48     # target vocab size
    hid_dim = 32
    n_layers = 2
    n_heads = 4
    pf_dim = 64
    max_length = 32
    B, trg_len, src_len = 2, 8, 16

    root = jax.random.PRNGKey(0)
    kp, kt, ke = jax.random.split(root, 3)
    params = init_decoder_params(kp, output_dim, hid_dim, n_layers, pf_dim, max_length)
    fused = prepare_decoder_params(params, n_heads)

    trg_ids = jax.random.randint(kt, (B, trg_len), 0, output_dim, dtype=jnp.int32)
    enc_src = jax.random.normal(ke, (B, src_len, hid_dim), jnp.float32)

    # causal target mask [B,1,trg_len,trg_len]; full source mask [B,1,1,src_len]
    trg_mask = jnp.tril(jnp.ones((trg_len, trg_len), jnp.float32))[None, None]
    trg_mask = jnp.broadcast_to(trg_mask, (B, 1, trg_len, trg_len))
    src_mask = jnp.ones((B, 1, 1, src_len), jnp.float32)

    fwd = jax.jit(functools.partial(decoder_forward, n_heads=n_heads, out_dim=output_dim))
    out, attn = fwd(fused, trg_ids, enc_src, trg_mask, src_mask)
    jax.block_until_ready((out, attn))

    assert out.shape == (B, trg_len, output_dim)
    assert attn.shape == (B, n_heads, trg_len, src_len)
    assert bool(jnp.all(jnp.isfinite(out))) and bool(jnp.all(jnp.isfinite(attn)))
    print("KERNEL_OK")
</pallas_src>

<mosaic_0001>
module attributes {stable_mosaic.version = 11 : i64} {
  func.func @_decoder_stack_kernel(%arg0: i32, %arg1: memref<16x32xf32, #tpu.memory_space<vmem>>, %arg2: memref<256x32xbf16, #tpu.memory_space<vmem>>, %arg3: memref<2x8x8xf32, #tpu.memory_space<vmem>>, %arg4: memref<2x1x128xf32, #tpu.memory_space<vmem>>, %arg5: memref<1x32x96xbf16, #tpu.memory_space<vmem>>, %arg6: memref<1x32x32xbf16, #tpu.memory_space<vmem>>, %arg7: memref<1x32x32xbf16, #tpu.memory_space<vmem>>, %arg8: memref<1x32x64xbf16, #tpu.memory_space<vmem>>, %arg9: memref<1x32x32xbf16, #tpu.memory_space<vmem>>, %arg10: memref<1x32x64xbf16, #tpu.memory_space<vmem>>, %arg11: memref<1x64x32xbf16, #tpu.memory_space<vmem>>, %arg12: memref<1x13x128xf32, #tpu.memory_space<vmem>>, %arg13: memref<32x128xbf16, #tpu.memory_space<vmem>>, %arg14: memref<1x128xf32, #tpu.memory_space<vmem>>, %arg15: memref<16x128xf32, #tpu.memory_space<vmem>>, %arg16: memref<4x2x8x128xf32, #tpu.memory_space<vmem>>, %arg17: memref<16x32xf32, #tpu.memory_space<vmem>>) attributes {dimension_semantics = [#tpu.dimension_semantics<arbitrary>], iteration_bounds = array<i64: 2>, scalar_prefetch = 0 : i64, scratch_operands = 1 : i64, tpu.core_type = #tpu.core_type<tc>, window_params = [{pipeline_mode = #tpu.pipeline_mode<synchronous>, transform_indices = @transform_0, window_bounds = array<i64: 16, 32>}, {pipeline_mode = #tpu.pipeline_mode<synchronous>, transform_indices = @transform_1, window_bounds = array<i64: 256, 32>}, {pipeline_mode = #tpu.pipeline_mode<synchronous>, transform_indices = @transform_2, window_bounds = array<i64: 2, 8, 8>}, {pipeline_mode = #tpu.pipeline_mode<synchronous>, transform_indices = @transform_3, window_bounds = array<i64: 2, 1, 128>}, {transform_indices = @transform_4, window_bounds = array<i64: 1, 32, 96>}, {transform_indices = @transform_5, window_bounds = array<i64: 1, 32, 32>}, {transform_indices = @transform_6, window_bounds = array<i64: 1, 32, 32>}, {transform_indices = @transform_7, window_bounds = array<i64: 1, 32, 64>}, {transform_indices = @transform_8, window_bounds = array<i64: 1, 32, 32>}, {transform_indices = @transform_9, window_bounds = array<i64: 1, 32, 64>}, {transform_indices = @transform_10, window_bounds = array<i64: 1, 64, 32>}, {transform_indices = @transform_11, window_bounds = array<i64: 1, 13, 128>}, {pipeline_mode = #tpu.pipeline_mode<synchronous>, transform_indices = @transform_12, window_bounds = array<i64: 32, 128>}, {pipeline_mode = #tpu.pipeline_mode<synchronous>, transform_indices = @transform_13, window_bounds = array<i64: 1, 128>}, {pipeline_mode = #tpu.pipeline_mode<synchronous>, transform_indices = @transform_14, window_bounds = array<i64: 16, 128>}, {pipeline_mode = #tpu.pipeline_mode<synchronous>, transform_indices = @transform_15, window_bounds = array<i64: 4, 2, 8, 128>}]} {
    %c1_i32 = arith.constant 1 : i32
    %0 = arith.cmpi eq, %arg0, %c1_i32 : i32
    %c0_i32 = arith.constant 0 : i32
    %1 = arith.cmpi eq, %arg0, %c0_i32 : i32
    %2 = arith.extui %1 : i1 to i32
    %c0_i32_0 = arith.constant 0 : i32
    %3 = arith.cmpi ne, %2, %c0_i32_0 : i32
    scf.if %3 {
      %c0_114 = arith.constant 0 : index
      %c0_115 = arith.constant 0 : index
      %346 = vector.load %arg1[%c0_114, %c0_115] : memref<16x32xf32, #tpu.memory_space<vmem>>, vector<16x32xf32>
      %c0_116 = arith.constant 0 : index
      %c0_117 = arith.constant 0 : index
      %347 = vector.load %arg17[%c0_116, %c0_117] : memref<16x32xf32, #tpu.memory_space<vmem>>, vector<16x32xf32>
      tpu.vector_store %arg17[%c0_116, %c0_117], %346 {strides = array<i32>} : memref<16x32xf32, #tpu.memory_space<vmem>>, vector<16x32xf32>,
    } else {
    }
    %c0 = arith.constant 0 : index
    %c0_1 = arith.constant 0 : index
    %c0_2 = arith.constant 0 : index
    %4 = vector.load %arg12[%c0, %c0_1, %c0_2] : memref<1x13x128xf32, #tpu.memory_space<vmem>>, vector<1x13x128xf32>
    %5 = vector.shape_cast %4 : vector<1x13x128xf32> to vector<13x128xf32>
    %c0_3 = arith.constant 0 : index
    %c0_4 = arith.constant 0 : index
    %6 = vector.load %arg17[%c0_3, %c0_4] : memref<16x32xf32, #tpu.memory_space<vmem>>, vector<16x32xf32>
    %7 = arith.truncf %6 : vector<16x32xf32> to vector<16x32xbf16>
    %c0_5 = arith.constant 0 : index
    %c0_6 = arith.constant 0 : index
    %c0_7 = arith.constant 0 : index
    %8 = vector.load %arg5[%c0_5, %c0_6, %c0_7] : memref<1x32x96xbf16, #tpu.memory_space<vmem>>, vector<1x32x96xbf16>
    %9 = vector.shape_cast %8 : vector<1x32x96xbf16> to vector<32x96xbf16>
    %cst = arith.constant dense<0.000000e+00> : vector<16x96xf32>
    %10 = tpu.matmul %7, %9, %cst {dimension_numbers = #tpu.dot_dimension_numbers<[1], [0], [0], [1], [0, 0, 1, 1], [], []>} : vector<16x32xbf16>, vector<32x96xbf16>, vector<16x96xf32> -> vector<16x96xf32>
    %11 = vector.extract_strided_slice %5 {offsets = [0, 0], sizes = [1, 96], strides = [1, 1]} : vector<13x128xf32> to vector<1x96xf32>
    %12 = vector.broadcast %11 : vector<1x96xf32> to vector<16x96xf32>
    %13 = arith.addf %10, %12 : vector<16x96xf32>
    %14 = arith.truncf %13 : vector<16x96xf32> to vector<16x96xbf16>
    %15 = vector.extract_strided_slice %14 {offsets = [0, 0], sizes = [16, 32], strides = [1, 1]} : vector<16x96xbf16> to vector<16x32xbf16>
    %16 = vector.extract_strided_slice %14 {offsets = [0, 32], sizes = [16, 32], strides = [1, 1]} : vector<16x96xbf16> to vector<16x32xbf16>
    %17 = vector.extract_strided_slice %14 {offsets = [0, 64], sizes = [16, 32], strides = [1, 1]} : vector<16x96xbf16> to vector<16x32xbf16>
    %c0_8 = arith.constant 0 : index
    %c0_9 = arith.constant 0 : index
    %c0_10 = arith.constant 0 : index
    %18 = vector.load %arg3[%c0_8, %c0_9, %c0_10] : memref<2x8x8xf32, #tpu.memory_space<vmem>>, vector<2x8x8xf32>
    %cst_11 = arith.constant 0.000000e+00 : f32
    %19 = vector.broadcast %cst_11 : f32 to vector<16x32xf32>
    %20 = vector.extract_strided_slice %15 {offsets = [0, 0], sizes = [16, 8], strides = [1, 1]} : vector<16x32xbf16> to vector<16x8xbf16>
    %21 = vector.shape_cast %20 : vector<16x8xbf16> to vector<2x8x8xbf16>
    %22 = vector.extract_strided_slice %16 {offsets = [0, 0], sizes = [16, 8], strides = [1, 1]} : vector<16x32xbf16> to vector<16x8xbf16>
    %23 = vector.shape_cast %22 : vector<16x8xbf16> to vector<2x8x8xbf16>
    %24 = vector.extract_strided_slice %17 {offsets = [0, 0], sizes = [16, 8], strides = [1, 1]} : vector<16x32xbf16> to vector<16x8xbf16>
    %25 = vector.shape_cast %24 : vector<16x8xbf16> to vector<2x8x8xbf16>
    "tpu.trace_start"() <{level = 10 : i32, message = "bqd,bkd->bqk"}> : () -> ()
    %cst_12 = arith.constant dense<0.000000e+00> : vector<2x8x8xf32>
    %26 = tpu.matmul %21, %23, %cst_12 {dimension_numbers = #tpu.dot_dimension_numbers<[2], [2], [1], [1], [0, 0, 0, 1, 1, 1], [0], [0]>} : vector<2x8x8xbf16>, vector<2x8x8xbf16>, vector<2x8x8xf32> -> vector<2x8x8xf32>
    "tpu.trace_stop"() : () -> ()
    %27 = arith.addf %26, %18 : vector<2x8x8xf32>
    %cst_13 = arith.constant dense<0xFF800000> : vector<2x8xf32>
    %28 = vector.multi_reduction <maximumf>, %27, %cst_13 [2] : vector<2x8x8xf32> to vector<2x8xf32>
    %29 = vector.shape_cast %28 : vector<2x8xf32> to vector<2x8x1xf32>
    %30 = vector.broadcast %29 : vector<2x8x1xf32> to vector<2x8x8xf32>
    %31 = arith.subf %27, %30 : vector<2x8x8xf32>
    %32 = math.exp %31 : vector<2x8x8xf32>
    %cst_14 = arith.constant dense<0.000000e+00> : vector<2x8xf32>
    %33 = vector.multi_reduction <add>, %32, %cst_14 [2] : vector<2x8x8xf32> to vector<2x8xf32>
    %34 = vector.shape_cast %33 : vector<2x8xf32> to vector<2x8x1xf32>
    %35 = tpu.reciprocal %34 {approx = true} : vector<2x8x1xf32> -> vector<2x8x1xf32>
    %36 = vector.broadcast %35 : vector<2x8x1xf32> to vector<2x8x8xf32>
    %37 = arith.mulf %32, %36 : vector<2x8x8xf32>
    %38 = arith.truncf %37 : vector<2x8x8xf32> to vector<2x8x8xbf16>
    "tpu.trace_start"() <{level = 10 : i32, message = "bqk,bkd->bqd"}> : () -> ()
    %cst_15 = arith.constant dense<0.000000e+00> : vector<2x8x8xf32>
    %39 = tpu.matmul %38, %25, %cst_15 {dimension_numbers = #tpu.dot_dimension_numbers<[2], [1], [1], [2], [0, 0, 0, 1, 1, 2], [0], [0]>} : vector<2x8x8xbf16>, vector<2x8x8xbf16>, vector<2x8x8xf32> -> vector<2x8x8xf32>
    "tpu.trace_stop"() : () -> ()
    %40 = vector.shape_cast %39 : vector<2x8x8xf32> to vector<16x8xf32>
    %41 = arith.truncf %40 : vector<16x8xf32> to vector<16x8xbf16>
    %c0_16 = arith.constant 0 : index
    %c0_17 = arith.constant 0 : index
    %c0_18 = arith.constant 0 : index
    %42 = vector.load %arg6[%c0_16, %c0_17, %c0_18] : memref<1x32x32xbf16, #tpu.memory_space<vmem>>, vector<1x8x32xbf16>
    %43 = vector.shape_cast %42 : vector<1x8x32xbf16> to vector<8x32xbf16>
    %cst_19 = arith.constant dense<0.000000e+00> : vector<16x32xf32>
    %44 = tpu.matmul %41, %43, %cst_19 {dimension_numbers = #tpu.dot_dimension_numbers<[1], [0], [0], [1], [0, 0, 1, 1], [], []>} : vector<16x8xbf16>, vector<8x32xbf16>, vector<16x32xf32> -> vector<16x32xf32>
    %45 = arith.addf %19, %44 : vector<16x32xf32>
    %46 = vector.extract_strided_slice %15 {offsets = [0, 8], sizes = [16, 8], strides = [1, 1]} : vector<16x32xbf16> to vector<16x8xbf16>
    %47 = vector.shape_cast %46 : vector<16x8xbf16> to vector<2x8x8xbf16>
    %48 = vector.extract_strided_slice %16 {offsets = [0, 8], sizes = [16, 8], strides = [1, 1]} : vector<16x32xbf16> to vector<16x8xbf16>
    %49 = vector.shape_cast %48 : vector<16x8xbf16> to vector<2x8x8xbf16>
    %50 = vector.extract_strided_slice %17 {offsets = [0, 8], sizes = [16, 8], strides = [1, 1]} : vector<16x32xbf16> to vector<16x8xbf16>
    %51 = vector.shape_cast %50 : vector<16x8xbf16> to vector<2x8x8xbf16>
    "tpu.trace_start"() <{level = 10 : i32, message = "bqd,bkd->bqk"}> : () -> ()
    %cst_20 = arith.constant dense<0.000000e+00> : vector<2x8x8xf32>
    %52 = tpu.matmul %47, %49, %cst_20 {dimension_numbers = #tpu.dot_dimension_numbers<[2], [2], [1], [1], [0, 0, 0, 1, 1, 1], [0], [0]>} : vector<2x8x8xbf16>, vector<2x8x8xbf16>, vector<2x8x8xf32> -> vector<2x8x8xf32>
    "tpu.trace_stop"() : () -> ()
    %53 = arith.addf %52, %18 : vector<2x8x8xf32>
    %cst_21 = arith.constant dense<0xFF800000> : vector<2x8xf32>
    %54 = vector.multi_reduction <maximumf>, %53, %cst_21 [2] : vector<2x8x8xf32> to vector<2x8xf32>
    %55 = vector.shape_cast %54 : vector<2x8xf32> to vector<2x8x1xf32>
    %56 = vector.broadcast %55 : vector<2x8x1xf32> to vector<2x8x8xf32>
    %57 = arith.subf %53, %56 : vector<2x8x8xf32>
    %58 = math.exp %57 : vector<2x8x8xf32>
    %cst_22 = arith.constant dense<0.000000e+00> : vector<2x8xf32>
    %59 = vector.multi_reduction <add>, %58, %cst_22 [2] : vector<2x8x8xf32> to vector<2x8xf32>
    %60 = vector.shape_cast %59 : vector<2x8xf32> to vector<2x8x1xf32>
    %61 = tpu.reciprocal %60 {approx = true} : vector<2x8x1xf32> -> vector<2x8x1xf32>
    %62 = vector.broadcast %61 : vector<2x8x1xf32> to vector<2x8x8xf32>
    %63 = arith.mulf %58, %62 : vector<2x8x8xf32>
    %64 = arith.truncf %63 : vector<2x8x8xf32> to vector<2x8x8xbf16>
    "tpu.trace_start"() <{level = 10 : i32, message = "bqk,bkd->bqd"}> : () -> ()
    %cst_23 = arith.constant dense<0.000000e+00> : vector<2x8x8xf32>
    %65 = tpu.matmul %64, %51, %cst_23 {dimension_numbers = #tpu.dot_dimension_numbers<[2], [1], [1], [2], [0, 0, 0, 1, 1, 2], [0], [0]>} : vector<2x8x8xbf16>, vector<2x8x8xbf16>, vector<2x8x8xf32> -> vector<2x8x8xf32>
    "tpu.trace_stop"() : () -> ()
    %66 = vector.shape_cast %65 : vector<2x8x8xf32> to vector<16x8xf32>
    %67 = arith.truncf %66 : vector<16x8xf32> to vector<16x8xbf16>
    %c0_24 = arith.constant 0 : index
    %c8 = arith.constant 8 : index
    %c0_25 = arith.constant 0 : index
    %68 = vector.load %arg6[%c0_24, %c8, %c0_25] : memref<1x32x32xbf16, #tpu.memory_space<vmem>>, vector<1x8x32xbf16>
    %69 = vector.shape_cast %68 : vector<1x8x32xbf16> to vector<8x32xbf16>
    %cst_26 = arith.constant dense<0.000000e+00> : vector<16x32xf32>
    %70 = tpu.matmul %67, %69, %cst_26 {dimension_numbers = #tpu.dot_dimension_numbers<[1], [0], [0], [1], [0, 0, 1, 1], [], []>} : vector<16x8xbf16>, vector<8x32xbf16>, vector<16x32xf32> -> vector<16x32xf32>
    %71 = arith.addf %45, %70 : vector<16x32xf32>
    %72 = vector.extract_strided_slice %15 {offsets = [0, 16], sizes = [16, 8], strides = [1, 1]} : vector<16x32xbf16> to vector<16x8xbf16>
    %73 = vector.shape_cast %72 : vector<16x8xbf16> to vector<2x8x8xbf16>
    %74 = vector.extract_strided_slice %16 {offsets = [0, 16], sizes = [16, 8], strides = [1, 1]} : vector<16x32xbf16> to vector<16x8xbf16>
    %75 = vector.shape_cast %74 : vector<16x8xbf16> to vector<2x8x8xbf16>
    %76 = vector.extract_strided_slice %17 {offsets = [0, 16], sizes = [16, 8], strides = [1, 1]} : vector<16x32xbf16> to vector<16x8xbf16>
    %77 = vector.shape_cast %76 : vector<16x8xbf16> to vector<2x8x8xbf16>
    "tpu.trace_start"() <{level = 10 : i32, message = "bqd,bkd->bqk"}> : () -> ()
    %cst_27 = arith.constant dense<0.000000e+00> : vector<2x8x8xf32>
    %78 = tpu.matmul %73, %75, %cst_27 {dimension_numbers = #tpu.dot_dimension_numbers<[2], [2], [1], [1], [0, 0, 0, 1, 1, 1], [0], [0]>} : vector<2x8x8xbf16>, vector<2x8x8xbf16>, vector<2x8x8xf32> -> vector<2x8x8xf32>
    "tpu.trace_stop"() : () -> ()
    %79 = arith.addf %78, %18 : vector<2x8x8xf32>
    %cst_28 = arith.constant dense<0xFF800000> : vector<2x8xf32>
    %80 = vector.multi_reduction <maximumf>, %79, %cst_28 [2] : vector<2x8x8xf32> to vector<2x8xf32>
    %81 = vector.shape_cast %80 : vector<2x8xf32> to vector<2x8x1xf32>
    %82 = vector.broadcast %81 : vector<2x8x1xf32> to vector<2x8x8xf32>
    %83 = arith.subf %79, %82 : vector<2x8x8xf32>
    %84 = math.exp %83 : vector<2x8x8xf32>
    %cst_29 = arith.constant dense<0.000000e+00> : vector<2x8xf32>
    %85 = vector.multi_reduction <add>, %84, %cst_29 [2] : vector<2x8x8xf32> to vector<2x8xf32>
    %86 = vector.shape_cast %85 : vector<2x8xf32> to vector<2x8x1xf32>
    %87 = tpu.reciprocal %86 {approx = true} : vector<2x8x1xf32> -> vector<2x8x1xf32>
    %88 = vector.broadcast %87 : vector<2x8x1xf32> to vector<2x8x8xf32>
    %89 = arith.mulf %84, %88 : vector<2x8x8xf32>
    %90 = arith.truncf %89 : vector<2x8x8xf32> to vector<2x8x8xbf16>
    "tpu.trace_start"() <{level = 10 : i32, message = "bqk,bkd->bqd"}> : () -> ()
    %cst_30 = arith.constant dense<0.000000e+00> : vector<2x8x8xf32>
    %91 = tpu.matmul %90, %77, %cst_30 {dimension_numbers = #tpu.dot_dimension_numbers<[2], [1], [1], [2], [0, 0, 0, 1, 1, 2], [0], [0]>} : vector<2x8x8xbf16>, vector<2x8x8xbf16>, vector<2x8x8xf32> -> vector<2x8x8xf32>
    "tpu.trace_stop"() : () -> ()
    %92 = vector.shape_cast %91 : vector<2x8x8xf32> to vector<16x8xf32>
    %93 = arith.truncf %92 : vector<16x8xf32> to vector<16x8xbf16>
    %c0_31 = arith.constant 0 : index
    %c16 = arith.constant 16 : index
    %c0_32 = arith.constant 0 : index
    %94 = vector.load %arg6[%c0_31, %c16, %c0_32] : memref<1x32x32xbf16, #tpu.memory_space<vmem>>, vector<1x8x32xbf16>
    %95 = vector.shape_cast %94 : vector<1x8x32xbf16> to vector<8x32xbf16>
    %cst_33 = arith.constant dense<0.000000e+00> : vector<16x32xf32>
    %96 = tpu.matmul %93, %95, %cst_33 {dimension_numbers = #tpu.dot_dimension_numbers<[1], [0], [0], [1], [0, 0, 1, 1], [], []>} : vector<16x8xbf16>, vector<8x32xbf16>, vector<16x32xf32> -> vector<16x32xf32>
    %97 = arith.addf %71, %96 : vector<16x32xf32>
    %98 = vector.extract_strided_slice %15 {offsets = [0, 24], sizes = [16, 8], strides = [1, 1]} : vector<16x32xbf16> to vector<16x8xbf16>
    %99 = vector.shape_cast %98 : vector<16x8xbf16> to vector<2x8x8xbf16>
    %100 = vector.extract_strided_slice %16 {offsets = [0, 24], sizes = [16, 8], strides = [1, 1]} : vector<16x32xbf16> to vector<16x8xbf16>
    %101 = vector.shape_cast %100 : vector<16x8xbf16> to vector<2x8x8xbf16>
    %102 = vector.extract_strided_slice %17 {offsets = [0, 24], sizes = [16, 8], strides = [1, 1]} : vector<16x32xbf16> to vector<16x8xbf16>
    %103 = vector.shape_cast %102 : vector<16x8xbf16> to vector<2x8x8xbf16>
    "tpu.trace_start"() <{level = 10 : i32, message = "bqd,bkd->bqk"}> : () -> ()
    %cst_34 = arith.constant dense<0.000000e+00> : vector<2x8x8xf32>
    %104 = tpu.matmul %99, %101, %cst_34 {dimension_numbers = #tpu.dot_dimension_numbers<[2], [2], [1], [1], [0, 0, 0, 1, 1, 1], [0], [0]>} : vector<2x8x8xbf16>, vector<2x8x8xbf16>, vector<2x8x8xf32> -> vector<2x8x8xf32>
    "tpu.trace_stop"() : () -> ()
    %105 = arith.addf %104, %18 : vector<2x8x8xf32>
    %cst_35 = arith.constant dense<0xFF800000> : vector<2x8xf32>
    %106 = vector.multi_reduction <maximumf>, %105, %cst_35 [2] : vector<2x8x8xf32> to vector<2x8xf32>
    %107 = vector.shape_cast %106 : vector<2x8xf32> to vector<2x8x1xf32>
    %108 = vector.broadcast %107 : vector<2x8x1xf32> to vector<2x8x8xf32>
    %109 = arith.subf %105, %108 : vector<2x8x8xf32>
    %110 = math.exp %109 : vector<2x8x8xf32>
    %cst_36 = arith.constant dense<0.000000e+00> : vector<2x8xf32>
    %111 = vector.multi_reduction <add>, %110, %cst_36 [2] : vector<2x8x8xf32> to vector<2x8xf32>
    %112 = vector.shape_cast %111 : vector<2x8xf32> to vector<2x8x1xf32>
    %113 = tpu.reciprocal %112 {approx = true} : vector<2x8x1xf32> -> vector<2x8x1xf32>
    %114 = vector.broadcast %113 : vector<2x8x1xf32> to vector<2x8x8xf32>
    %115 = arith.mulf %110, %114 : vector<2x8x8xf32>
    %116 = arith.truncf %115 : vector<2x8x8xf32> to vector<2x8x8xbf16>
    "tpu.trace_start"() <{level = 10 : i32, message = "bqk,bkd->bqd"}> : () -> ()
    %cst_37 = arith.constant dense<0.000000e+00> : vector<2x8x8xf32>
    %117 = tpu.matmul %116, %103, %cst_37 {dimension_numbers = #tpu.dot_dimension_numbers<[2], [1], [1], [2], [0, 0, 0, 1, 1, 2], [0], [0]>} : vector<2x8x8xbf16>, vector<2x8x8xbf16>, vector<2x8x8xf32> -> vector<2x8x8xf32>
    "tpu.trace_stop"() : () -> ()
    %118 = vector.shape_cast %117 : vector<2x8x8xf32> to vector<16x8xf32>
    %119 = arith.truncf %118 : vector<16x8xf32> to vector<16x8xbf16>
    %c0_38 = arith.constant 0 : index
    %c24 = arith.constant 24 : index
    %c0_39 = arith.constant 0 : index
    %120 = vector.load %arg6[%c0_38, %c24, %c0_39] : memref<1x32x32xbf16, #tpu.memory_space<vmem>>, vector<1x8x32xbf16>
    %121 = vector.shape_cast %120 : vector<1x8x32xbf16> to vector<8x32xbf16>
    %cst_40 = arith.constant dense<0.000000e+00> : vector<16x32xf32>
    %122 = tpu.matmul %119, %121, %cst_40 {dimension_numbers = #tpu.dot_dimension_numbers<[1], [0], [0], [1], [0, 0, 1, 1], [], []>} : vector<16x8xbf16>, vector<8x32xbf16>, vector<16x32xf32> -> vector<16x32xf32>
    %123 = arith.addf %97, %122 : vector<16x32xf32>
    %124 = arith.addf %6, %123 : vector<16x32xf32>
    %125 = vector.extract_strided_slice %5 {offsets = [1, 0], sizes = [1, 32], strides = [1, 1]} : vector<13x128xf32> to vector<1x32xf32>
    %126 = vector.broadcast %125 : vector<1x32xf32> to vector<16x32xf32>
    %127 = arith.addf %124, %126 : vector<16x32xf32>
    %128 = vector.extract_strided_slice %5 {offsets = [2, 0], sizes = [1, 32], strides = [1, 1]} : vector<13x128xf32> to vector<1x32xf32>
    %129 = vector.extract_strided_slice %5 {offsets = [3, 0], sizes = [1, 32], strides = [1, 1]} : vector<13x128xf32> to vector<1x32xf32>
    %cst_41 = arith.constant dense<0.000000e+00> : vector<16xf32>
    %130 = vector.multi_reduction <add>, %127, %cst_41 [1] : vector<16x32xf32> to vector<16xf32>
    %131 = vector.shape_cast %130 : vector<16xf32> to vector<16x1xf32>
    %cst_42 = arith.constant 3.200000e+01 : f32
    %132 = vector.broadcast %cst_42 : f32 to vector<16x1xf32>
    %133 = arith.divf %131, %132 : vector<16x1xf32>
    %134 = vector.broadcast %133 : vector<16x1xf32> to vector<16x32xf32>
    %135 = arith.subf %127, %134 : vector<16x32xf32>
    %136 = arith.mulf %135, %135 : vector<16x32xf32>
    %cst_43 = arith.constant dense<0.000000e+00> : vector<16xf32>
    %137 = vector.multi_reduction <add>, %136, %cst_43 [1] : vector<16x32xf32> to vector<16xf32>
    %138 = vector.shape_cast %137 : vector<16xf32> to vector<16x1xf32>
    %cst_44 = arith.constant 3.200000e+01 : f32
    %139 = vector.broadcast %cst_44 : f32 to vector<16x1xf32>
    %140 = arith.divf %138, %139 : vector<16x1xf32>
    %cst_45 = arith.constant 9.99999974E-6 : f32
    %141 = vector.broadcast %cst_45 : f32 to vector<16x1xf32>
    %142 = arith.addf %140, %141 : vector<16x1xf32>
    %143 = math.rsqrt %142 : vector<16x1xf32>
    %144 = vector.broadcast %143 : vector<16x1xf32> to vector<16x32xf32>
    %145 = arith.mulf %135, %144 : vector<16x32xf32>
    %146 = vector.broadcast %128 : vector<1x32xf32> to vector<16x32xf32>
    %147 = arith.mulf %145, %146 : vector<16x32xf32>
    %148 = vector.broadcast %129 : vector<1x32xf32> to vector<16x32xf32>
    %149 = arith.addf %147, %148 : vector<16x32xf32>
    %150 = arith.truncf %149 : vector<16x32xf32> to vector<16x32xbf16>
    %c0_46 = arith.constant 0 : index
    %c0_47 = arith.constant 0 : index
    %c0_48 = arith.constant 0 : index
    %151 = vector.load %arg7[%c0_46, %c0_47, %c0_48] : memref<1x32x32xbf16, #tpu.memory_space<vmem>>, vector<1x32x32xbf16>
    %152 = vector.shape_cast %151 : vector<1x32x32xbf16> to vector<32x32xbf16>
    %cst_49 = arith.constant dense<0.000000e+00> : vector<16x32xf32>
    %153 = tpu.matmul %150, %152, %cst_49 {dimension_numbers = #tpu.dot_dimension_numbers<[1], [0], [0], [1], [0, 0, 1, 1], [], []>} : vector<16x32xbf16>, vector<32x32xbf16>, vector<16x32xf32> -> vector<16x32xf32>
    %154 = vector.extract_strided_slice %5 {offsets = [4, 0], sizes = [1, 32], strides = [1, 1]} : vector<13x128xf32> to vector<1x32xf32>
    %155 = vector.broadcast %154 : vector<1x32xf32> to vector<16x32xf32>
    %156 = arith.addf %153, %155 : vector<16x32xf32>
    %c0_50 = arith.constant 0 : index
    %c0_51 = arith.constant 0 : index
    %157 = vector.load %arg2[%c0_50, %c0_51] : memref<256x32xbf16, #tpu.memory_space<vmem>>, vector<256x32xbf16>
    %c0_52 = arith.constant 0 : index
    %c0_53 = arith.constant 0 : index
    %c0_54 = arith.constant 0 : index
    %158 = vector.load %arg8[%c0_52, %c0_53, %c0_54] : memref<1x32x64xbf16, #tpu.memory_space<vmem>>, vector<1x32x64xbf16>
    %159 = vector.shape_cast %158 : vector<1x32x64xbf16> to vector<32x64xbf16>
    %cst_55 = arith.constant dense<0.000000e+00> : vector<256x64xf32>
    %160 = tpu.matmul %157, %159, %cst_55 {dimension_numbers = #tpu.dot_dimension_numbers<[1], [0], [0], [1], [0, 0, 1, 1], [], []>} : vector<256x32xbf16>, vector<32x64xbf16>, vector<256x64xf32> -> vector<256x64xf32>
    %161 = vector.extract_strided_slice %5 {offsets = [5, 0], sizes = [1, 64], strides = [1, 1]} : vector<13x128xf32> to vector<1x64xf32>
    %162 = vector.broadcast %161 : vector<1x64xf32> to vector<256x64xf32>
    %163 = arith.addf %160, %162 : vector<256x64xf32>
    %164 = arith.truncf %156 : vector<16x32xf32> to vector<16x32xbf16>
    %165 = arith.truncf %163 : vector<256x64xf32> to vector<256x64xbf16>
    %166 = vector.extract_strided_slice %165 {offsets = [0, 0], sizes = [256, 32], strides = [1, 1]} : vector<256x64xbf16> to vector<256x32xbf16>
    %167 = vector.extract_strided_slice %165 {offsets = [0, 32], sizes = [256, 32], strides = [1, 1]} : vector<256x64xbf16> to vector<256x32xbf16>
    %c0_56 = arith.constant 0 : index
    %c0_57 = arith.constant 0 : index
    %c0_58 = arith.constant 0 : index
    %168 = vector.load %arg4[%c0_56, %c0_57, %c0_58] : memref<2x1x128xf32, #tpu.memory_space<vmem>>, vector<2x1x128xf32>
    %cst_59 = arith.constant 0.000000e+00 : f32
    %169 = vector.broadcast %cst_59 : f32 to vector<16x32xf32>
    %170 = vector.extract_strided_slice %164 {offsets = [0, 0], sizes = [16, 8], strides = [1, 1]} : vector<16x32xbf16> to vector<16x8xbf16>
    %171 = vector.shape_cast %170 : vector<16x8xbf16> to vector<2x8x8xbf16>
    %172 = vector.extract_strided_slice %166 {offsets = [0, 0], sizes = [256, 8], strides = [1, 1]} : vector<256x32xbf16> to vector<256x8xbf16>
    %173 = vector.shape_cast %172 : vector<256x8xbf16> to vector<2x128x8xbf16>
    %174 = vector.extract_strided_slice %167 {offsets = [0, 0], sizes = [256, 8], strides = [1, 1]} : vector<256x32xbf16> to vector<256x8xbf16>
    %175 = vector.shape_cast %174 : vector<256x8xbf16> to vector<2x128x8xbf16>
    "tpu.trace_start"() <{level = 10 : i32, message = "bqd,bkd->bqk"}> : () -> ()
    %cst_60 = arith.constant dense<0.000000e+00> : vector<2x8x128xf32>
    %176 = tpu.matmul %171, %173, %cst_60 {dimension_numbers = #tpu.dot_dimension_numbers<[2], [2], [1], [1], [0, 0, 0, 1, 1, 1], [0], [0]>} : vector<2x8x8xbf16>, vector<2x128x8xbf16>, vector<2x8x128xf32> -> vector<2x8x128xf32>
    "tpu.trace_stop"() : () -> ()
    %177 = vector.broadcast %168 : vector<2x1x128xf32> to vector<2x8x128xf32>
    %178 = arith.addf %176, %177 : vector<2x8x128xf32>
    %cst_61 = arith.constant dense<0xFF800000> : vector<2x8xf32>
    %179 = vector.multi_reduction <maximumf>, %178, %cst_61 [2] : vector<2x8x128xf32> to vector<2x8xf32>
    %180 = vector.shape_cast %179 : vector<2x8xf32> to vector<2x8x1xf32>
    %181 = vector.broadcast %180 : vector<2x8x1xf32> to vector<2x8x128xf32>
    %182 = arith.subf %178, %181 : vector<2x8x128xf32>
    %183 = math.exp %182 : vector<2x8x128xf32>
    %cst_62 = arith.constant dense<0.000000e+00> : vector<2x8xf32>
    %184 = vector.multi_reduction <add>, %183, %cst_62 [2] : vector<2x8x128xf32> to vector<2x8xf32>
    %185 = vector.shape_cast %184 : vector<2x8xf32> to vector<2x8x1xf32>
    %186 = tpu.reciprocal %185 {approx = true} : vector<2x8x1xf32> -> vector<2x8x1xf32>
    %187 = vector.broadcast %186 : vector<2x8x1xf32> to vector<2x8x128xf32>
    %188 = arith.mulf %183, %187 : vector<2x8x128xf32>
    %189 = arith.truncf %188 : vector<2x8x128xf32> to vector<2x8x128xbf16>
    "tpu.trace_start"() <{level = 10 : i32, message = "bqk,bkd->bqd"}> : () -> ()
    %cst_63 = arith.constant dense<0.000000e+00> : vector<2x8x8xf32>
    %190 = tpu.matmul %189, %175, %cst_63 {dimension_numbers = #tpu.dot_dimension_numbers<[2], [1], [1], [2], [0, 0, 0, 1, 1, 2], [0], [0]>} : vector<2x8x128xbf16>, vector<2x128x8xbf16>, vector<2x8x8xf32> -> vector<2x8x8xf32>
    "tpu.trace_stop"() : () -> ()
    %191 = vector.shape_cast %190 : vector<2x8x8xf32> to vector<16x8xf32>
    %192 = arith.truncf %191 : vector<16x8xf32> to vector<16x8xbf16>
    %c0_64 = arith.constant 0 : index
    %c0_65 = arith.constant 0 : index
    %c0_66 = arith.constant 0 : index
    %193 = vector.load %arg9[%c0_64, %c0_65, %c0_66] : memref<1x32x32xbf16, #tpu.memory_space<vmem>>, vector<1x8x32xbf16>
    %194 = vector.shape_cast %193 : vector<1x8x32xbf16> to vector<8x32xbf16>
    %cst_67 = arith.constant dense<0.000000e+00> : vector<16x32xf32>
    %195 = tpu.matmul %192, %194, %cst_67 {dimension_numbers = #tpu.dot_dimension_numbers<[1], [0], [0], [1], [0, 0, 1, 1], [], []>} : vector<16x8xbf16>, vector<8x32xbf16>, vector<16x32xf32> -> vector<16x32xf32>
    %196 = arith.addf %169, %195 : vector<16x32xf32>
    %197 = vector.extract_strided_slice %164 {offsets = [0, 8], sizes = [16, 8], strides = [1, 1]} : vector<16x32xbf16> to vector<16x8xbf16>
    %198 = vector.shape_cast %197 : vector<16x8xbf16> to vector<2x8x8xbf16>
    %199 = vector.extract_strided_slice %166 {offsets = [0, 8], sizes = [256, 8], strides = [1, 1]} : vector<256x32xbf16> to vector<256x8xbf16>
    %200 = vector.shape_cast %199 : vector<256x8xbf16> to vector<2x128x8xbf16>
    %201 = vector.extract_strided_slice %167 {offsets = [0, 8], sizes = [256, 8], strides = [1, 1]} : vector<256x32xbf16> to vector<256x8xbf16>
    %202 = vector.shape_cast %201 : vector<256x8xbf16> to vector<2x128x8xbf16>
    "tpu.trace_start"() <{level = 10 : i32, message = "bqd,bkd->bqk"}> : () -> ()
    %cst_68 = arith.constant dense<0.000000e+00> : vector<2x8x128xf32>
    %203 = tpu.matmul %198, %200, %cst_68 {dimension_numbers = #tpu.dot_dimension_numbers<[2], [2], [1], [1], [0, 0, 0, 1, 1, 1], [0], [0]>} : vector<2x8x8xbf16>, vector<2x128x8xbf16>, vector<2x8x128xf32> -> vector<2x8x128xf32>
    "tpu.trace_stop"() : () -> ()
    %204 = vector.broadcast %168 : vector<2x1x128xf32> to vector<2x8x128xf32>
    %205 = arith.addf %203, %204 : vector<2x8x128xf32>
    %cst_69 = arith.constant dense<0xFF800000> : vector<2x8xf32>
    %206 = vector.multi_reduction <maximumf>, %205, %cst_69 [2] : vector<2x8x128xf32> to vector<2x8xf32>
    %207 = vector.shape_cast %206 : vector<2x8xf32> to vector<2x8x1xf32>
    %208 = vector.broadcast %207 : vector<2x8x1xf32> to vector<2x8x128xf32>
    %209 = arith.subf %205, %208 : vector<2x8x128xf32>
    %210 = math.exp %209 : vector<2x8x128xf32>
    %cst_70 = arith.constant dense<0.000000e+00> : vector<2x8xf32>
    %211 = vector.multi_reduction <add>, %210, %cst_70 [2] : vector<2x8x128xf32> to vector<2x8xf32>
    %212 = vector.shape_cast %211 : vector<2x8xf32> to vector<2x8x1xf32>
    %213 = tpu.reciprocal %212 {approx = true} : vector<2x8x1xf32> -> vector<2x8x1xf32>
    %214 = vector.broadcast %213 : vector<2x8x1xf32> to vector<2x8x128xf32>
    %215 = arith.mulf %210, %214 : vector<2x8x128xf32>
    %216 = arith.truncf %215 : vector<2x8x128xf32> to vector<2x8x128xbf16>
    "tpu.trace_start"() <{level = 10 : i32, message = "bqk,bkd->bqd"}> : () -> ()
    %cst_71 = arith.constant dense<0.000000e+00> : vector<2x8x8xf32>
    %217 = tpu.matmul %216, %202, %cst_71 {dimension_numbers = #tpu.dot_dimension_numbers<[2], [1], [1], [2], [0, 0, 0, 1, 1, 2], [0], [0]>} : vector<2x8x128xbf16>, vector<2x128x8xbf16>, vector<2x8x8xf32> -> vector<2x8x8xf32>
    "tpu.trace_stop"() : () -> ()
    %218 = vector.shape_cast %217 : vector<2x8x8xf32> to vector<16x8xf32>
    %219 = arith.truncf %218 : vector<16x8xf32> to vector<16x8xbf16>
    %c0_72 = arith.constant 0 : index
    %c8_73 = arith.constant 8 : index
    %c0_74 = arith.constant 0 : index
    %220 = vector.load %arg9[%c0_72, %c8_73, %c0_74] : memref<1x32x32xbf16, #tpu.memory_space<vmem>>, vector<1x8x32xbf16>
    %221 = vector.shape_cast %220 : vector<1x8x32xbf16> to vector<8x32xbf16>
    %cst_75 = arith.constant dense<0.000000e+00> : vector<16x32xf32>
    %222 = tpu.matmul %219, %221, %cst_75 {dimension_numbers = #tpu.dot_dimension_numbers<[1], [0], [0], [1], [0, 0, 1, 1], [], []>} : vector<16x8xbf16>, vector<8x32xbf16>, vector<16x32xf32> -> vector<16x32xf32>
    %223 = arith.addf %196, %222 : vector<16x32xf32>
    %224 = vector.extract_strided_slice %164 {offsets = [0, 16], sizes = [16, 8], strides = [1, 1]} : vector<16x32xbf16> to vector<16x8xbf16>
    %225 = vector.shape_cast %224 : vector<16x8xbf16> to vector<2x8x8xbf16>
    %226 = vector.extract_strided_slice %166 {offsets = [0, 16], sizes = [256, 8], strides = [1, 1]} : vector<256x32xbf16> to vector<256x8xbf16>
    %227 = vector.shape_cast %226 : vector<256x8xbf16> to vector<2x128x8xbf16>
    %228 = vector.extract_strided_slice %167 {offsets = [0, 16], sizes = [256, 8], strides = [1, 1]} : vector<256x32xbf16> to vector<256x8xbf16>
    %229 = vector.shape_cast %228 : vector<256x8xbf16> to vector<2x128x8xbf16>
    "tpu.trace_start"() <{level = 10 : i32, message = "bqd,bkd->bqk"}> : () -> ()
    %cst_76 = arith.constant dense<0.000000e+00> : vector<2x8x128xf32>
    %230 = tpu.matmul %225, %227, %cst_76 {dimension_numbers = #tpu.dot_dimension_numbers<[2], [2], [1], [1], [0, 0, 0, 1, 1, 1], [0], [0]>} : vector<2x8x8xbf16>, vector<2x128x8xbf16>, vector<2x8x128xf32> -> vector<2x8x128xf32>
    "tpu.trace_stop"() : () -> ()
    %231 = vector.broadcast %168 : vector<2x1x128xf32> to vector<2x8x128xf32>
    %232 = arith.addf %230, %231 : vector<2x8x128xf32>
    %cst_77 = arith.constant dense<0xFF800000> : vector<2x8xf32>
    %233 = vector.multi_reduction <maximumf>, %232, %cst_77 [2] : vector<2x8x128xf32> to vector<2x8xf32>
    %234 = vector.shape_cast %233 : vector<2x8xf32> to vector<2x8x1xf32>
    %235 = vector.broadcast %234 : vector<2x8x1xf32> to vector<2x8x128xf32>
    %236 = arith.subf %232, %235 : vector<2x8x128xf32>
    %237 = math.exp %236 : vector<2x8x128xf32>
    %cst_78 = arith.constant dense<0.000000e+00> : vector<2x8xf32>
    %238 = vector.multi_reduction <add>, %237, %cst_78 [2] : vector<2x8x128xf32> to vector<2x8xf32>
    %239 = vector.shape_cast %238 : vector<2x8xf32> to vector<2x8x1xf32>
    %240 = tpu.reciprocal %239 {approx = true} : vector<2x8x1xf32> -> vector<2x8x1xf32>
    %241 = vector.broadcast %240 : vector<2x8x1xf32> to vector<2x8x128xf32>
    %242 = arith.mulf %237, %241 : vector<2x8x128xf32>
    %243 = arith.truncf %242 : vector<2x8x128xf32> to vector<2x8x128xbf16>
    "tpu.trace_start"() <{level = 10 : i32, message = "bqk,bkd->bqd"}> : () -> ()
    %cst_79 = arith.constant dense<0.000000e+00> : vector<2x8x8xf32>
    %244 = tpu.matmul %243, %229, %cst_79 {dimension_numbers = #tpu.dot_dimension_numbers<[2], [1], [1], [2], [0, 0, 0, 1, 1, 2], [0], [0]>} : vector<2x8x128xbf16>, vector<2x128x8xbf16>, vector<2x8x8xf32> -> vector<2x8x8xf32>
    "tpu.trace_stop"() : () -> ()
    %245 = vector.shape_cast %244 : vector<2x8x8xf32> to vector<16x8xf32>
    %246 = arith.truncf %245 : vector<16x8xf32> to vector<16x8xbf16>
    %c0_80 = arith.constant 0 : index
    %c16_81 = arith.constant 16 : index
    %c0_82 = arith.constant 0 : index
    %247 = vector.load %arg9[%c0_80, %c16_81, %c0_82] : memref<1x32x32xbf16, #tpu.memory_space<vmem>>, vector<1x8x32xbf16>
    %248 = vector.shape_cast %247 : vector<1x8x32xbf16> to vector<8x32xbf16>
    %cst_83 = arith.constant dense<0.000000e+00> : vector<16x32xf32>
    %249 = tpu.matmul %246, %248, %cst_83 {dimension_numbers = #tpu.dot_dimension_numbers<[1], [0], [0], [1], [0, 0, 1, 1], [], []>} : vector<16x8xbf16>, vector<8x32xbf16>, vector<16x32xf32> -> vector<16x32xf32>
    %250 = arith.addf %223, %249 : vector<16x32xf32>
    %251 = vector.extract_strided_slice %164 {offsets = [0, 24], sizes = [16, 8], strides = [1, 1]} : vector<16x32xbf16> to vector<16x8xbf16>
    %252 = vector.shape_cast %251 : vector<16x8xbf16> to vector<2x8x8xbf16>
    %253 = vector.extract_strided_slice %166 {offsets = [0, 24], sizes = [256, 8], strides = [1, 1]} : vector<256x32xbf16> to vector<256x8xbf16>
    %254 = vector.shape_cast %253 : vector<256x8xbf16> to vector<2x128x8xbf16>
    %255 = vector.extract_strided_slice %167 {offsets = [0, 24], sizes = [256, 8], strides = [1, 1]} : vector<256x32xbf16> to vector<256x8xbf16>
    %256 = vector.shape_cast %255 : vector<256x8xbf16> to vector<2x128x8xbf16>
    "tpu.trace_start"() <{level = 10 : i32, message = "bqd,bkd->bqk"}> : () -> ()
    %cst_84 = arith.constant dense<0.000000e+00> : vector<2x8x128xf32>
    %257 = tpu.matmul %252, %254, %cst_84 {dimension_numbers = #tpu.dot_dimension_numbers<[2], [2], [1], [1], [0, 0, 0, 1, 1, 1], [0], [0]>} : vector<2x8x8xbf16>, vector<2x128x8xbf16>, vector<2x8x128xf32> -> vector<2x8x128xf32>
    "tpu.trace_stop"() : () -> ()
    %258 = vector.broadcast %168 : vector<2x1x128xf32> to vector<2x8x128xf32>
    %259 = arith.addf %257, %258 : vector<2x8x128xf32>
    %cst_85 = arith.constant dense<0xFF800000> : vector<2x8xf32>
    %260 = vector.multi_reduction <maximumf>, %259, %cst_85 [2] : vector<2x8x128xf32> to vector<2x8xf32>
    %261 = vector.shape_cast %260 : vector<2x8xf32> to vector<2x8x1xf32>
    %262 = vector.broadcast %261 : vector<2x8x1xf32> to vector<2x8x128xf32>
    %263 = arith.subf %259, %262 : vector<2x8x128xf32>
    %264 = math.exp %263 : vector<2x8x128xf32>
    %cst_86 = arith.constant dense<0.000000e+00> : vector<2x8xf32>
    %265 = vector.multi_reduction <add>, %264, %cst_86 [2] : vector<2x8x128xf32> to vector<2x8xf32>
    %266 = vector.shape_cast %265 : vector<2x8xf32> to vector<2x8x1xf32>
    %267 = tpu.reciprocal %266 {approx = true} : vector<2x8x1xf32> -> vector<2x8x1xf32>
    %268 = vector.broadcast %267 : vector<2x8x1xf32> to vector<2x8x128xf32>
    %269 = arith.mulf %264, %268 : vector<2x8x128xf32>
    %270 = arith.truncf %269 : vector<2x8x128xf32> to vector<2x8x128xbf16>
    "tpu.trace_start"() <{level = 10 : i32, message = "bqk,bkd->bqd"}> : () -> ()
    %cst_87 = arith.constant dense<0.000000e+00> : vector<2x8x8xf32>
    %271 = tpu.matmul %270, %256, %cst_87 {dimension_numbers = #tpu.dot_dimension_numbers<[2], [1], [1], [2], [0, 0, 0, 1, 1, 2], [0], [0]>} : vector<2x8x128xbf16>, vector<2x128x8xbf16>, vector<2x8x8xf32> -> vector<2x8x8xf32>
    "tpu.trace_stop"() : () -> ()
    %272 = vector.shape_cast %271 : vector<2x8x8xf32> to vector<16x8xf32>
    %273 = arith.truncf %272 : vector<16x8xf32> to vector<16x8xbf16>
    %c0_88 = arith.constant 0 : index
    %c24_89 = arith.constant 24 : index
    %c0_90 = arith.constant 0 : index
    %274 = vector.load %arg9[%c0_88, %c24_89, %c0_90] : memref<1x32x32xbf16, #tpu.memory_space<vmem>>, vector<1x8x32xbf16>
    %275 = vector.shape_cast %274 : vector<1x8x32xbf16> to vector<8x32xbf16>
    %cst_91 = arith.constant dense<0.000000e+00> : vector<16x32xf32>
    %276 = tpu.matmul %273, %275, %cst_91 {dimension_numbers = #tpu.dot_dimension_numbers<[1], [0], [0], [1], [0, 0, 1, 1], [], []>} : vector<16x8xbf16>, vector<8x32xbf16>, vector<16x32xf32> -> vector<16x32xf32>
    %277 = arith.addf %250, %276 : vector<16x32xf32>
    %278 = arith.addf %149, %277 : vector<16x32xf32>
    %279 = vector.extract_strided_slice %5 {offsets = [6, 0], sizes = [1, 32], strides = [1, 1]} : vector<13x128xf32> to vector<1x32xf32>
    %280 = vector.broadcast %279 : vector<1x32xf32> to vector<16x32xf32>
    %281 = arith.addf %278, %280 : vector<16x32xf32>
    %282 = vector.extract_strided_slice %5 {offsets = [7, 0], sizes = [1, 32], strides = [1, 1]} : vector<13x128xf32> to vector<1x32xf32>
    %283 = vector.extract_strided_slice %5 {offsets = [8, 0], sizes = [1, 32], strides = [1, 1]} : vector<13x128xf32> to vector<1x32xf32>
    %cst_92 = arith.constant dense<0.000000e+00> : vector<16xf32>
    %284 = vector.multi_reduction <add>, %281, %cst_92 [1] : vector<16x32xf32> to vector<16xf32>
    %285 = vector.shape_cast %284 : vector<16xf32> to vector<16x1xf32>
    %cst_93 = arith.constant 3.200000e+01 : f32
    %286 = vector.broadcast %cst_93 : f32 to vector<16x1xf32>
    %287 = arith.divf %285, %286 : vector<16x1xf32>
    %288 = vector.broadcast %287 : vector<16x1xf32> to vector<16x32xf32>
    %289 = arith.subf %281, %288 : vector<16x32xf32>
    %290 = arith.mulf %289, %289 : vector<16x32xf32>
    %cst_94 = arith.constant dense<0.000000e+00> : vector<16xf32>
    %291 = vector.multi_reduction <add>, %290, %cst_94 [1] : vector<16x32xf32> to vector<16xf32>
    %292 = vector.shape_cast %291 : vector<16xf32> to vector<16x1xf32>
    %cst_95 = arith.constant 3.200000e+01 : f32
    %293 = vector.broadcast %cst_95 : f32 to vector<16x1xf32>
    %294 = arith.divf %292, %293 : vector<16x1xf32>
    %cst_96 = arith.constant 9.99999974E-6 : f32
    %295 = vector.broadcast %cst_96 : f32 to vector<16x1xf32>
    %296 = arith.addf %294, %295 : vector<16x1xf32>
    %297 = math.rsqrt %296 : vector<16x1xf32>
    %298 = vector.broadcast %297 : vector<16x1xf32> to vector<16x32xf32>
    %299 = arith.mulf %289, %298 : vector<16x32xf32>
    %300 = vector.broadcast %282 : vector<1x32xf32> to vector<16x32xf32>
    %301 = arith.mulf %299, %300 : vector<16x32xf32>
    %302 = vector.broadcast %283 : vector<1x32xf32> to vector<16x32xf32>
    %303 = arith.addf %301, %302 : vector<16x32xf32>
    %304 = arith.truncf %303 : vector<16x32xf32> to vector<16x32xbf16>
    %c0_97 = arith.constant 0 : index
    %c0_98 = arith.constant 0 : index
    %c0_99 = arith.constant 0 : index
    %305 = vector.load %arg10[%c0_97, %c0_98, %c0_99] : memref<1x32x64xbf16, #tpu.memory_space<vmem>>, vector<1x32x64xbf16>
    %306 = vector.shape_cast %305 : vector<1x32x64xbf16> to vector<32x64xbf16>
    %cst_100 = arith.constant dense<0.000000e+00> : vector<16x64xf32>
    %307 = tpu.matmul %304, %306, %cst_100 {dimension_numbers = #tpu.dot_dimension_numbers<[1], [0], [0], [1], [0, 0, 1, 1], [], []>} : vector<16x32xbf16>, vector<32x64xbf16>, vector<16x64xf32> -> vector<16x64xf32>
    %308 = vector.extract_strided_slice %5 {offsets = [9, 0], sizes = [1, 64], strides = [1, 1]} : vector<13x128xf32> to vector<1x64xf32>
    %309 = vector.broadcast %308 : vector<1x64xf32> to vector<16x64xf32>
    %310 = arith.addf %307, %309 : vector<16x64xf32>
    %cst_101 = arith.constant 0.000000e+00 : f32
    %311 = vector.broadcast %cst_101 : f32 to vector<16x64xf32>
    %312 = arith.maximumf %310, %311 : vector<16x64xf32>
    %313 = arith.truncf %312 : vector<16x64xf32> to vector<16x64xbf16>
    %c0_102 = arith.constant 0 : index
    %c0_103 = arith.constant 0 : index
    %c0_104 = arith.constant 0 : index
    %314 = vector.load %arg11[%c0_102, %c0_103, %c0_104] : memref<1x64x32xbf16, #tpu.memory_space<vmem>>, vector<1x64x32xbf16>
    %315 = vector.shape_cast %314 : vector<1x64x32xbf16> to vector<64x32xbf16>
    %cst_105 = arith.constant dense<0.000000e+00> : vector<16x32xf32>
    %316 = tpu.matmul %313, %315, %cst_105 {dimension_numbers = #tpu.dot_dimension_numbers<[1], [0], [0], [1], [0, 0, 1, 1], [], []>} : vector<16x64xbf16>, vector<64x32xbf16>, vector<16x32xf32> -> vector<16x32xf32>
    %317 = vector.extract_strided_slice %5 {offsets = [10, 0], sizes = [1, 32], strides = [1, 1]} : vector<13x128xf32> to vector<1x32xf32>
    %318 = vector.broadcast %317 : vector<1x32xf32> to vector<16x32xf32>
    %319 = arith.addf %316, %318 : vector<16x32xf32>
    %320 = arith.addf %303, %319 : vector<16x32xf32>
    %321 = vector.extract_strided_slice %5 {offsets = [11, 0], sizes = [1, 32], strides = [1, 1]} : vector<13x128xf32> to vector<1x32xf32>
    %322 = vector.extract_strided_slice %5 {offsets = [12, 0], sizes = [1, 32], strides = [1, 1]} : vector<13x128xf32> to vector<1x32xf32>
    %cst_106 = arith.constant dense<0.000000e+00> : vector<16xf32>
    %323 = vector.multi_reduction <add>, %320, %cst_106 [1] : vector<16x32xf32> to vector<16xf32>
    %324 = vector.shape_cast %323 : vector<16xf32> to vector<16x1xf32>
    %cst_107 = arith.constant 3.200000e+01 : f32
    %325 = vector.broadcast %cst_107 : f32 to vector<16x1xf32>
    %326 = arith.divf %324, %325 : vector<16x1xf32>
    %327 = vector.broadcast %326 : vector<16x1xf32> to vector<16x32xf32>
    %328 = arith.subf %320, %327 : vector<16x32xf32>
    %329 = arith.mulf %328, %328 : vector<16x32xf32>
    %cst_108 = arith.constant dense<0.000000e+00> : vector<16xf32>
    %330 = vector.multi_reduction <add>, %329, %cst_108 [1] : vector<16x32xf32> to vector<16xf32>
    %331 = vector.shape_cast %330 : vector<16xf32> to vector<16x1xf32>
    %cst_109 = arith.constant 3.200000e+01 : f32
    %332 = vector.broadcast %cst_109 : f32 to vector<16x1xf32>
    %333 = arith.divf %331, %332 : vector<16x1xf32>
    %cst_110 = arith.constant 9.99999974E-6 : f32
    %334 = vector.broadcast %cst_110 : f32 to vector<16x1xf32>
    %335 = arith.addf %333, %334 : vector<16x1xf32>
    %336 = math.rsqrt %335 : vector<16x1xf32>
    %337 = vector.broadcast %336 : vector<16x1xf32> to vector<16x32xf32>
    %338 = arith.mulf %328, %337 : vector<16x32xf32>
    %339 = vector.broadcast %321 : vector<1x32xf32> to vector<16x32xf32>
    %340 = arith.mulf %338, %339 : vector<16x32xf32>
    %341 = vector.broadcast %322 : vector<1x32xf32> to vector<16x32xf32>
    %342 = arith.addf %340, %341 : vector<16x32xf32>
    %c0_111 = arith.constant 0 : index
    %c0_112 = arith.constant 0 : index
    %343 = vector.load %arg17[%c0_111, %c0_112] : memref<16x32xf32, #tpu.memory_space<vmem>>, vector<16x32xf32>
    tpu.vector_store %arg17[%c0_111, %c0_112], %342 {strides = array<i32>} : memref<16x32xf32, #tpu.memory_space<vmem>>, vector<16x32xf32>,
    %344 = arith.extui %0 : i1 to i32
    %c0_i32_113 = arith.constant 0 : i32
    %345 = arith.cmpi ne, %344, %c0_i32_113 : i32
    scf.if %345 {
      %c0_114 = arith.constant 0 : index
      %c0_115 = arith.constant 0 : index
      %c0_116 = arith.constant 0 : index
      %c0_117 = arith.constant 0 : index
      %346 = vector.load %arg16[%c0_114, %c0_115, %c0_116, %c0_117] : memref<4x2x8x128xf32, #tpu.memory_space<vmem>>, vector<1x2x8x128xf32>
      %347 = vector.shape_cast %346 : vector<1x2x8x128xf32> to vector<2x8x128xf32>
      %348 = vector.shape_cast %188 : vector<2x8x128xf32> to vector<1x2x8x128xf32>
      tpu.vector_store %arg16[%c0_114, %c0_115, %c0_116, %c0_117], %348 {strides = array<i32>} : memref<4x2x8x128xf32, #tpu.memory_space<vmem>>, vector<1x2x8x128xf32>,
      %c1 = arith.constant 1 : index
      %c0_118 = arith.constant 0 : index
      %c0_119 = arith.constant 0 : index
      %c0_120 = arith.constant 0 : index
      %349 = vector.load %arg16[%c1, %c0_118, %c0_119, %c0_120] : memref<4x2x8x128xf32, #tpu.memory_space<vmem>>, vector<1x2x8x128xf32>
      %350 = vector.shape_cast %349 : vector<1x2x8x128xf32> to vector<2x8x128xf32>
      %351 = vector.shape_cast %215 : vector<2x8x128xf32> to vector<1x2x8x128xf32>
      tpu.vector_store %arg16[%c1, %c0_118, %c0_119, %c0_120], %351 {strides = array<i32>} : memref<4x2x8x128xf32, #tpu.memory_space<vmem>>, vector<1x2x8x128xf32>,
      %c2 = arith.constant 2 : index
      %c0_121 = arith.constant 0 : index
      %c0_122 = arith.constant 0 : index
      %c0_123 = arith.constant 0 : index
      %352 = vector.load %arg16[%c2, %c0_121, %c0_122, %c0_123] : memref<4x2x8x128xf32, #tpu.memory_space<vmem>>, vector<1x2x8x128xf32>
      %353 = vector.shape_cast %352 : vector<1x2x8x128xf32> to vector<2x8x128xf32>
      %354 = vector.shape_cast %242 : vector<2x8x128xf32> to vector<1x2x8x128xf32>
      tpu.vector_store %arg16[%c2, %c0_121, %c0_122, %c0_123], %354 {strides = array<i32>} : memref<4x2x8x128xf32, #tpu.memory_space<vmem>>, vector<1x2x8x128xf32>,
      %c3 = arith.constant 3 : index
      %c0_124 = arith.constant 0 : index
      %c0_125 = arith.constant 0 : index
      %c0_126 = arith.constant 0 : index
      %355 = vector.load %arg16[%c3, %c0_124, %c0_125, %c0_126] : memref<4x2x8x128xf32, #tpu.memory_space<vmem>>, vector<1x2x8x128xf32>
      %356 = vector.shape_cast %355 : vector<1x2x8x128xf32> to vector<2x8x128xf32>
      %357 = vector.shape_cast %269 : vector<2x8x128xf32> to vector<1x2x8x128xf32>
      tpu.vector_store %arg16[%c3, %c0_124, %c0_125, %c0_126], %357 {strides = array<i32>} : memref<4x2x8x128xf32, #tpu.memory_space<vmem>>, vector<1x2x8x128xf32>,
      %358 = arith.truncf %342 : vector<16x32xf32> to vector<16x32xbf16>
      %c0_127 = arith.constant 0 : index
      %c0_128 = arith.constant 0 : index
      %359 = vector.load %arg13[%c0_127, %c0_128] : memref<32x128xbf16, #tpu.memory_space<vmem>>, vector<32x128xbf16>
      %cst_129 = arith.constant dense<0.000000e+00> : vector<16x128xf32>
      %360 = tpu.matmul %358, %359, %cst_129 {dimension_numbers = #tpu.dot_dimension_numbers<[1], [0], [0], [1], [0, 0, 1, 1], [], []>} : vector<16x32xbf16>, vector<32x128xbf16>, vector<16x128xf32> -> vector<16x128xf32>
      %c0_130 = arith.constant 0 : index
      %c0_131 = arith.constant 0 : index
      %361 = vector.load %arg14[%c0_130, %c0_131] : memref<1x128xf32, #tpu.memory_space<vmem>>, vector<1x128xf32>
      %362 = vector.broadcast %361 : vector<1x128xf32> to vector<16x128xf32>
      %363 = arith.addf %360, %362 : vector<16x128xf32>
      %c0_132 = arith.constant 0 : index
      %c0_133 = arith.constant 0 : index
      %364 = vector.load %arg15[%c0_132, %c0_133] : memref<16x128xf32, #tpu.memory_space<vmem>>, vector<16x128xf32>
      tpu.vector_store %arg15[%c0_132, %c0_133], %363 {strides = array<i32>} : memref<16x128xf32, #tpu.memory_space<vmem>>, vector<16x128xf32>,
    } else {
    }
    return
  }
  func.func @transform_0(%arg0: i32) -> (i32, i32) {
    %c0_i32 = arith.constant 0 : i32
    %c0_i32_0 = arith.constant 0 : i32
    %c0_i32_1 = arith.constant 0 : i32
    return %c0_i32, %c0_i32_0 : i32, i32
  }
  func.func @transform_1(%arg0: i32) -> (i32, i32) {
    %c0_i32 = arith.constant 0 : i32
    %c0_i32_0 = arith.constant 0 : i32
    %c0_i32_1 = arith.constant 0 : i32
    return %c0_i32, %c0_i32_0 : i32, i32
  }
  func.func @transform_2(%arg0: i32) -> (i32, i32, i32) {
    %c0_i32 = arith.constant 0 : i32
    %c0_i32_0 = arith.constant 0 : i32
    %c0_i32_1 = arith.constant 0 : i32
    %c0_i32_2 = arith.constant 0 : i32
    return %c0_i32, %c0_i32_0, %c0_i32_1 : i32, i32, i32
  }
  func.func @transform_3(%arg0: i32) -> (i32, i32, i32) {
    %c0_i32 = arith.constant 0 : i32
    %c0_i32_0 = arith.constant 0 : i32
    %c0_i32_1 = arith.constant 0 : i32
    %c0_i32_2 = arith.constant 0 : i32
    return %c0_i32, %c0_i32_0, %c0_i32_1 : i32, i32, i32
  }
  func.func @transform_4(%arg0: i32) -> (i32, i32, i32) {
    %c0_i32 = arith.constant 0 : i32
    %c0_i32_0 = arith.constant 0 : i32
    %c0_i32_1 = arith.constant 0 : i32
    return %arg0, %c0_i32, %c0_i32_0 : i32, i32, i32
  }
  func.func @transform_5(%arg0: i32) -> (i32, i32, i32) {
    %c0_i32 = arith.constant 0 : i32
    %c0_i32_0 = arith.constant 0 : i32
    %c0_i32_1 = arith.constant 0 : i32
    return %arg0, %c0_i32, %c0_i32_0 : i32, i32, i32
  }
  func.func @transform_6(%arg0: i32) -> (i32, i32, i32) {
    %c0_i32 = arith.constant 0 : i32
    %c0_i32_0 = arith.constant 0 : i32
    %c0_i32_1 = arith.constant 0 : i32
    return %arg0, %c0_i32, %c0_i32_0 : i32, i32, i32
  }
  func.func @transform_7(%arg0: i32) -> (i32, i32, i32) {
    %c0_i32 = arith.constant 0 : i32
    %c0_i32_0 = arith.constant 0 : i32
    %c0_i32_1 = arith.constant 0 : i32
    return %arg0, %c0_i32, %c0_i32_0 : i32, i32, i32
  }
  func.func @transform_8(%arg0: i32) -> (i32, i32, i32) {
    %c0_i32 = arith.constant 0 : i32
    %c0_i32_0 = arith.constant 0 : i32
    %c0_i32_1 = arith.constant 0 : i32
    return %arg0, %c0_i32, %c0_i32_0 : i32, i32, i32
  }
  func.func @transform_9(%arg0: i32) -> (i32, i32, i32) {
    %c0_i32 = arith.constant 0 : i32
    %c0_i32_0 = arith.constant 0 : i32
    %c0_i32_1 = arith.constant 0 : i32
    return %arg0, %c0_i32, %c0_i32_0 : i32, i32, i32
  }
  func.func @transform_10(%arg0: i32) -> (i32, i32, i32) {
    %c0_i32 = arith.constant 0 : i32
    %c0_i32_0 = arith.constant 0 : i32
    %c0_i32_1 = arith.constant 0 : i32
    return %arg0, %c0_i32, %c0_i32_0 : i32, i32, i32
  }
  func.func @transform_11(%arg0: i32) -> (i32, i32, i32) {
    %c0_i32 = arith.constant 0 : i32
    %c0_i32_0 = arith.constant 0 : i32
    %c0_i32_1 = arith.constant 0 : i32
    return %arg0, %c0_i32, %c0_i32_0 : i32, i32, i32
  }
  func.func @transform_12(%arg0: i32) -> (i32, i32) {
    %c0_i32 = arith.constant 0 : i32
    %c0_i32_0 = arith.constant 0 : i32
    %c0_i32_1 = arith.constant 0 : i32
    return %c0_i32, %c0_i32_0 : i32, i32
  }
  func.func @transform_13(%arg0: i32) -> (i32, i32) {
    %c0_i32 = arith.constant 0 : i32
    %c0_i32_0 = arith.constant 0 : i32
    %c0_i32_1 = arith.constant 0 : i32
    return %c0_i32, %c0_i32_0 : i32, i32
  }
  func.func @transform_14(%arg0: i32) -> (i32, i32) {
    %c0_i32 = arith.constant 0 : i32
    %c0_i32_0 = arith.constant 0 : i32
    %c0_i32_1 = arith.constant 0 : i32
    return %c0_i32, %c0_i32_0 : i32, i32
  }
  func.func @transform_15(%arg0: i32) -> (i32, i32, i32, i32) {
    %c0_i32 = arith.constant 0 : i32
    %c0_i32_0 = arith.constant 0 : i32
    %c0_i32_1 = arith.constant 0 : i32
    %c0_i32_2 = arith.constant 0 : i32
    %c0_i32_3 = arith.constant 0 : i32
    return %c0_i32, %c0_i32_0, %c0_i32_1, %c0_i32_2 : i32, i32, i32, i32
  }
}

</mosaic_0001>

<llo_original>
// kernel: decoder_forward.1
$region0: #{decoder_forward.1}
  #allocation0 [shape = 'u32[]', space=smem, size = 0x4, offset = 0x4, fixed_abs, tag = 'smem constant byte address 0x4 - core index']
  #allocation1 [shape = 'u32[72,128]{1,0:T(1,128)}', space=vmem, size = 0x9000, scoped, tag = 'internal scratch']
  #allocation2 [shape = 'f32[16,32]{1,0:T(8,128)}', space=vmem, size = 0x2000, scoped, tag = 'scratch operand']
  %s0 = inlined_call_operand.vmem [shape: f32[16,32], index: 0, kind: input, shape index: {}]
  %s1 = inlined_call_operand.vmem [shape: bf16[256,32], index: 1, kind: input, shape index: {}]
  %s2 = inlined_call_operand.vmem [shape: f32[2,8,8], index: 2, kind: input, shape index: {}]
  %s3 = inlined_call_operand.vmem [shape: f32[2,1,128], index: 3, kind: input, shape index: {}]
  %s4 = inlined_call_operand.vmem [shape: bf16[2,32,96], index: 4, kind: input, shape index: {}]
  %s5 = inlined_call_operand.vmem [shape: bf16[2,32,32], index: 5, kind: input, shape index: {}]
  %s6 = inlined_call_operand.vmem [shape: bf16[2,32,32], index: 6, kind: input, shape index: {}]
  %s7 = inlined_call_operand.vmem [shape: bf16[2,32,64], index: 7, kind: input, shape index: {}]
  %s8 = inlined_call_operand.vmem [shape: bf16[2,32,32], index: 8, kind: input, shape index: {}]
  %s9 = inlined_call_operand.vmem [shape: bf16[2,32,64], index: 9, kind: input, shape index: {}]
  %s10 = inlined_call_operand.vmem [shape: bf16[2,64,32], index: 10, kind: input, shape index: {}]
  %s11 = inlined_call_operand.vmem [shape: f32[2,13,128], index: 11, kind: input, shape index: {}]
  %s12 = inlined_call_operand.vmem [shape: bf16[32,128], index: 12, kind: input, shape index: {}]
  %s13 = inlined_call_operand.vmem [shape: f32[1,128], index: 13, kind: input, shape index: {}]
  %s14 = inlined_call_operand.vmem [shape: f32[16,128], index: 14, kind: output, shape index: {0}]
  %s15 = inlined_call_operand.vmem [shape: f32[4,2,8,128], index: 15, kind: output, shape index: {1}]
  %16 = xla_tuple %s14, %s15
  %s17 = sld [smem:[#allocation0]]
  $region105: #{decoder_forward.1} parent=0
    _
  %s19 = ssub.s32 1, %s17
  %s20 = scalar_select 0, %s19, %s17
  loop: start=0, step=1, limit=4
  $region2: #{decoder_forward.1} parent=0 // loop_pre_header
    _
  $region3: #{decoder_forward.1} parent=0 // loop_header
    %s22 = sphi 0, %s26
    %p23 = scmp.ge.s32.totalorder %s22, 4
    %s30 = sphi 0, %s30
    %s32 = sphi 0, %s30
    %s33 = sphi 0, %s32
    %s47 = sphi 0, %s33
    %s51 = sphi 0, %s51
    %s53 = sphi 0, %s51
    %s54 = sphi 0, %s53
    %s68 = sphi 0, %s54
    %s72 = sphi 0, %s72
    %s74 = sphi 0, %s72
    %s75 = sphi 0, %s74
    %s89 = sphi 0, %s75
    %s93 = sphi 0, %s93
    %s95 = sphi 0, %s93
    %s96 = sphi 0, %s95
    %s110 = sphi 0, %s96
    %s116 = sphi 0, %s118
    %s119 = sphi 0, %s116
    %s120 = sphi 0, %s119
    %s136 = sphi 0, %s120
    %s142 = sphi 0, %s144
    %s145 = sphi 0, %s142
    %s146 = sphi 0, %s145
    %s162 = sphi 0, %s146
    %s168 = sphi 0, %s170
    %s171 = sphi 0, %s168
    %s172 = sphi 0, %s171
    %s188 = sphi 0, %s172
    %s194 = sphi 0, %s196
    %s197 = sphi 0, %s194
    %s198 = sphi 0, %s197
    %s214 = sphi 0, %s198
    %s220 = sphi 0, %s222
    %s223 = sphi 0, %s220
    %s224 = sphi 0, %s223
    %s240 = sphi 0, %s224
    %s246 = sphi 0, %s248
    %s249 = sphi 0, %s246
    %s250 = sphi 0, %s249
    %s266 = sphi 0, %s250
    %s272 = sphi 0, %s274
    %s275 = sphi 0, %s272
    %s276 = sphi 0, %s275
    %s292 = sphi 0, %s276
    %s298 = sphi 0, %s300
    %s301 = sphi 0, %s298
    %s302 = sphi 0, %s301
    %s318 = sphi 0, %s302
    %s322 = sphi 0, %s322
    %s324 = sphi 0, %s322
    %s325 = sphi 0, %s324
    %s339 = sphi 0, %s325
    %s343 = sphi 0, %s343
    %s345 = sphi 0, %s343
    %s346 = sphi 0, %s345
    %s360 = sphi 0, %s346
    %s364 = sphi 0, %s364
    %s366 = sphi 0, %s364
    %s367 = sphi 0, %s366
    %s381 = sphi 0, %s367
    %s385 = sphi 0, %s385
    %s387 = sphi 0, %s385
    %s388 = sphi 0, %s387
    %s402 = sphi 0, %s388
  $region4: #{decoder_forward.1} parent=0 // loop_header_branch
    %25 = sbr.rel (%p23) target = $region8
  $region5: #{decoder_forward.1} parent=0 // loop_body
    %s27 = ssub.s32 %s22, 1
    %s28 = ssub.s32 %s22, 2
    %s29 = sadd.s32 %s22, 1
    %s31 = sadd.s32 %s30, 1
    %p34 = scmp.eq.s32.totalorder %s22, 1
    %p35 = scmp.ne.s32.totalorder %s30, %s32
    %p36 = scmp.eq.s32.totalorder %s22, 0
    %p37 = por %p35, %p36
    %p38 = scmp.ne.s32.totalorder %s30, %s32
    %p39 = scmp.eq.s32.totalorder %s27, 1
    %p40 = por %p38, %p39
    %p41 = scmp.ne.s32.totalorder %s32, %s33
    %p42 = scmp.eq.s32.totalorder %s27, 0
    %p43 = por %p41, %p42
    %p44 = scmp.ne.s32.totalorder %s32, %s33
    %p45 = scmp.eq.s32.totalorder %s28, 1
    %p46 = por %p44, %p45
    %p48 = scmp.ne.s32.totalorder %s33, %s47
    %p49 = scmp.eq.s32.totalorder %s28, 0
    %p50 = por %p48, %p49
    %s52 = sadd.s32 %s51, 1
    %p55 = scmp.eq.s32.totalorder %s22, 1
    %p56 = scmp.ne.s32.totalorder %s51, %s53
    %p57 = scmp.eq.s32.totalorder %s22, 0
    %p58 = por %p56, %p57
    %p59 = scmp.ne.s32.totalorder %s51, %s53
    %p60 = scmp.eq.s32.totalorder %s27, 1
    %p61 = por %p59, %p60
    %p62 = scmp.ne.s32.totalorder %s53, %s54
    %p63 = scmp.eq.s32.totalorder %s27, 0
    %p64 = por %p62, %p63
    %p65 = scmp.ne.s32.totalorder %s53, %s54
    %p66 = scmp.eq.s32.totalorder %s28, 1
    %p67 = por %p65, %p66
    %p69 = scmp.ne.s32.totalorder %s54, %s68
    %p70 = scmp.eq.s32.totalorder %s28, 0
    %p71 = por %p69, %p70
    %s73 = sadd.s32 %s72, 1
    %p76 = scmp.eq.s32.totalorder %s22, 1
    %p77 = scmp.ne.s32.totalorder %s72, %s74
    %p78 = scmp.eq.s32.totalorder %s22, 0
    %p79 = por %p77, %p78
    %p80 = scmp.ne.s32.totalorder %s72, %s74
    %p81 = scmp.eq.s32.totalorder %s27, 1
    %p82 = por %p80, %p81
    %p83 = scmp.ne.s32.totalorder %s74, %s75
    %p84 = scmp.eq.s32.totalorder %s27, 0
    %p85 = por %p83, %p84
    %p86 = scmp.ne.s32.totalorder %s74, %s75
    %p87 = scmp.eq.s32.totalorder %s28, 1
    %p88 = por %p86, %p87
    %p90 = scmp.ne.s32.totalorder %s75, %s89
    %p91 = scmp.eq.s32.totalorder %s28, 0
    %p92 = por %p90, %p91
    %s94 = sadd.s32 %s93, 1
    %p97 = scmp.eq.s32.totalorder %s22, 1
    %p98 = scmp.ne.s32.totalorder %s93, %s95
    %p99 = scmp.eq.s32.totalorder %s22, 0
    %p100 = por %p98, %p99
    %p101 = scmp.ne.s32.totalorder %s93, %s95
    %p102 = scmp.eq.s32.totalorder %s27, 1
    %p103 = por %p101, %p102
    %p104 = scmp.ne.s32.totalorder %s95, %s96
    %p105 = scmp.eq.s32.totalorder %s27, 0
    %p106 = por %p104, %p105
    %p107 = scmp.ne.s32.totalorder %s95, %s96
    %p108 = scmp.eq.s32.totalorder %s28, 1
    %p109 = por %p107, %p108
    %p111 = scmp.ne.s32.totalorder %s96, %s110
    %p112 = scmp.eq.s32.totalorder %s28, 0
    %p113 = por %p111, %p112
    %s114 = ssub.s32 %s22, %s29
    %p115 = scmp.eq.s32.totalorder %s114, 0
    %s117 = sadd.s32 %s116, 1
    %s118 = scalar_select %p115, %s116, %s117
    %p121 = pneg %p115
    %p122 = scmp.eq.s32.totalorder %s22, 1
    %p123 = por %p121, %p122
    %p124 = scmp.ne.s32.totalorder %s116, %s119
    %p125 = scmp.eq.s32.totalorder %s22, 0
    %p126 = por %p124, %p125
    %p127 = scmp.ne.s32.totalorder %s116, %s119
    %p128 = scmp.eq.s32.totalorder %s27, 1
    %p129 = por %p127, %p128
    %p130 = scmp.ne.s32.totalorder %s119, %s120
    %p131 = scmp.eq.s32.totalorder %s27, 0
    %p132 = por %p130, %p131
    %p133 = scmp.ne.s32.totalorder %s119, %s120
    %p134 = scmp.eq.s32.totalorder %s28, 1
    %p135 = por %p133, %p134
    %p137 = scmp.ne.s32.totalorder %s120, %s136
    %p138 = scmp.eq.s32.totalorder %s28, 0
    %p139 = por %p137, %p138
    %s140 = ssub.s32 %s22, %s29
    %p141 = scmp.eq.s32.totalorder %s140, 0
    %s143 = sadd.s32 %s142, 1
    %s144 = scalar_select %p141, %s142, %s143
    %p147 = pneg %p141
    %p148 = scmp.eq.s32.totalorder %s22, 1
    %p149 = por %p147, %p148
    %p150 = scmp.ne.s32.totalorder %s142, %s145
    %p151 = scmp.eq.s32.totalorder %s22, 0
    %p152 = por %p150, %p151
    %p153 = scmp.ne.s32.totalorder %s142, %s145
    %p154 = scmp.eq.s32.totalorder %s27, 1
    %p155 = por %p153, %p154
    %p156 = scmp.ne.s32.totalorder %s145, %s146
    %p157 = scmp.eq.s32.totalorder %s27, 0
    %p158 = por %p156, %p157
    %p159 = scmp.ne.s32.totalorder %s145, %s146
    %p160 = scmp.eq.s32.totalorder %s28, 1
    %p161 = por %p159, %p160
    %p163 = scmp.ne.s32.totalorder %s146, %s162
    %p164 = scmp.eq.s32.totalorder %s28, 0
    %p165 = por %p163, %p164
    %s166 = ssub.s32 %s22, %s29
    %p167 = scmp.eq.s32.totalorder %s166, 0
    %s169 = sadd.s32 %s168, 1
    %s170 = scalar_select %p167, %s168, %s169
    %p173 = pneg %p167
    %p174 = scmp.eq.s32.totalorder %s22, 1
    %p175 = por %p173, %p174
    %p176 = scmp.ne.s32.totalorder %s168, %s171
    %p177 = scmp.eq.s32.totalorder %s22, 0
    %p178 = por %p176, %p177
    %p179 = scmp.ne.s32.totalorder %s168, %s171
    %p180 = scmp.eq.s32.totalorder %s27, 1
    %p181 = por %p179, %p180
    %p182 = scmp.ne.s32.totalorder %s171, %s172
    %p183 = scmp.eq.s32.totalorder %s27, 0
    %p184 = por %p182, %p183
    %p185 = scmp.ne.s32.totalorder %s171, %s172
    %p186 = scmp.eq.s32.totalorder %s28, 1
    %p187 = por %p185, %p186
    %p189 = scmp.ne.s32.totalorder %s172, %s188
    %p190 = scmp.eq.s32.totalorder %s28, 0
    %p191 = por %p189, %p190
    %s192 = ssub.s32 %s22, %s29
    %p193 = scmp.eq.s32.totalorder %s192, 0
    %s195 = sadd.s32 %s194, 1
    %s196 = scalar_select %p193, %s194, %s195
    %p199 = pneg %p193
    %p200 = scmp.eq.s32.totalorder %s22, 1
    %p201 = por %p199, %p200
    %p202 = scmp.ne.s32.totalorder %s194, %s197
    %p203 = scmp.eq.s32.totalorder %s22, 0
    %p204 = por %p202, %p203
    %p205 = scmp.ne.s32.totalorder %s194, %s197
    %p206 = scmp.eq.s32.totalorder %s27, 1
    %p207 = por %p205, %p206
    %p208 = scmp.ne.s32.totalorder %s197, %s198
    %p209 = scmp.eq.s32.totalorder %s27, 0
    %p210 = por %p208, %p209
    %p211 = scmp.ne.s32.totalorder %s197, %s198
    %p212 = scmp.eq.s32.totalorder %s28, 1
    %p213 = por %p211, %p212
    %p215 = scmp.ne.s32.totalorder %s198, %s214
    %p216 = scmp.eq.s32.totalorder %s28, 0
    %p217 = por %p215, %p216
    %s218 = ssub.s32 %s22, %s29
    %p219 = scmp.eq.s32.totalorder %s218, 0
    %s221 = sadd.s32 %s220, 1
    %s222 = scalar_select %p219, %s220, %s221
    %p225 = pneg %p219
    %p226 = scmp.eq.s32.totalorder %s22, 1
    %p227 = por %p225, %p226
    %p228 = scmp.ne.s32.totalorder %s220, %s223
    %p229 = scmp.eq.s32.totalorder %s22, 0
    %p230 = por %p228, %p229
    %p231 = scmp.ne.s32.totalorder %s220, %s223
    %p232 = scmp.eq.s32.totalorder %s27, 1
    %p233 = por %p231, %p232
    %p234 = scmp.ne.s32.totalorder %s223, %s224
    %p235 = scmp.eq.s32.totalorder %s27, 0
    %p236 = por %p234, %p235
    %p237 = scmp.ne.s32.totalorder %s223, %s224
    %p238 = scmp.eq.s32.totalorder %s28, 1
    %p239 = por %p237, %p238
    %p241 = scmp.ne.s32.totalorder %s224, %s240
    %p242 = scmp.eq.s32.totalorder %s28, 0
    %p243 = por %p241, %p242
    %s244 = ssub.s32 %s22, %s29
    %p245 = scmp.eq.s32.totalorder %s244, 0
    %s247 = sadd.s32 %s246, 1
    %s248 = scalar_select %p245, %s246, %s247
    %p251 = pneg %p245
    %p252 = scmp.eq.s32.totalorder %s22, 1
    %p253 = por %p251, %p252
    %p254 = scmp.ne.s32.totalorder %s246, %s249
    %p255 = scmp.eq.s32.totalorder %s22, 0
    %p256 = por %p254, %p255
    %p257 = scmp.ne.s32.totalorder %s246, %s249
    %p258 = scmp.eq.s32.totalorder %s27, 1
    %p259 = por %p257, %p258
    %p260 = scmp.ne.s32.totalorder %s249, %s250
    %p261 = scmp.eq.s32.totalorder %s27, 0
    %p262 = por %p260, %p261
    %p263 = scmp.ne.s32.totalorder %s249, %s250
    %p264 = scmp.eq.s32.totalorder %s28, 1
    %p265 = por %p263, %p264
    %p267 = scmp.ne.s32.totalorder %s250, %s266
    %p268 = scmp.eq.s32.totalorder %s28, 0
    %p269 = por %p267, %p268
    %s270 = ssub.s32 %s22, %s29
    %p271 = scmp.eq.s32.totalorder %s270, 0
    %s273 = sadd.s32 %s272, 1
    %s274 = scalar_select %p271, %s272, %s273
    %p277 = pneg %p271
    %p278 = scmp.eq.s32.totalorder %s22, 1
    %p279 = por %p277, %p278
    %p280 = scmp.ne.s32.totalorder %s272, %s275
    %p281 = scmp.eq.s32.totalorder %s22, 0
    %p282 = por %p280, %p281
    %p283 = scmp.ne.s32.totalorder %s272, %s275
    %p284 = scmp.eq.s32.totalorder %s27, 1
    %p285 = por %p283, %p284
    %p286 = scmp.ne.s32.totalorder %s275, %s276
    %p287 = scmp.eq.s32.totalorder %s27, 0
    %p288 = por %p286, %p287
    %p289 = scmp.ne.s32.totalorder %s275, %s276
    %p290 = scmp.eq.s32.totalorder %s28, 1
    %p291 = por %p289, %p290
    %p293 = scmp.ne.s32.totalorder %s276, %s292
    %p294 = scmp.eq.s32.totalorder %s28, 0
    %p295 = por %p293, %p294
    %s296 = ssub.s32 %s22, %s29
    %p297 = scmp.eq.s32.totalorder %s296, 0
    %s299 = sadd.s32 %s298, 1
    %s300 = scalar_select %p297, %s298, %s299
    %p303 = pneg %p297
    %p304 = scmp.eq.s32.totalorder %s22, 1
    %p305 = por %p303, %p304
    %p306 = scmp.ne.s32.totalorder %s298, %s301
    %p307 = scmp.eq.s32.totalorder %s22, 0
    %p308 = por %p306, %p307
    %p309 = scmp.ne.s32.totalorder %s298, %s301
    %p310 = scmp.eq.s32.totalorder %s27, 1
    %p311 = por %p309, %p310
    %p312 = scmp.ne.s32.totalorder %s301, %s302
    %p313 = scmp.eq.s32.totalorder %s27, 0
    %p314 = por %p312, %p313
    %p315 = scmp.ne.s32.totalorder %s301, %s302
    %p316 = scmp.eq.s32.totalorder %s28, 1
    %p317 = por %p315, %p316
    %p319 = scmp.ne.s32.totalorder %s302, %s318
    %p320 = scmp.eq.s32.totalorder %s28, 0
    %p321 = por %p319, %p320
    %s323 = sadd.s32 %s322, 1
    %p326 = scmp.eq.s32.totalorder %s22, 1
    %p327 = scmp.ne.s32.totalorder %s322, %s324
    %p328 = scmp.eq.s32.totalorder %s22, 0
    %p329 = por %p327, %p328
    %p330 = scmp.ne.s32.totalorder %s322, %s324
    %p331 = scmp.eq.s32.totalorder %s27, 1
    %p332 = por %p330, %p331
    %p333 = scmp.ne.s32.totalorder %s324, %s325
    %p334 = scmp.eq.s32.totalorder %s27, 0
    %p335 = por %p333, %p334
    %p336 = scmp.ne.s32.totalorder %s324, %s325
    %p337 = scmp.eq.s32.totalorder %s28, 1
    %p338 = por %p336, %p337
    %p340 = scmp.ne.s32.totalorder %s325, %s339
    %p341 = scmp.eq.s32.totalorder %s28, 0
    %p342 = por %p340, %p341
    %s344 = sadd.s32 %s343, 1
    %p347 = scmp.eq.s32.totalorder %s22, 1
    %p348 = scmp.ne.s32.totalorder %s343, %s345
    %p349 = scmp.eq.s32.totalorder %s22, 0
    %p350 = por %p348, %p349
    %p351 = scmp.ne.s32.totalorder %s343, %s345
    %p352 = scmp.eq.s32.totalorder %s27, 1
    %p353 = por %p351, %p352
    %p354 = scmp.ne.s32.totalorder %s345, %s346
    %p355 = scmp.eq.s32.totalorder %s27, 0
    %p356 = por %p354, %p355
    %p357 = scmp.ne.s32.totalorder %s345, %s346
    %p358 = scmp.eq.s32.totalorder %s28, 1
    %p359 = por %p357, %p358
    %p361 = scmp.ne.s32.totalorder %s346, %s360
    %p362 = scmp.eq.s32.totalorder %s28, 0
    %p363 = por %p361, %p362
    %s365 = sadd.s32 %s364, 1
    %p368 = scmp.eq.s32.totalorder %s22, 1
    %p369 = scmp.ne.s32.totalorder %s364, %s366
    %p370 = scmp.eq.s32.totalorder %s22, 0
    %p371 = por %p369, %p370
    %p372 = scmp.ne.s32.totalorder %s364, %s366
    %p373 = scmp.eq.s32.totalorder %s27, 1
    %p374 = por %p372, %p373
    %p375 = scmp.ne.s32.totalorder %s366, %s367
    %p376 = scmp.eq.s32.totalorder %s27, 0
    %p377 = por %p375, %p376
    %p378 = scmp.ne.s32.totalorder %s366, %s367
    %p379 = scmp.eq.s32.totalorder %s28, 1
    %p380 = por %p378, %p379
    %p382 = scmp.ne.s32.totalorder %s367, %s381
    %p383 = scmp.eq.s32.totalorder %s28, 0
    %p384 = por %p382, %p383
    %s386 = sadd.s32 %s385, 1
    %p389 = scmp.eq.s32.totalorder %s22, 1
    %p390 = scmp.ne.s32.totalorder %s385, %s387
    %p391 = scmp.eq.s32.totalorder %s22, 0
    %p392 = por %p390, %p391
    %p393 = scmp.ne.s32.totalorder %s385, %s387
    %p394 = scmp.eq.s32.totalorder %s27, 1
    %p395 = por %p393, %p394
    %p396 = scmp.ne.s32.totalorder %s387, %s388
    %p397 = scmp.eq.s32.totalorder %s27, 0
    %p398 = por %p396, %p397
    %p399 = scmp.ne.s32.totalorder %s387, %s388
    %p400 = scmp.eq.s32.totalorder %s28, 1
    %p401 = por %p399, %p400
    %p403 = scmp.ne.s32.totalorder %s388, %s402
    %p404 = scmp.eq.s32.totalorder %s28, 0
    %p405 = por %p403, %p404
    %p406 = scmp.le.s32.totalorder 1, %s22
    %p407 = scmp.lt.s32.totalorder %s22, 3
    %p408 = pnand %p406, %p407
    %p409 = pneg %p408
    // Predicated region
    $region9: #{decoder_forward.1} parent=5 // pred_check
      _
    $region10: #{decoder_forward.1} parent=5 // pred_check_branch
      %411 = sbr.rel (%p408) target = $region12
    $region11: #{decoder_forward.1} parent=5 // pred_region
      %s412 = ssub.s32 %s22, 1
      // Predicated region
      $region13: #{decoder_forward.1} parent=11 // pred_check
        %p413 = pneg %p43
      $region14: #{decoder_forward.1} parent=11 // pred_check_branch
        %415 = sbr.rel (%p413) target = $region16
      $region15: #{decoder_forward.1} parent=11 // pred_region
        _
      $region16: #{decoder_forward.1} parent=11 // pred_fallthru
        _
      // Predicated region
      $region17: #{decoder_forward.1} parent=11 // pred_check
        %p416 = pneg %p64
      $region18: #{decoder_forward.1} parent=11 // pred_check_branch
        %418 = sbr.rel (%p416) target = $region20
      $region19: #{decoder_forward.1} parent=11 // pred_region
        _
      $region20: #{decoder_forward.1} parent=11 // pred_fallthru
        _
      // Predicated region
      $region21: #{decoder_forward.1} parent=11 // pred_check
        %p419 = pneg %p85
      $region22: #{decoder_forward.1} parent=11 // pred_check_branch
        %421 = sbr.rel (%p419) target = $region24
      $region23: #{decoder_forward.1} parent=11 // pred_region
        _
      $region24: #{decoder_forward.1} parent=11 // pred_fallthru
        _
      // Predicated region
      $region25: #{decoder_forward.1} parent=11 // pred_check
        %p422 = pneg %p106
      $region26: #{decoder_forward.1} parent=11 // pred_check_branch
        %424 = sbr.rel (%p422) target = $region28
      $region27: #{decoder_forward.1} parent=11 // pred_region
        _
      $region28: #{decoder_forward.1} parent=11 // pred_fallthru
        _
      // Predicated region
      $region29: #{decoder_forward.1} parent=11 // pred_check
        %p425 = pneg %p335
      $region30: #{decoder_forward.1} parent=11 // pred_check_branch
        %427 = sbr.rel (%p425) target = $region32
      $region31: #{decoder_forward.1} parent=11 // pred_region
        _
      $region32: #{decoder_forward.1} parent=11 // pred_fallthru
        _
      // Predicated region
      $region33: #{decoder_forward.1} parent=11 // pred_check
        %p428 = pneg %p356
      $region34: #{decoder_forward.1} parent=11 // pred_check_branch
        %430 = sbr.rel (%p428) target = $region36
      $region35: #{decoder_forward.1} parent=11 // pred_region
        _
      $region36: #{decoder_forward.1} parent=11 // pred_fallthru
        _
    $region12: #{decoder_forward.1} parent=5 // pred_fallthru
      _
    %p431 = scmp.lt.s32.totalorder %s22, 2
    // Predicated region
    $region37: #{decoder_forward.1} parent=5 // pred_check
      %p432 = pneg %p431
    $region38: #{decoder_forward.1} parent=5 // pred_check_branch
      %434 = sbr.rel (%p432) target = $region40
    $region39: #{decoder_forward.1} parent=5 // pred_region
      // Predicated region
      $region41: #{decoder_forward.1} parent=39 // pred_check
        %p435 = pneg %p126
      $region42: #{decoder_forward.1} parent=39 // pred_check_branch
        %437 = sbr.rel (%p435) target = $region44
      $region43: #{decoder_forward.1} parent=39 // pred_region
        %p438 = scmp.lt.s32.totalorder %s22, 1
        %s439 = scalar_select %p438, %s22, 1
        %s440 = smul.addr %s439, 4
        %s441 = smul.addr %s440, 4
        %s442 = scalar_lea.vmem %s4, %s441
      $region44: #{decoder_forward.1} parent=39 // pred_fallthru
        _
      // Predicated region
      $region45: #{decoder_forward.1} parent=39 // pred_check
        %p443 = pneg %p152
      $region46: #{decoder_forward.1} parent=39 // pred_check_branch
        %445 = sbr.rel (%p443) target = $region48
      $region47: #{decoder_forward.1} parent=39 // pred_region
        %p446 = scmp.lt.s32.totalorder %s22, 1
        %s447 = scalar_select %p446, %s22, 1
        %s448 = smul.addr %s447, 4
        %s449 = smul.addr %s448, 4
        %s450 = scalar_lea.vmem %s5, %s449
      $region48: #{decoder_forward.1} parent=39 // pred_fallthru
        _
      // Predicated region
      $region49: #{decoder_forward.1} parent=39 // pred_check
        %p451 = pneg %p178
      $region50: #{decoder_forward.1} parent=39 // pred_check_branch
        %453 = sbr.rel (%p451) target = $region52
      $region51: #{decoder_forward.1} parent=39 // pred_region
        %p454 = scmp.lt.s32.totalorder %s22, 1
        %s455 = scalar_select %p454, %s22, 1
        %s456 = smul.addr %s455, 4
        %s457 = smul.addr %s456, 4
        %s458 = scalar_lea.vmem %s6, %s457
      $region52: #{decoder_forward.1} parent=39 // pred_fallthru
        _
      // Predicated region
      $region53: #{decoder_forward.1} parent=39 // pred_check
        %p459 = pneg %p204
      $region54: #{decoder_forward.1} parent=39 // pred_check_branch
        %461 = sbr.rel (%p459) target = $region56
      $region55: #{decoder_forward.1} parent=39 // pred_region
        %p462 = scmp.lt.s32.totalorder %s22, 1
        %s463 = scalar_select %p462, %s22, 1
        %s464 = smul.addr %s463, 4
        %s465 = smul.addr %s464, 4
        %s466 = scalar_lea.vmem %s7, %s465
      $region56: #{decoder_forward.1} parent=39 // pred_fallthru
        _
      // Predicated region
      $region57: #{decoder_forward.1} parent=39 // pred_check
        %p467 = pneg %p230
      $region58: #{decoder_forward.1} parent=39 // pred_check_branch
        %469 = sbr.rel (%p467) target = $region60
      $region59: #{decoder_forward.1} parent=39 // pred_region
        %p470 = scmp.lt.s32.totalorder %s22, 1
        %s471 = scalar_select %p470, %s22, 1
        %s472 = smul.addr %s471, 4
        %s473 = smul.addr %s472, 4
        %s474 = scalar_lea.vmem %s8, %s473
      $region60: #{decoder_forward.1} parent=39 // pred_fallthru
        _
      // Predicated region
      $region61: #{decoder_forward.1} parent=39 // pred_check
        %p475 = pneg %p256
      $region62: #{decoder_forward.1} parent=39 // pred_check_branch
        %477 = sbr.rel (%p475) target = $region64
      $region63: #{decoder_forward.1} parent=39 // pred_region
        %p478 = scmp.lt.s32.totalorder %s22, 1
        %s479 = scalar_select %p478, %s22, 1
        %s480 = smul.addr %s479, 4
        %s481 = smul.addr %s480, 4
        %s482 = scalar_lea.vmem %s9, %s481
      $region64: #{decoder_forward.1} parent=39 // pred_fallthru
        _
      // Predicated region
      $region65: #{decoder_forward.1} parent=39 // pred_check
        %p483 = pneg %p282
      $region66: #{decoder_forward.1} parent=39 // pred_check_branch
        %485 = sbr.rel (%p483) target = $region68
      $region67: #{decoder_forward.1} parent=39 // pred_region
        %p486 = scmp.lt.s32.totalorder %s22, 1
        %s487 = scalar_select %p486, %s22, 1
        %s488 = smul.addr %s487, 8
        %s489 = smul.addr %s488, 4
        %s490 = scalar_lea.vmem %s10, %s489
      $region68: #{decoder_forward.1} parent=39 // pred_fallthru
        _
      // Predicated region
      $region69: #{decoder_forward.1} parent=39 // pred_check
        %p491 = pneg %p308
      $region70: #{decoder_forward.1} parent=39 // pred_check_branch
        %493 = sbr.rel (%p491) target = $region72
      $region71: #{decoder_forward.1} parent=39 // pred_region
        %p494 = scmp.lt.s32.totalorder %s22, 1
        %s495 = scalar_select %p494, %s22, 1
        %s496 = smul.addr %s495, 2
        %s497 = smul.addr %s496, 8
        %s498 = scalar_lea.vmem %s11, %s497
      $region72: #{decoder_forward.1} parent=39 // pred_fallthru
        _
    $region40: #{decoder_forward.1} parent=5 // pred_fallthru
      _
    %p499 = scmp.le.s32.totalorder 1, %s22
    %p500 = scmp.lt.s32.totalorder %s22, 3
    %p501 = pnand %p499, %p500
    %p502 = pneg %p501
    // Predicated region
    $region73: #{decoder_forward.1} parent=5 // pred_check
      _
    $region74: #{decoder_forward.1} parent=5 // pred_check_branch
      %504 = sbr.rel (%p501) target = $region76
    $region75: #{decoder_forward.1} parent=5 // pred_region
      %s505 = ssub.s32 %s22, 1
      %p506 = pneg %p43
      %p507 = pneg %p40
      %p508 = pneg %p64
      %p509 = pneg %p61
      %p510 = pneg %p85
      %p511 = pneg %p82
      %p512 = pneg %p106
      %p513 = pneg %p103
      %p514 = scmp.lt.s32.totalorder %s27, 1
      %s515 = scalar_select %p514, %s27, 1
      %s516 = smul.addr %s515, 4
      %s517 = smul.addr %s516, 4
      %s518 = scalar_lea.vmem %s4, %s517
      %p519 = pneg %p132
      %p520 = pneg %p129
      %p521 = scmp.lt.s32.totalorder %s27, 1
      %s522 = scalar_select %p521, %s27, 1
      %s523 = smul.addr %s522, 4
      %s524 = smul.addr %s523, 4
      %s525 = scalar_lea.vmem %s5, %s524
      %p526 = pneg %p158
      %p527 = pneg %p155
      %p528 = scmp.lt.s32.totalorder %s27, 1
      %s529 = scalar_select %p528, %s27, 1
      %s530 = smul.addr %s529, 4
      %s531 = smul.addr %s530, 4
      %s532 = scalar_lea.vmem %s6, %s531
      %p533 = pneg %p184
      %p534 = pneg %p181
      %p535 = scmp.lt.s32.totalorder %s27, 1
      %s536 = scalar_select %p535, %s27, 1
      %s537 = smul.addr %s536, 4
      %s538 = smul.addr %s537, 4
      %s539 = scalar_lea.vmem %s7, %s538
      %p540 = pneg %p210
      %p541 = pneg %p207
      %p542 = scmp.lt.s32.totalorder %s27, 1
      %s543 = scalar_select %p542, %s27, 1
      %s544 = smul.addr %s543, 4
      %s545 = smul.addr %s544, 4
      %s546 = scalar_lea.vmem %s8, %s545
      %p547 = pneg %p236
      %p548 = pneg %p233
      %p549 = scmp.lt.s32.totalorder %s27, 1
      %s550 = scalar_select %p549, %s27, 1
      %s551 = smul.addr %s550, 4
      %s552 = smul.addr %s551, 4
      %s553 = scalar_lea.vmem %s9, %s552
      %p554 = pneg %p262
      %p555 = pneg %p259
      %p556 = scmp.lt.s32.totalorder %s27, 1
      %s557 = scalar_select %p556, %s27, 1
      %s558 = smul.addr %s557, 8
      %s559 = smul.addr %s558, 4
      %s560 = scalar_lea.vmem %s10, %s559
      %p561 = pneg %p288
      %p562 = pneg %p285
      %p563 = scmp.lt.s32.totalorder %s27, 1
      %s564 = scalar_select %p563, %s27, 1
      %s565 = smul.addr %s564, 2
      %s566 = smul.addr %s565, 8
      %s567 = scalar_lea.vmem %s11, %s566
      %p568 = pneg %p314
      %p569 = pneg %p311
      %p570 = pneg %p335
      %p571 = pneg %p332
      %p572 = pneg %p356
      %p573 = pneg %p353
      %p574 = pneg %p377
      %p575 = pneg %p374
      %p576 = pneg %p398
      %p577 = pneg %p395
      %p578 = scmp.lt.s32.totalorder %s27, 1
      %s579 = scalar_select %p578, %s27, 1
      %s580 = smul.addr %s579, 4
      %s581 = smul.addr %s580, 4
      %s582 = scalar_lea.vmem %s4, %s581
      %p583 = scmp.lt.s32.totalorder %s27, 1
      %s584 = scalar_select %p583, %s27, 1
      %s585 = smul.addr %s584, 4
      %s586 = smul.addr %s585, 4
      %s587 = scalar_lea.vmem %s5, %s586
      %p588 = scmp.lt.s32.totalorder %s27, 1
      %s589 = scalar_select %p588, %s27, 1
      %s590 = smul.addr %s589, 4
      %s591 = smul.addr %s590, 4
      %s592 = scalar_lea.vmem %s6, %s591
      %p593 = scmp.lt.s32.totalorder %s27, 1
      %s594 = scalar_select %p593, %s27, 1
      %s595 = smul.addr %s594, 4
      %s596 = smul.addr %s595, 4
      %s597 = scalar_lea.vmem %s7, %s596
      %p598 = scmp.lt.s32.totalorder %s27, 1
      %s599 = scalar_select %p598, %s27, 1
      %s600 = smul.addr %s599, 4
      %s601 = smul.addr %s600, 4
      %s602 = scalar_lea.vmem %s8, %s601
      %p603 = scmp.lt.s32.totalorder %s27, 1
      %s604 = scalar_select %p603, %s27, 1
      %s605 = smul.addr %s604, 4
      %s606 = smul.addr %s605, 4
      %s607 = scalar_lea.vmem %s9, %s606
      %p608 = scmp.lt.s32.totalorder %s27, 1
      %s609 = scalar_select %p608, %s27, 1
      %s610 = smul.addr %s609, 8
      %s611 = smul.addr %s610, 4
      %s612 = scalar_lea.vmem %s10, %s611
      %p613 = scmp.lt.s32.totalorder %s27, 1
      %s614 = scalar_select %p613, %s27, 1
      %s615 = smul.addr %s614, 2
      %s616 = smul.addr %s615, 8
      %s617 = scalar_lea.vmem %s11, %s616
      %p619 = scmp.eq.s32.totalorder %s27, 1
      %p620 = scmp.eq.s32.totalorder %s27, 0
      // Predicated region
      $region77: #{decoder_forward.1} parent=75 // pred_check
        %p621 = pneg %p620
      $region78: #{decoder_forward.1} parent=75 // pred_check_branch
        %623 = sbr.rel (%p621) target = $region80
      $region79: #{decoder_forward.1} parent=75 // pred_region
        %v624 = vld [vmem:[%s0] sm:$0xff]
        %v625 = vld [vmem:[%s0 + $0x8] sm:$0xff]
        %vm626 = vcmask 261120
        %627 = vst.msk [vmem:[#allocation2] sm:$0xff] %vm626, %v624
        %628 = vst.msk [vmem:[#allocation2 + $0x8] sm:$0xff] %vm626, %v625
      $region80: #{decoder_forward.1} parent=75 // pred_fallthru
        _
      %v629 = vld [vmem:[%s617] sm:$0xff]
      %v630 = vld [vmem:[%s617 + $0x8] sm:$0x1f]
      %v631 = vld [vmem:[#allocation2] sm:$0xff]
      %v632 = vld [vmem:[#allocation2 + $0x8] sm:$0xff]
      %v633 = vpack.c.bf16 %v632, %v631
      %v634 = vld [vmem:[%s582] sm:$0xf]
      %v635 = vld [vmem:[%s582 + $0x4] sm:$0xf]
      %v636 = vld [vmem:[%s582 + $0x8] sm:$0xf]
      %v637 = vld [vmem:[%s582 + $0xc] sm:$0xf]
      %v638 = vperm.slane %v629, 0
      %v643 = vunpack.c.l.b16 %v634
      %v644 = vunpack.c.l.b16 %v635
      %v645 = vunpack.c.l.b16 %v636
      %v646 = vunpack.c.l.b16 %v637
      %v647 = vpack.c.b16 %v644, %v643
      %v648 = vpack.c.b16 %v646, %v645
      %vm651 = vcmask 261120
      %v653 = vsel %vm651, %v633, 0
      %655 = vmatpush.bf16.msra.mxu0 0
      %656 = vmatpush.bf16.msra.mxu0 0
      %657 = vmatpush.bf16.msra.mxu0 0
      %658 = vmatpush.bf16.msra.mxu0 0
      %659 = vmatpush.bf16.msra.mxu0 0
      %660 = vmatpush.bf16.msra.mxu0 0
      %661 = vmatpush.bf16.msra.mxu0 %v648
      %662 = vmatpush.bf16.msra.mxu0 %v647
      %663 = vmatmul.bf16.gmra.mxu0 %v653
      %v664 = vpop.f32.mrf.mxu0
      %v665 = vadd.f32 %v638, %v664
      %v666 = vpop.f32.mrf.mxu0
      %v667 = vadd.f32 %v638, %v666
      %668 = vdwg.mxu0
      %v669 = vpack.c.bf16 %v665, %v665
      %v670 = vpack.c.bf16 %v667, %v667
      %v671 = vld [vmem:[%s2] sm:$0xff]
      %v672 = vld [vmem:[%s2 + $0x8] sm:$0xff]
      %v674 = vunpack.c.l.b16 %v669
      %v675 = vpack.c.b16 %v674, %v674
      %676 = vrot.lane.b32.xlu0 %v675, 96
      %v677 = vpop.permute.xlu0 %676
      %vm678 = vcmask 64512
      %v680 = vsel %vm678, %v669, 0
      %v683 = vsel %vm678, %v677, 0
      %685 = vmatpush.bf16.xpose.msra.mxu0 0
      %686 = vmatpush.bf16.xpose.msra.mxu0 0
      %687 = vmatpush.bf16.xpose.msra.mxu0 0
      %688 = vmatpush.bf16.xpose.msra.mxu0 0
      %689 = vmatpush.bf16.xpose.msra.mxu0 0
      %690 = vmatpush.bf16.xpose.msra.mxu0 0
      %691 = vmatpush.bf16.xpose.msra.mxu0 0
      %692 = vmatpush.bf16.xpose.msra.mxu0 %v683
      %693 = vmatmul.bf16.gmra.mxu0 %v680
      %v694 = vpop.f32.mrf.mxu0
      %v695 = vadd.f32 %v671, %v694
      %v696 = vpop.f32.mrf.mxu0
      %697 = vdwg.mxu0
      %v699 = vunpack.c.l.b16 %v670
      %v700 = vpack.c.b16 %v699, %v699
      %701 = vrot.lane.b32.xlu0 %v700, 96
      %v702 = vpop.permute.xlu0 %701
      %v704 = vsel %vm678, %v670, 0
      %v707 = vsel %vm678, %v702, 0
      %709 = vmatpush.bf16.xpose.msra.mxu0 0
      %710 = vmatpush.bf16.xpose.msra.mxu0 0
      %711 = vmatpush.bf16.xpose.msra.mxu0 0
      %712 = vmatpush.bf16.xpose.msra.mxu0 0
      %713 = vmatpush.bf16.xpose.msra.mxu0 0
      %714 = vmatpush.bf16.xpose.msra.mxu0 0
      %715 = vmatpush.bf16.xpose.msra.mxu0 0
      %716 = vmatpush.bf16.xpose.msra.mxu0 %v707
      %717 = vmatmul.bf16.gmra.mxu0 %v704
      %v718 = vpop.f32.mrf.mxu0
      %v719 = vadd.f32 %v672, %v718
      %v720 = vpop.f32.mrf.mxu0
      %721 = vdwg.mxu0
      %v722 = vsel %vm678, %v695, -inf
      %723 = vmax.xlane.f32.xlu0 %v722
      %v724 = vpop.xlane.xlu0 %723
      %v725 = vsel %vm678, %v719, -inf
      %726 = vmax.xlane.f32.xlu0 %v725
      %v727 = vpop.xlane.xlu0 %726
      %v728 = vsub.f32 %v695, %v724
      %v729 = vsub.f32 %v719, %v727
      %v730 = vmul.f32 %v728, 1.442695
      %v731 = vpow.pop %v730
      %v732 = vmul.f32 %v729, 1.442695
      %v733 = vpow.pop %v732
      %v734 = vsel %vm678, %v731, 0.0
      %735 = vadd.xlane.f32.xlu0 %v734
      %v736 = vpop.xlane.xlu0 %735
      %v737 = vsel %vm678, %v733, 0.0
      %738 = vadd.xlane.f32.xlu0 %v737
      %v739 = vpop.xlane.xlu0 %738
      %v740 = vrcp.pop %v736
      %v741 = vrcp.pop %v739
      %v742 = vmul.f32 %v731, %v740
      %v743 = vmul.f32 %v733, %v741
      %v744 = vpack.c.bf16 %v742, %v742
      %v745 = vpack.c.bf16 %v743, %v743
      %746 = vrot.lane.b32.xlu0 %v675, 64
      %v747 = vpop.permute.xlu0 %746
      %v749 = vsel %vm678, %v744, 0
      %vm751 = vcmask 1043456
      %v753 = vsel %vm751, %v747, 0
      %755 = vmatpush.bf16.msra.mxu0 0
      %756 = vmatpush.bf16.msra.mxu0 0
      %757 = vmatpush.bf16.msra.mxu0 0
      %758 = vmatpush.bf16.msra.mxu0 0
      %759 = vmatpush.bf16.msra.mxu0 0
      %760 = vmatpush.bf16.msra.mxu0 0
      %761 = vmatpush.bf16.msra.mxu0 0
      %762 = vmatpush.bf16.msra.mxu0 %v753
      %763 = vmatmul.bf16.gmra.mxu0 %v749
      %v764 = vpop.f32.mrf.mxu0
      %v765 = vadd.f32 0.0, %v764
      %v766 = vpop.f32.mrf.mxu0
      %767 = vdwg.mxu0
      %768 = vrot.lane.b32.xlu0 %v700, 64
      %v769 = vpop.permute.xlu0 %768
      %v771 = vsel %vm678, %v745, 0
      %v774 = vsel %vm751, %v769, 0
      %776 = vmatpush.bf16.msra.mxu0 0
      %777 = vmatpush.bf16.msra.mxu0 0
      %778 = vmatpush.bf16.msra.mxu0 0
      %779 = vmatpush.bf16.msra.mxu0 0
      %780 = vmatpush.bf16.msra.mxu0 0
      %781 = vmatpush.bf16.msra.mxu0 0
      %782 = vmatpush.bf16.msra.mxu0 0
      %783 = vmatpush.bf16.msra.mxu0 %v774
      %784 = vmatmul.bf16.gmra.mxu0 %v771
      %v785 = vpop.f32.mrf.mxu0
      %v786 = vadd.f32 0.0, %v785
      %v787 = vpop.f32.mrf.mxu0
      %788 = vdwg.mxu0
      %v789 = vpack.c.bf16 %v786, %v765
      %v790 = vld [vmem:[%s587] sm:$0xf]
      %791 = vrot.lane.b32.xlu0 %v675, 120
      %v792 = vpop.permute.xlu0 %791
      %793 = vrot.lane.b32.xlu0 %v675, 88
      %v794 = vpop.permute.xlu0 %793
      %v796 = vsel %vm678, %v792, 0
      %v799 = vsel %vm678, %v794, 0
      %801 = vmatpush.bf16.xpose.msra.mxu0 0
      %802 = vmatpush.bf16.xpose.msra.mxu0 0
      %803 = vmatpush.bf16.xpose.msra.mxu0 0
      %804 = vmatpush.bf16.xpose.msra.mxu0 0
      %805 = vmatpush.bf16.xpose.msra.mxu0 0
      %806 = vmatpush.bf16.xpose.msra.mxu0 0
      %807 = vmatpush.bf16.xpose.msra.mxu0 0
      %808 = vmatpush.bf16.xpose.msra.mxu0 %v799
      %809 = vmatmul.bf16.gmra.mxu0 %v796
      %v810 = vpop.f32.mrf.mxu0
      %v811 = vadd.f32 %v671, %v810
      %v812 = vpop.f32.mrf.mxu0
      %813 = vdwg.mxu0
      %814 = vrot.lane.b32.xlu0 %v700, 120
      %v815 = vpop.permute.xlu0 %814
      %816 = vrot.lane.b32.xlu0 %v700, 88
      %v817 = vpop.permute.xlu0 %816
      %v819 = vsel %vm678, %v815, 0
      %v822 = vsel %vm678, %v817, 0
      %824 = vmatpush.bf16.xpose.msra.mxu0 0
      %825 = vmatpush.bf16.xpose.msra.mxu0 0
      %826 = vmatpush.bf16.xpose.msra.mxu0 0
      %827 = vmatpush.bf16.xpose.msra.mxu0 0
      %828 = vmatpush.bf16.xpose.msra.mxu0 0
      %829 = vmatpush.bf16.xpose.msra.mxu0 0
      %830 = vmatpush.bf16.xpose.msra.mxu0 0
      %831 = vmatpush.bf16.xpose.msra.mxu0 %v822
      %832 = vmatmul.bf16.gmra.mxu0 %v819
      %v833 = vpop.f32.mrf.mxu0
      %v834 = vadd.f32 %v672, %v833
      %v835 = vpop.f32.mrf.mxu0
      %836 = vdwg.mxu0
      %v837 = vsel %vm678, %v811, -inf
      %838 = vmax.xlane.f32.xlu0 %v837
      %v839 = vpop.xlane.xlu0 %838
      %v840 = vsel %vm678, %v834, -inf
      %841 = vmax.xlane.f32.xlu0 %v840
      %v842 = vpop.xlane.xlu0 %841
      %v843 = vsub.f32 %v811, %v839
      %v844 = vsub.f32 %v834, %v842
      %v845 = vmul.f32 %v843, 1.442695
      %v846 = vpow.pop %v845
      %v847 = vmul.f32 %v844, 1.442695
      %v848 = vpow.pop %v847
      %v849 = vsel %vm678, %v846, 0.0
      %850 = vadd.xlane.f32.xlu0 %v849
      %v851 = vpop.xlane.xlu0 %850
      %v852 = vsel %vm678, %v848, 0.0
      %853 = vadd.xlane.f32.xlu0 %v852
      %v854 = vpop.xlane.xlu0 %853
      %v855 = vrcp.pop %v851
      %v856 = vrcp.pop %v854
      %v857 = vmul.f32 %v846, %v855
      %v858 = vmul.f32 %v848, %v856
      %v859 = vpack.c.bf16 %v857, %v857
      %v860 = vpack.c.bf16 %v858, %v858
      %861 = vrot.lane.b32.xlu0 %v675, 56
      %v862 = vpop.permute.xlu0 %861
      %v864 = vsel %vm678, %v859, 0
      %v867 = vsel %vm751, %v862, 0
      %869 = vmatpush.bf16.msra.mxu0 0
      %870 = vmatpush.bf16.msra.mxu0 0
      %871 = vmatpush.bf16.msra.mxu0 0
      %872 = vmatpush.bf16.msra.mxu0 0
      %873 = vmatpush.bf16.msra.mxu0 0
      %874 = vmatpush.bf16.msra.mxu0 0
      %875 = vmatpush.bf16.msra.mxu0 0
      %876 = vmatpush.bf16.msra.mxu0 %v867
      %877 = vmatmul.bf16.gmra.mxu0 %v864
      %v878 = vpop.f32.mrf.mxu0
      %v879 = vadd.f32 0.0, %v878
      %v880 = vpop.f32.mrf.mxu0
      %881 = vdwg.mxu0
      %882 = vrot.lane.b32.xlu0 %v700, 56
      %v883 = vpop.permute.xlu0 %882
      %v885 = vsel %vm678, %v860, 0
      %v888 = vsel %vm751, %v883, 0
      %890 = vmatpush.bf16.msra.mxu0 0
      %891 = vmatpush.bf16.msra.mxu0 0
      %892 = vmatpush.bf16.msra.mxu0 0
      %893 = vmatpush.bf16.msra.mxu0 0
      %894 = vmatpush.bf16.msra.mxu0 0
      %895 = vmatpush.bf16.msra.mxu0 0
      %896 = vmatpush.bf16.msra.mxu0 0
      %897 = vmatpush.bf16.msra.mxu0 %v888
      %898 = vmatmul.bf16.gmra.mxu0 %v885
      %v899 = vpop.f32.mrf.mxu0
      %v900 = vadd.f32 0.0, %v899
      %v901 = vpop.f32.mrf.mxu0
      %902 = vdwg.mxu0
      %v903 = vpack.c.bf16 %v900, %v879
      %v904 = vld [vmem:[%s587 + $0x4] sm:$0xf]
      %v906 = vsel %vm678, %v903, 0
      %v909 = vsel %vm751, %v904, 0
      %911 = vmatpush.bf16.msra.mxu0 0
      %912 = vmatpush.bf16.msra.mxu0 0
      %913 = vmatpush.bf16.msra.mxu0 0
      %914 = vmatpush.bf16.msra.mxu0 0
      %915 = vmatpush.bf16.msra.mxu0 0
      %916 = vmatpush.bf16.msra.mxu0 0
      %917 = vmatpush.bf16.msra.mxu0 0
      %918 = vmatpush.bf16.msra.mxu0 %v909
      %919 = vmatmul.bf16.gmra.mxu0 %v906
      %v920 = vpop.f32.mrf.mxu0
      %v921 = vadd.f32 0.0, %v920
      %v922 = vpop.f32.mrf.mxu0
      %v923 = vadd.f32 0.0, %v922
      %924 = vdwg.mxu0
      %v926 = vsel %vm678, %v789, 0
      %v929 = vsel %vm751, %v790, 0
      %931 = vmatpush.bf16.msra.mxu0 0
      %932 = vmatpush.bf16.msra.mxu0 0
      %933 = vmatpush.bf16.msra.mxu0 0
      %934 = vmatpush.bf16.msra.mxu0 0
      %935 = vmatpush.bf16.msra.mxu0 0
      %936 = vmatpush.bf16.msra.mxu0 0
      %937 = vmatpush.bf16.msra.mxu0 0
      %938 = vmatpush.bf16.msra.mxu0 %v929
      %939 = vmatmul.bf16.gmra.mxu0 %v926
      %v940 = vpop.f32.mrf.mxu0
      %v941 = vadd.f32 %v921, %v940
      %v942 = vpop.f32.mrf.mxu0
      %v943 = vadd.f32 %v923, %v942
      %944 = vdwg.mxu0
      %945 = vrot.lane.b32.xlu0 %v675, 112
      %v946 = vpop.permute.xlu0 %945
      %947 = vrot.lane.b32.xlu0 %v675, 80
      %v948 = vpop.permute.xlu0 %947
      %v950 = vsel %vm678, %v946, 0
      %v953 = vsel %vm678, %v948, 0
      %955 = vmatpush.bf16.xpose.msra.mxu0 0
      %956 = vmatpush.bf16.xpose.msra.mxu0 0
      %957 = vmatpush.bf16.xpose.msra.mxu0 0
      %958 = vmatpush.bf16.xpose.msra.mxu0 0
      %959 = vmatpush.bf16.xpose.msra.mxu0 0
      %960 = vmatpush.bf16.xpose.msra.mxu0 0
      %961 = vmatpush.bf16.xpose.msra.mxu0 0
      %962 = vmatpush.bf16.xpose.msra.mxu0 %v953
      %963 = vmatmul.bf16.gmra.mxu0 %v950
      %v964 = vpop.f32.mrf.mxu0
      %v965 = vadd.f32 %v671, %v964
      %v966 = vpop.f32.mrf.mxu0
      %967 = vdwg.mxu0
      %968 = vrot.lane.b32.xlu0 %v700, 112
      %v969 = vpop.permute.xlu0 %968
      %970 = vrot.lane.b32.xlu0 %v700, 80
      %v971 = vpop.permute.xlu0 %970
      %v973 = vsel %vm678, %v969, 0
      %v976 = vsel %vm678, %v971, 0
      %978 = vmatpush.bf16.xpose.msra.mxu0 0
      %979 = vmatpush.bf16.xpose.msra.mxu0 0
      %980 = vmatpush.bf16.xpose.msra.mxu0 0
      %981 = vmatpush.bf16.xpose.msra.mxu0 0
      %982 = vmatpush.bf16.xpose.msra.mxu0 0
      %983 = vmatpush.bf16.xpose.msra.mxu0 0
      %984 = vmatpush.bf16.xpose.msra.mxu0 0
      %985 = vmatpush.bf16.xpose.msra.mxu0 %v976
      %986 = vmatmul.bf16.gmra.mxu0 %v973
      %v987 = vpop.f32.mrf.mxu0
      %v988 = vadd.f32 %v672, %v987
      %v989 = vpop.f32.mrf.mxu0
      %990 = vdwg.mxu0
      %v991 = vsel %vm678, %v965, -inf
      %992 = vmax.xlane.f32.xlu0 %v991
      %v993 = vpop.xlane.xlu0 %992
      %v994 = vsel %vm678, %v988, -inf
      %995 = vmax.xlane.f32.xlu0 %v994
      %v996 = vpop.xlane.xlu0 %995
      %v997 = vsub.f32 %v965, %v993
      %v998 = vsub.f32 %v988, %v996
      %v999 = vmul.f32 %v997, 1.442695
      %v1000 = vpow.pop %v999
      %v1001 = vmul.f32 %v998, 1.442695
      %v1002 = vpow.pop %v1001
      %v1003 = vsel %vm678, %v1000, 0.0
      %1004 = vadd.xlane.f32.xlu0 %v1003
      %v1005 = vpop.xlane.xlu0 %1004
      %v1006 = vsel %vm678, %v1002, 0.0
      %1007 = vadd.xlane.f32.xlu0 %v1006
      %v1008 = vpop.xlane.xlu0 %1007
      %v1009 = vrcp.pop %v1005
      %v1010 = vrcp.pop %v1008
      %v1011 = vmul.f32 %v1000, %v1009
      %v1012 = vmul.f32 %v1002, %v1010
      %v1013 = vpack.c.bf16 %v1011, %v1011
      %v1014 = vpack.c.bf16 %v1012, %v1012
      %1015 = vrot.lane.b32.xlu0 %v675, 48
      %v1016 = vpop.permute.xlu0 %1015
      %v1018 = vsel %vm678, %v1013, 0
      %v1021 = vsel %vm751, %v1016, 0
      %1023 = vmatpush.bf16.msra.mxu0 0
      %1024 = vmatpush.bf16.msra.mxu0 0
      %1025 = vmatpush.bf16.msra.mxu0 0
      %1026 = vmatpush.bf16.msra.mxu0 0
      %1027 = vmatpush.bf16.msra.mxu0 0
      %1028 = vmatpush.bf16.msra.mxu0 0
      %1029 = vmatpush.bf16.msra.mxu0 0
      %1030 = vmatpush.bf16.msra.mxu0 %v1021
      %1031 = vmatmul.bf16.gmra.mxu0 %v1018
      %v1032 = vpop.f32.mrf.mxu0
      %v1033 = vadd.f32 0.0, %v1032
      %v1034 = vpop.f32.mrf.mxu0
      %1035 = vdwg.mxu0
      %1036 = vrot.lane.b32.xlu0 %v700, 48
      %v1037 = vpop.permute.xlu0 %1036
      %v1039 = vsel %vm678, %v1014, 0
      %v1042 = vsel %vm751, %v1037, 0
      %1044 = vmatpush.bf16.msra.mxu0 0
      %1045 = vmatpush.bf16.msra.mxu0 0
      %1046 = vmatpush.bf16.msra.mxu0 0
      %1047 = vmatpush.bf16.msra.mxu0 0
      %1048 = vmatpush.bf16.msra.mxu0 0
      %1049 = vmatpush.bf16.msra.mxu0 0
      %1050 = vmatpush.bf16.msra.mxu0 0
      %1051 = vmatpush.bf16.msra.mxu0 %v1042
      %1052 = vmatmul.bf16.gmra.mxu0 %v1039
      %v1053 = vpop.f32.mrf.mxu0
      %v1054 = vadd.f32 0.0, %v1053
      %v1055 = vpop.f32.mrf.mxu0
      %1056 = vdwg.mxu0
      %v1057 = vpack.c.bf16 %v1054, %v1033
      %v1058 = vld [vmem:[%s587 + $0x8] sm:$0xf]
      %v1060 = vsel %vm678, %v1057, 0
      %v1063 = vsel %vm751, %v1058, 0
      %1065 = vmatpush.bf16.msra.mxu0 0
      %1066 = vmatpush.bf16.msra.mxu0 0
      %1067 = vmatpush.bf16.msra.mxu0 0
      %1068 = vmatpush.bf16.msra.mxu0 0
      %1069 = vmatpush.bf16.msra.mxu0 0
      %1070 = vmatpush.bf16.msra.mxu0 0
      %1071 = vmatpush.bf16.msra.mxu0 0
      %1072 = vmatpush.bf16.msra.mxu0 %v1063
      %1073 = vmatmul.bf16.gmra.mxu0 %v1060
      %v1074 = vpop.f32.mrf.mxu0
      %v1075 = vadd.f32 0.0, %v1074
      %v1076 = vpop.f32.mrf.mxu0
      %v1077 = vadd.f32 0.0, %v1076
      %1078 = vdwg.mxu0
      %v1079 = vadd.f32 %v941, %v1075
      %v1080 = vadd.f32 %v943, %v1077
      %1081 = vrot.lane.b32.xlu0 %v675, 104
      %v1082 = vpop.permute.xlu0 %1081
      %1083 = vrot.lane.b32.xlu0 %v675, 72
      %v1084 = vpop.permute.xlu0 %1083
      %v1086 = vsel %vm678, %v1082, 0
      %v1089 = vsel %vm678, %v1084, 0
      %1091 = vmatpush.bf16.xpose.msra.mxu0 0
      %1092 = vmatpush.bf16.xpose.msra.mxu0 0
      %1093 = vmatpush.bf16.xpose.msra.mxu0 0
      %1094 = vmatpush.bf16.xpose.msra.mxu0 0
      %1095 = vmatpush.bf16.xpose.msra.mxu0 0
      %1096 = vmatpush.bf16.xpose.msra.mxu0 0
      %1097 = vmatpush.bf16.xpose.msra.mxu0 0
      %1098 = vmatpush.bf16.xpose.msra.mxu0 %v1089
      %1099 = vmatmul.bf16.gmra.mxu0 %v1086
      %v1100 = vpop.f32.mrf.mxu0
      %v1101 = vadd.f32 %v671, %v1100
      %v1102 = vpop.f32.mrf.mxu0
      %1103 = vdwg.mxu0
      %1104 = vrot.lane.b32.xlu0 %v700, 104
      %v1105 = vpop.permute.xlu0 %1104
      %1106 = vrot.lane.b32.xlu0 %v700, 72
      %v1107 = vpop.permute.xlu0 %1106
      %v1109 = vsel %vm678, %v1105, 0
      %v1112 = vsel %vm678, %v1107, 0
      %1114 = vmatpush.bf16.xpose.msra.mxu0 0
      %1115 = vmatpush.bf16.xpose.msra.mxu0 0
      %1116 = vmatpush.bf16.xpose.msra.mxu0 0
      %1117 = vmatpush.bf16.xpose.msra.mxu0 0
      %1118 = vmatpush.bf16.xpose.msra.mxu0 0
      %1119 = vmatpush.bf16.xpose.msra.mxu0 0
      %1120 = vmatpush.bf16.xpose.msra.mxu0 0
      %1121 = vmatpush.bf16.xpose.msra.mxu0 %v1112
      %1122 = vmatmul.bf16.gmra.mxu0 %v1109
      %v1123 = vpop.f32.mrf.mxu0
      %v1124 = vadd.f32 %v672, %v1123
      %v1125 = vpop.f32.mrf.mxu0
      %1126 = vdwg.mxu0
      %v1127 = vsel %vm678, %v1101, -inf
      %1128 = vmax.xlane.f32.xlu0 %v1127
      %v1129 = vpop.xlane.xlu0 %1128
      %v1130 = vsel %vm678, %v1124, -inf
      %1131 = vmax.xlane.f32.xlu0 %v1130
      %v1132 = vpop.xlane.xlu0 %1131
      %v1133 = vsub.f32 %v1101, %v1129
      %v1134 = vsub.f32 %v1124, %v1132
      %v1135 = vmul.f32 %v1133, 1.442695
      %v1136 = vpow.pop %v1135
      %v1137 = vmul.f32 %v1134, 1.442695
      %v1138 = vpow.pop %v1137
      %v1139 = vsel %vm678, %v1136, 0.0
      %1140 = vadd.xlane.f32.xlu0 %v1139
      %v1141 = vpop.xlane.xlu0 %1140
      %v1142 = vsel %vm678, %v1138, 0.0
      %1143 = vadd.xlane.f32.xlu0 %v1142
      %v1144 = vpop.xlane.xlu0 %1143
      %v1145 = vrcp.pop %v1141
      %v1146 = vrcp.pop %v1144
      %v1147 = vmul.f32 %v1136, %v1145
      %v1148 = vmul.f32 %v1138, %v1146
      %v1149 = vpack.c.bf16 %v1147, %v1147
      %v1150 = vpack.c.bf16 %v1148, %v1148
      %1151 = vrot.lane.b32.xlu0 %v675, 40
      %v1152 = vpop.permute.xlu0 %1151
      %v1154 = vsel %vm678, %v1149, 0
      %v1157 = vsel %vm751, %v1152, 0
      %1159 = vmatpush.bf16.msra.mxu0 0
      %1160 = vmatpush.bf16.msra.mxu0 0
      %1161 = vmatpush.bf16.msra.mxu0 0
      %1162 = vmatpush.bf16.msra.mxu0 0
      %1163 = vmatpush.bf16.msra.mxu0 0
      %1164 = vmatpush.bf16.msra.mxu0 0
      %1165 = vmatpush.bf16.msra.mxu0 0
      %1166 = vmatpush.bf16.msra.mxu0 %v1157
      %1167 = vmatmul.bf16.gmra.mxu0 %v1154
      %v1168 = vpop.f32.mrf.mxu0
      %v1169 = vadd.f32 0.0, %v1168
      %v1170 = vpop.f32.mrf.mxu0
      %1171 = vdwg.mxu0
      %1172 = vrot.lane.b32.xlu0 %v700, 40
      %v1173 = vpop.permute.xlu0 %1172
      %v1175 = vsel %vm678, %v1150, 0
      %v1178 = vsel %vm751, %v1173, 0
      %1180 = vmatpush.bf16.msra.mxu0 0
      %1181 = vmatpush.bf16.msra.mxu0 0
      %1182 = vmatpush.bf16.msra.mxu0 0
      %1183 = vmatpush.bf16.msra.mxu0 0
      %1184 = vmatpush.bf16.msra.mxu0 0
      %1185 = vmatpush.bf16.msra.mxu0 0
      %1186 = vmatpush.bf16.msra.mxu0 0
      %1187 = vmatpush.bf16.msra.mxu0 %v1178
      %1188 = vmatmul.bf16.gmra.mxu0 %v1175
      %v1189 = vpop.f32.mrf.mxu0
      %v1190 = vadd.f32 0.0, %v1189
      %v1191 = vpop.f32.mrf.mxu0
      %1192 = vdwg.mxu0
      %v1193 = vpack.c.bf16 %v1190, %v1169
      %v1194 = vld [vmem:[%s587 + $0xc] sm:$0xf]
      %v1196 = vsel %vm678, %v1193, 0
      %v1199 = vsel %vm751, %v1194, 0
      %1201 = vmatpush.bf16.msra.mxu0 0
      %1202 = vmatpush.bf16.msra.mxu0 0
      %1203 = vmatpush.bf16.msra.mxu0 0
      %1204 = vmatpush.bf16.msra.mxu0 0
      %1205 = vmatpush.bf16.msra.mxu0 0
      %1206 = vmatpush.bf16.msra.mxu0 0
      %1207 = vmatpush.bf16.msra.mxu0 0
      %1208 = vmatpush.bf16.msra.mxu0 %v1199
      %1209 = vmatmul.bf16.gmra.mxu0 %v1196
      %v1210 = vpop.f32.mrf.mxu0
      %v1211 = vadd.f32 0.0, %v1210
      %v1212 = vpop.f32.mrf.mxu0
      %v1213 = vadd.f32 0.0, %v1212
      %1214 = vdwg.mxu0
      %v1215 = vadd.f32 %v1079, %v1211
      %v1216 = vadd.f32 %v1080, %v1213
      %v1217 = vadd.f32 %v631, %v1215
      %v1218 = vadd.f32 %v632, %v1216
      %v1219 = vperm.slane %v629, 1
      %v1220 = vadd.f32 %v1217, %v1219
      %v1221 = vadd.f32 %v1218, %v1219
      %v1222 = vsel %vm651, %v1220, 0.0
      %1223 = vadd.xlane.f32.xlu0 %v1222
      %v1224 = vpop.xlane.xlu0 %1223
      %v1225 = vsel %vm651, %v1221, 0.0
      %1226 = vadd.xlane.f32.xlu0 %v1225
      %v1227 = vpop.xlane.xlu0 %1226
      %v1228 = vrcp.pop 32.0
      %v1229 = vmul.f32 32.0, %v1228
      %v1230 = vsub.f32 1.0, %v1229
      %v1231 = vmul.f32 %v1228, %v1230
      %v1232 = vadd.f32 %v1228, %v1231
      %vm1233 = vweird.f32 %v1228
      %v1234 = vsel %vm1233, %v1228, %v1232
      %v1235 = vmul.f32 %v1224, %v1234
      %v1236 = vmul.f32 %v1227, %v1234
      %v1237 = vsub.f32 %v1220, %v1235
      %v1238 = vsub.f32 %v1221, %v1236
      %v1239 = vmul.f32 %v1237, %v1237
      %v1240 = vmul.f32 %v1238, %v1238
      %v1241 = vsel %vm651, %v1239, 0.0
      %1242 = vadd.xlane.f32.xlu0 %v1241
      %v1243 = vpop.xlane.xlu0 %1242
      %v1244 = vsel %vm651, %v1240, 0.0
      %1245 = vadd.xlane.f32.xlu0 %v1244
      %v1246 = vpop.xlane.xlu0 %1245
      %v1247 = vmul.f32 %v1243, %v1234
      %v1248 = vmul.f32 %v1246, %v1234
      %v1249 = vadd.f32 %v1247, 1e-05
      %v1250 = vadd.f32 %v1248, 1e-05
      %v1251 = vrsqrt.pop %v1249
      %v1252 = vmul.f32 %v1251, %v1249
      %v1253 = vmul.f32 %v1252, %v1251
      %v1254 = vmul.f32 0.5, %v1253
      %v1255 = vsub.f32 1.5, %v1254
      %v1256 = vmul.f32 %v1251, %v1255
      %vm1257 = vweird.f32 %v1249
      %vm1258 = vweird.f32 %v1251
      %vm1259 = vmor %vm1257, %vm1258
      %v1260 = vsel %vm1259, %v1251, %v1256
      %v1261 = vrsqrt.pop %v1250
      %v1262 = vmul.f32 %v1261, %v1250
      %v1263 = vmul.f32 %v1262, %v1261
      %v1264 = vmul.f32 0.5, %v1263
      %v1265 = vsub.f32 1.5, %v1264
      %v1266 = vmul.f32 %v1261, %v1265
      %vm1267 = vweird.f32 %v1250
      %vm1268 = vweird.f32 %v1261
      %vm1269 = vmor %vm1267, %vm1268
      %v1270 = vsel %vm1269, %v1261, %v1266
      %v1271 = vmul.f32 %v1237, %v1260
      %v1272 = vmul.f32 %v1238, %v1270
      %v1273 = vperm.slane %v629, 2
      %v1274 = vmul.f32 %v1271, %v1273
      %v1275 = vmul.f32 %v1272, %v1273
      %v1276 = vperm.slane %v629, 3
      %v1277 = vadd.f32 %v1274, %v1276
      %v1278 = vadd.f32 %v1275, %v1276
      %v1279 = vpack.c.bf16 %v1278, %v1277
      %v1280 = vld [vmem:[%s592] sm:$0xf]
      %v1281 = vld [vmem:[%s592 + $0x4] sm:$0xf]
      %v1282 = vld [vmem:[%s592 + $0x8] sm:$0xf]
      %v1283 = vld [vmem:[%s592 + $0xc] sm:$0xf]
      %v1284 = vperm.slane %v629, 4
      %v1289 = vunpack.c.l.b16 %v1280
      %v1290 = vunpack.c.l.b16 %v1281
      %v1291 = vunpack.c.l.b16 %v1282
      %v1292 = vunpack.c.l.b16 %v1283
      %v1293 = vpack.c.b16 %v1290, %v1289
      %v1294 = vpack.c.b16 %v1292, %v1291
      %v1298 = vsel %vm651, %v1279, 0
      %1300 = vmatpush.bf16.msra.mxu0 0
      %1301 = vmatpush.bf16.msra.mxu0 0
      %1302 = vmatpush.bf16.msra.mxu0 0
      %1303 = vmatpush.bf16.msra.mxu0 0
      %1304 = vmatpush.bf16.msra.mxu0 0
      %1305 = vmatpush.bf16.msra.mxu0 0
      %1306 = vmatpush.bf16.msra.mxu0 %v1294
      %1307 = vmatpush.bf16.msra.mxu0 %v1293
      %1308 = vmatmul.bf16.gmra.mxu0 %v1298
      %v1309 = vpop.f32.mrf.mxu0
      %v1310 = vadd.f32 %v1284, %v1309
      %v1311 = vpop.f32.mrf.mxu0
      %v1312 = vadd.f32 %v1284, %v1311
      %1313 = vdwg.mxu0
      %v1314 = vld [vmem:[%s1] sm:$0xf]
      %v1315 = vld [vmem:[%s1 + $0x4] sm:$0xf]
      %v1316 = vld [vmem:[%s1 + $0x8] sm:$0xf]
      %v1317 = vld [vmem:[%s1 + $0xc] sm:$0xf]
      %v1318 = vld [vmem:[%s1 + $0x10] sm:$0xf]
      %v1319 = vld [vmem:[%s1 + $0x14] sm:$0xf]
      %v1320 = vld [vmem:[%s1 + $0x18] sm:$0xf]
      %v1321 = vld [vmem:[%s1 + $0x1c] sm:$0xf]
      %v1322 = vld [vmem:[%s1 + $0x20] sm:$0xf]
      %v1323 = vld [vmem:[%s1 + $0x24] sm:$0xf]
      %v1324 = vld [vmem:[%s1 + $0x28] sm:$0xf]
      %v1325 = vld [vmem:[%s1 + $0x2c] sm:$0xf]
      %v1326 = vld [vmem:[%s1 + $0x30] sm:$0xf]
      %v1327 = vld [vmem:[%s1 + $0x34] sm:$0xf]
      %v1328 = vld [vmem:[%s1 + $0x38] sm:$0xf]
      %v1329 = vld [vmem:[%s1 + $0x3c] sm:$0xf]
      %v1330 = vld [vmem:[%s1 + $0x40] sm:$0xf]
      %v1331 = vld [vmem:[%s1 + $0x44] sm:$0xf]
      %v1332 = vld [vmem:[%s1 + $0x48] sm:$0xf]
      %v1333 = vld [vmem:[%s1 + $0x4c] sm:$0xf]
      %v1334 = vld [vmem:[%s1 + $0x50] sm:$0xf]
      %v1335 = vld [vmem:[%s1 + $0x54] sm:$0xf]
      %v1336 = vld [vmem:[%s1 + $0x58] sm:$0xf]
      %v1337 = vld [vmem:[%s1 + $0x5c] sm:$0xf]
      %v1338 = vld [vmem:[%s1 + $0x60] sm:$0xf]
      %v1339 = vld [vmem:[%s1 + $0x64] sm:$0xf]
      %v1340 = vld [vmem:[%s1 + $0x68] sm:$0xf]
      %v1341 = vld [vmem:[%s1 + $0x6c] sm:$0xf]
      %v1342 = vld [vmem:[%s1 + $0x70] sm:$0xf]
      %v1343 = vld [vmem:[%s1 + $0x74] sm:$0xf]
      %v1344 = vld [vmem:[%s1 + $0x78] sm:$0xf]
      %v1345 = vld [vmem:[%s1 + $0x7c] sm:$0xf]
      %v1346 = vld [vmem:[%s597] sm:$0xf]
      %v1347 = vld [vmem:[%s597 + $0x4] sm:$0xf]
      %v1348 = vld [vmem:[%s597 + $0x8] sm:$0xf]
      %v1349 = vld [vmem:[%s597 + $0xc] sm:$0xf]
      %v1350 = vperm.slane %v629, 5
      %v1383 = vunpack.c.l.b16 %v1314
      %v1384 = vunpack.c.l.b16 %v1315
      %v1385 = vunpack.c.l.b16 %v1316
      %v1386 = vunpack.c.l.b16 %v1317
      %v1387 = vunpack.c.l.b16 %v1318
      %v1388 = vunpack.c.l.b16 %v1319
      %v1389 = vunpack.c.l.b16 %v1320
      %v1390 = vunpack.c.l.b16 %v1321
      %v1391 = vunpack.c.l.b16 %v1322
      %v1392 = vunpack.c.l.b16 %v1323
      %v1393 = vunpack.c.l.b16 %v1324
      %v1394 = vunpack.c.l.b16 %v1325
      %v1395 = vunpack.c.l.b16 %v1326
      %v1396 = vunpack.c.l.b16 %v1327
      %v1397 = vunpack.c.l.b16 %v1328
      %v1398 = vunpack.c.l.b16 %v1329
      %v1399 = vunpack.c.l.b16 %v1330
      %v1400 = vunpack.c.l.b16 %v1331
      %v1401 = vunpack.c.l.b16 %v1332
      %v1402 = vunpack.c.l.b16 %v1333
      %v1403 = vunpack.c.l.b16 %v1334
      %v1404 = vunpack.c.l.b16 %v1335
      %v1405 = vunpack.c.l.b16 %v1336
      %v1406 = vunpack.c.l.b16 %v1337
      %v1407 = vunpack.c.l.b16 %v1338
      %v1408 = vunpack.c.l.b16 %v1339
      %v1409 = vunpack.c.l.b16 %v1340
      %v1410 = vunpack.c.l.b16 %v1341
      %v1411 = vunpack.c.l.b16 %v1342
      %v1412 = vunpack.c.l.b16 %v1343
      %v1413 = vunpack.c.l.b16 %v1344
      %v1414 = vunpack.c.l.b16 %v1345
      %v1415 = vpack.c.b16 %v1384, %v1383
      %v1416 = vpack.c.b16 %v1386, %v1385
      %v1417 = vpack.c.b16 %v1388, %v1387
      %v1418 = vpack.c.b16 %v1390, %v1389
      %v1419 = vpack.c.b16 %v1392, %v1391
      %v1420 = vpack.c.b16 %v1394, %v1393
      %v1421 = vpack.c.b16 %v1396, %v1395
      %v1422 = vpack.c.b16 %v1398, %v1397
      %v1423 = vpack.c.b16 %v1400, %v1399
      %v1424 = vpack.c.b16 %v1402, %v1401
      %v1425 = vpack.c.b16 %v1404, %v1403
      %v1426 = vpack.c.b16 %v1406, %v1405
      %v1427 = vpack.c.b16 %v1408, %v1407
      %v1428 = vpack.c.b16 %v1410, %v1409
      %v1429 = vpack.c.b16 %v1412, %v1411
      %v1430 = vpack.c.b16 %v1414, %v1413
      %v1435 = vunpack.c.l.b16 %v1346
      %v1436 = vunpack.c.l.b16 %v1347
      %v1437 = vunpack.c.l.b16 %v1348
      %v1438 = vunpack.c.l.b16 %v1349
      %v1439 = vpack.c.b16 %v1436, %v1435
      %v1440 = vpack.c.b16 %v1438, %v1437
      %v1444 = vsel %vm651, %v1415, 0
      %v1447 = vsel %vm651, %v1416, 0
      %v1450 = vsel %vm651, %v1417, 0
      %v1453 = vsel %vm651, %v1418, 0
      %v1456 = vsel %vm651, %v1419, 0
      %v1459 = vsel %vm651, %v1420, 0
      %v1462 = vsel %vm651, %v1421, 0
      %v1465 = vsel %vm651, %v1422, 0
      %v1468 = vsel %vm651, %v1423, 0
      %v1471 = vsel %vm651, %v1424, 0
      %v1474 = vsel %vm651, %v1425, 0
      %v1477 = vsel %vm651, %v1426, 0
      %v1480 = vsel %vm651, %v1427, 0
      %v1483 = vsel %vm651, %v1428, 0
      %v1486 = vsel %vm651, %v1429, 0
      %v1489 = vsel %vm651, %v1430, 0
      %1491 = vmatpush.bf16.msra.mxu0 0
      %1492 = vmatpush.bf16.msra.mxu0 0
      %1493 = vmatpush.bf16.msra.mxu0 0
      %1494 = vmatpush.bf16.msra.mxu0 0
      %1495 = vmatpush.bf16.msra.mxu0 0
      %1496 = vmatpush.bf16.msra.mxu0 0
      %1497 = vmatpush.bf16.msra.mxu0 %v1440
      %1498 = vmatpush.bf16.msra.mxu0 %v1439
      %1499 = vmatmul.bf16.gmra.mxu0 %v1444
      %v1500 = vpop.f32.mrf.mxu0
      %v1501 = vadd.f32 %v1350, %v1500
      %v1502 = vpop.f32.mrf.mxu0
      %v1503 = vadd.f32 %v1350, %v1502
      %1504 = vmatmul.bf16.gmra.mxu0 %v1447
      %v1505 = vpop.f32.mrf.mxu0
      %v1506 = vadd.f32 %v1350, %v1505
      %v1507 = vpop.f32.mrf.mxu0
      %v1508 = vadd.f32 %v1350, %v1507
      %1509 = vmatmul.bf16.gmra.mxu0 %v1450
      %v1510 = vpop.f32.mrf.mxu0
      %v1511 = vadd.f32 %v1350, %v1510
      %v1512 = vpop.f32.mrf.mxu0
      %v1513 = vadd.f32 %v1350, %v1512
      %1514 = vmatmul.bf16.gmra.mxu0 %v1453
      %v1515 = vpop.f32.mrf.mxu0
      %v1516 = vadd.f32 %v1350, %v1515
      %v1517 = vpop.f32.mrf.mxu0
      %v1518 = vadd.f32 %v1350, %v1517
      %1519 = vmatmul.bf16.gmra.mxu0 %v1456
      %v1520 = vpop.f32.mrf.mxu0
      %v1521 = vadd.f32 %v1350, %v1520
      %v1522 = vpop.f32.mrf.mxu0
      %v1523 = vadd.f32 %v1350, %v1522
      %1524 = vmatmul.bf16.gmra.mxu0 %v1459
      %v1525 = vpop.f32.mrf.mxu0
      %v1526 = vadd.f32 %v1350, %v1525
      %v1527 = vpop.f32.mrf.mxu0
      %v1528 = vadd.f32 %v1350, %v1527
      %1529 = vmatmul.bf16.gmra.mxu0 %v1462
      %v1530 = vpop.f32.mrf.mxu0
      %v1531 = vadd.f32 %v1350, %v1530
      %v1532 = vpop.f32.mrf.mxu0
      %v1533 = vadd.f32 %v1350, %v1532
      %1534 = vmatmul.bf16.gmra.mxu0 %v1465
      %v1535 = vpop.f32.mrf.mxu0
      %v1536 = vadd.f32 %v1350, %v1535
      %v1537 = vpop.f32.mrf.mxu0
      %v1538 = vadd.f32 %v1350, %v1537
      %1539 = vmatmul.bf16.gmra.mxu0 %v1468
      %v1540 = vpop.f32.mrf.mxu0
      %v1541 = vadd.f32 %v1350, %v1540
      %v1542 = vpop.f32.mrf.mxu0
      %v1543 = vadd.f32 %v1350, %v1542
      %1544 = vmatmul.bf16.gmra.mxu0 %v1471
      %v1545 = vpop.f32.mrf.mxu0
      %v1546 = vadd.f32 %v1350, %v1545
      %v1547 = vpop.f32.mrf.mxu0
      %v1548 = vadd.f32 %v1350, %v1547
      %1549 = vmatmul.bf16.gmra.mxu0 %v1474
      %v1550 = vpop.f32.mrf.mxu0
      %v1551 = vadd.f32 %v1350, %v1550
      %v1552 = vpop.f32.mrf.mxu0
      %v1553 = vadd.f32 %v1350, %v1552
      %1554 = vmatmul.bf16.gmra.mxu0 %v1477
      %v1555 = vpop.f32.mrf.mxu0
      %v1556 = vadd.f32 %v1350, %v1555
      %v1557 = vpop.f32.mrf.mxu0
      %v1558 = vadd.f32 %v1350, %v1557
      %1559 = vmatmul.bf16.gmra.mxu0 %v1480
      %v1560 = vpop.f32.mrf.mxu0
      %v1561 = vadd.f32 %v1350, %v1560
      %v1562 = vpop.f32.mrf.mxu0
      %v1563 = vadd.f32 %v1350, %v1562
      %1564 = vmatmul.bf16.gmra.mxu0 %v1483
      %v1565 = vpop.f32.mrf.mxu0
      %v1566 = vadd.f32 %v1350, %v1565
      %v1567 = vpop.f32.mrf.mxu0
      %v1568 = vadd.f32 %v1350, %v1567
      %1569 = vmatmul.bf16.gmra.mxu0 %v1486
      %v1570 = vpop.f32.mrf.mxu0
      %v1571 = vadd.f32 %v1350, %v1570
      %v1572 = vpop.f32.mrf.mxu0
      %v1573 = vadd.f32 %v1350, %v1572
      %1574 = vmatmul.bf16.gmra.mxu0 %v1489
      %v1575 = vpop.f32.mrf.mxu0
      %v1576 = vadd.f32 %v1350, %v1575
      %v1577 = vpop.f32.mrf.mxu0
      %v1578 = vadd.f32 %v1350, %v1577
      %1579 = vdwg.mxu0
      %v1580 = vpack.c.bf16 %v1310, %v1310
      %v1581 = vpack.c.bf16 %v1312, %v1312
      %v1582 = vpack.c.bf16 %v1501, %v1501
      %v1583 = vpack.c.bf16 %v1503, %v1503
      %v1584 = vpack.c.bf16 %v1506, %v1506
      %v1585 = vpack.c.bf16 %v1508, %v1508
      %v1586 = vpack.c.bf16 %v1511, %v1511
      %v1587 = vpack.c.bf16 %v1513, %v1513
      %v1588 = vpack.c.bf16 %v1516, %v1516
      %v1589 = vpack.c.bf16 %v1518, %v1518
      %v1590 = vpack.c.bf16 %v1521, %v1521
      %v1591 = vpack.c.bf16 %v1523, %v1523
      %v1592 = vpack.c.bf16 %v1526, %v1526
      %v1593 = vpack.c.bf16 %v1528, %v1528
      %v1594 = vpack.c.bf16 %v1531, %v1531
      %v1595 = vpack.c.bf16 %v1533, %v1533
      %v1596 = vpack.c.bf16 %v1536, %v1536
      %v1597 = vpack.c.bf16 %v1538, %v1538
      %v1598 = vpack.c.bf16 %v1541, %v1541
      %v1599 = vpack.c.bf16 %v1543, %v1543
      %v1600 = vpack.c.bf16 %v1546, %v1546
      %v1601 = vpack.c.bf16 %v1548, %v1548
      %v1602 = vpack.c.bf16 %v1551, %v1551
      %v1603 = vpack.c.bf16 %v1553, %v1553
      %v1604 = vpack.c.bf16 %v1556, %v1556
      %v1605 = vpack.c.bf16 %v1558, %v1558
      %v1606 = vpack.c.bf16 %v1561, %v1561
      %v1607 = vpack.c.bf16 %v1563, %v1563
      %v1608 = vpack.c.bf16 %v1566, %v1566
      %v1609 = vpack.c.bf16 %v1568, %v1568
      %v1610 = vpack.c.bf16 %v1571, %v1571
      %v1611 = vpack.c.bf16 %v1573, %v1573
      %v1612 = vpack.c.bf16 %v1576, %v1576
      %v1613 = vpack.c.bf16 %v1578, %v1578
      %v1614 = vld [vmem:[%s3] sm:$0x1]
      %v1615 = vld [vmem:[%s3 + $0x1] sm:$0x1]
      %v1618 = vperm.slane %v1614, 0
      %v1619 = vperm.slane %v1615, 0
      %v1638 = vunpack.c.l.b16 %v1582
      %v1639 = vunpack.c.l.b16 %v1583
      %v1640 = vunpack.c.l.b16 %v1584
      %v1641 = vunpack.c.l.b16 %v1585
      %v1642 = vunpack.c.l.b16 %v1586
      %v1643 = vunpack.c.l.b16 %v1587
      %v1644 = vunpack.c.l.b16 %v1588
      %v1645 = vunpack.c.l.b16 %v1589
      %v1646 = vunpack.c.l.b16 %v1590
      %v1647 = vunpack.c.l.b16 %v1591
      %v1648 = vunpack.c.l.b16 %v1592
      %v1649 = vunpack.c.l.b16 %v1593
      %v1650 = vunpack.c.l.b16 %v1594
      %v1651 = vunpack.c.l.b16 %v1595
      %v1652 = vunpack.c.l.b16 %v1596
      %v1653 = vunpack.c.l.b16 %v1597
      %v1654 = vpack.c.b16 %v1639, %v1638
      %v1655 = vpack.c.b16 %v1641, %v1640
      %v1656 = vpack.c.b16 %v1643, %v1642
      %v1657 = vpack.c.b16 %v1645, %v1644
      %v1658 = vpack.c.b16 %v1647, %v1646
      %v1659 = vpack.c.b16 %v1649, %v1648
      %v1660 = vpack.c.b16 %v1651, %v1650
      %v1661 = vpack.c.b16 %v1653, %v1652
      %v1663 = vsel %vm678, %v1580, 0
      %v1666 = vsel %vm678, %v1654, 0
      %v1669 = vsel %vm678, %v1655, 0
      %v1672 = vsel %vm678, %v1656, 0
      %v1675 = vsel %vm678, %v1657, 0
      %v1678 = vsel %vm678, %v1658, 0
      %v1681 = vsel %vm678, %v1659, 0
      %v1684 = vsel %vm678, %v1660, 0
      %v1687 = vsel %vm678, %v1661, 0
      %1689 = vmatpush.bf16.xpose.msra.mxu0 %v1687
      %1690 = vmatpush.bf16.xpose.msra.mxu0 %v1684
      %1691 = vmatpush.bf16.xpose.msra.mxu0 %v1681
      %1692 = vmatpush.bf16.xpose.msra.mxu0 %v1678
      %1693 = vmatpush.bf16.xpose.msra.mxu0 %v1675
      %1694 = vmatpush.bf16.xpose.msra.mxu0 %v1672
      %1695 = vmatpush.bf16.xpose.msra.mxu0 %v1669
      %1696 = vmatpush.bf16.xpose.msra.mxu0 %v1666
      %1697 = vmatmul.bf16.gmra.mxu0 %v1663
      %v1698 = vpop.f32.mrf.mxu0
      %v1699 = vadd.f32 %v1618, %v1698
      %v1700 = vpop.f32.mrf.mxu0
      %1701 = vdwg.mxu0
      %v1718 = vunpack.c.l.b16 %v1598
      %v1719 = vunpack.c.l.b16 %v1599
      %v1720 = vunpack.c.l.b16 %v1600
      %v1721 = vunpack.c.l.b16 %v1601
      %v1722 = vunpack.c.l.b16 %v1602
      %v1723 = vunpack.c.l.b16 %v1603
      %v1724 = vunpack.c.l.b16 %v1604
      %v1725 = vunpack.c.l.b16 %v1605
      %v1726 = vunpack.c.l.b16 %v1606
      %v1727 = vunpack.c.l.b16 %v1607
      %v1728 = vunpack.c.l.b16 %v1608
      %v1729 = vunpack.c.l.b16 %v1609
      %v1730 = vunpack.c.l.b16 %v1610
      %v1731 = vunpack.c.l.b16 %v1611
      %v1732 = vunpack.c.l.b16 %v1612
      %v1733 = vunpack.c.l.b16 %v1613
      %v1734 = vpack.c.b16 %v1719, %v1718
      %v1735 = vpack.c.b16 %v1721, %v1720
      %v1736 = vpack.c.b16 %v1723, %v1722
      %v1737 = vpack.c.b16 %v1725, %v1724
      %v1738 = vpack.c.b16 %v1727, %v1726
      %v1739 = vpack.c.b16 %v1729, %v1728
      %v1740 = vpack.c.b16 %v1731, %v1730
      %v1741 = vpack.c.b16 %v1733, %v1732
      %v1743 = vsel %vm678, %v1581, 0
      %v1746 = vsel %vm678, %v1734, 0
      %v1749 = vsel %vm678, %v1735, 0
      %v1752 = vsel %vm678, %v1736, 0
      %v1755 = vsel %vm678, %v1737, 0
      %v1758 = vsel %vm678, %v1738, 0
      %v1761 = vsel %vm678, %v1739, 0
      %v1764 = vsel %vm678, %v1740, 0
      %v1767 = vsel %vm678, %v1741, 0
      %1769 = vmatpush.bf16.xpose.msra.mxu0 %v1767
      %1770 = vmatpush.bf16.xpose.msra.mxu0 %v1764
      %1771 = vmatpush.bf16.xpose.msra.mxu0 %v1761
      %1772 = vmatpush.bf16.xpose.msra.mxu0 %v1758
      %1773 = vmatpush.bf16.xpose.msra.mxu0 %v1755
      %1774 = vmatpush.bf16.xpose.msra.mxu0 %v1752
      %1775 = vmatpush.bf16.xpose.msra.mxu0 %v1749
      %1776 = vmatpush.bf16.xpose.msra.mxu0 %v1746
      %1777 = vmatmul.bf16.gmra.mxu0 %v1743
      %v1778 = vpop.f32.mrf.mxu0
      %v1779 = vadd.f32 %v1619, %v1778
      %v1780 = vpop.f32.mrf.mxu0
      %1781 = vdwg.mxu0
      %1782 = vmax.xlane.f32.xlu0 %v1699
      %v1783 = vpop.xlane.xlu0 %1782
      %1784 = vmax.xlane.f32.xlu0 %v1779
      %v1785 = vpop.xlane.xlu0 %1784
      %v1786 = vsub.f32 %v1699, %v1783
      %v1787 = vsub.f32 %v1779, %v1785
      %v1788 = vmul.f32 %v1786, 1.442695
      %v1789 = vpow.pop %v1788
      %v1790 = vmul.f32 %v1787, 1.442695
      %v1791 = vpow.pop %v1790
      %1792 = vadd.xlane.f32.xlu0 %v1789
      %v1793 = vpop.xlane.xlu0 %1792
      %1794 = vadd.xlane.f32.xlu0 %v1791
      %v1795 = vpop.xlane.xlu0 %1794
      %v1796 = vrcp.pop %v1793
      %v1797 = vrcp.pop %v1795
      %v1798 = vmul.f32 %v1789, %v1796
      %v1799 = vmul.f32 %v1791, %v1797
      %v1800 = vpack.c.bf16 %v1798, %v1798
      %v1801 = vpack.c.bf16 %v1799, %v1799
      %1802 = vrot.lane.b32.xlu0 %v1654, 96
      %v1803 = vpop.permute.xlu0 %1802
      %1804 = vrot.lane.b32.xlu0 %v1655, 96
      %v1805 = vpop.permute.xlu0 %1804
      %1806 = vrot.lane.b32.xlu0 %v1656, 96
      %v1807 = vpop.permute.xlu0 %1806
      %1808 = vrot.lane.b32.xlu0 %v1657, 96
      %v1809 = vpop.permute.xlu0 %1808
      %1810 = vrot.lane.b32.xlu0 %v1658, 96
      %v1811 = vpop.permute.xlu0 %1810
      %1812 = vrot.lane.b32.xlu0 %v1659, 96
      %v1813 = vpop.permute.xlu0 %1812
      %1814 = vrot.lane.b32.xlu0 %v1660, 96
      %v1815 = vpop.permute.xlu0 %1814
      %1816 = vrot.lane.b32.xlu0 %v1661, 96
      %v1817 = vpop.permute.xlu0 %1816
      %1826 = vmatpush.bf16.msra.mxu0 %v1817
      %1827 = vmatpush.bf16.msra.mxu0 %v1815
      %1828 = vmatpush.bf16.msra.mxu0 %v1813
      %1829 = vmatpush.bf16.msra.mxu0 %v1811
      %1830 = vmatpush.bf16.msra.mxu0 %v1809
      %1831 = vmatpush.bf16.msra.mxu0 %v1807
      %1832 = vmatpush.bf16.msra.mxu0 %v1805
      %1833 = vmatpush.bf16.msra.mxu0 %v1803
      %1834 = vmatmul.bf16.gmra.mxu0 %v1800
      %v1835 = vpop.f32.mrf.mxu0
      %v1836 = vadd.f32 0.0, %v1835
      %v1837 = vpop.f32.mrf.mxu0
      %1838 = vdwg.mxu0
      %1839 = vrot.lane.b32.xlu0 %v1734, 96
      %v1840 = vpop.permute.xlu0 %1839
      %1841 = vrot.lane.b32.xlu0 %v1735, 96
      %v1842 = vpop.permute.xlu0 %1841
      %1843 = vrot.lane.b32.xlu0 %v1736, 96
      %v1844 = vpop.permute.xlu0 %1843
      %1845 = vrot.lane.b32.xlu0 %v1737, 96
      %v1846 = vpop.permute.xlu0 %1845
      %1847 = vrot.lane.b32.xlu0 %v1738, 96
      %v1848 = vpop.permute.xlu0 %1847
      %1849 = vrot.lane.b32.xlu0 %v1739, 96
      %v1850 = vpop.permute.xlu0 %1849
      %1851 = vrot.lane.b32.xlu0 %v1740, 96
      %v1852 = vpop.permute.xlu0 %1851
      %1853 = vrot.lane.b32.xlu0 %v1741, 96
      %v1854 = vpop.permute.xlu0 %1853
      %1863 = vmatpush.bf16.msra.mxu0 %v1854
      %1864 = vmatpush.bf16.msra.mxu0 %v1852
      %1865 = vmatpush.bf16.msra.mxu0 %v1850
      %1866 = vmatpush.bf16.msra.mxu0 %v1848
      %1867 = vmatpush.bf16.msra.mxu0 %v1846
      %1868 = vmatpush.bf16.msra.mxu0 %v1844
      %1869 = vmatpush.bf16.msra.mxu0 %v1842
      %1870 = vmatpush.bf16.msra.mxu0 %v1840
      %1871 = vmatmul.bf16.gmra.mxu0 %v1801
      %v1872 = vpop.f32.mrf.mxu0
      %v1873 = vadd.f32 0.0, %v1872
      %v1874 = vpop.f32.mrf.mxu0
      %1875 = vdwg.mxu0
      %v1876 = vpack.c.bf16 %v1873, %v1836
      %v1877 = vld [vmem:[%s602] sm:$0xf]
      %v1879 = vunpack.c.l.b16 %v1580
      %v1880 = vpack.c.b16 %v1879, %v1879
      %1881 = vrot.lane.b32.xlu0 %v1880, 120
      %v1882 = vpop.permute.xlu0 %1881
      %1883 = vrot.lane.b32.xlu0 %v1654, 120
      %v1884 = vpop.permute.xlu0 %1883
      %1885 = vrot.lane.b32.xlu0 %v1655, 120
      %v1886 = vpop.permute.xlu0 %1885
      %1887 = vrot.lane.b32.xlu0 %v1656, 120
      %v1888 = vpop.permute.xlu0 %1887
      %1889 = vrot.lane.b32.xlu0 %v1657, 120
      %v1890 = vpop.permute.xlu0 %1889
      %1891 = vrot.lane.b32.xlu0 %v1658, 120
      %v1892 = vpop.permute.xlu0 %1891
      %1893 = vrot.lane.b32.xlu0 %v1659, 120
      %v1894 = vpop.permute.xlu0 %1893
      %1895 = vrot.lane.b32.xlu0 %v1660, 120
      %v1896 = vpop.permute.xlu0 %1895
      %1897 = vrot.lane.b32.xlu0 %v1661, 120
      %v1898 = vpop.permute.xlu0 %1897
      %v1900 = vsel %vm678, %v1882, 0
      %v1903 = vsel %vm678, %v1884, 0
      %v1906 = vsel %vm678, %v1886, 0
      %v1909 = vsel %vm678, %v1888, 0
      %v1912 = vsel %vm678, %v1890, 0
      %v1915 = vsel %vm678, %v1892, 0
      %v1918 = vsel %vm678, %v1894, 0
      %v1921 = vsel %vm678, %v1896, 0
      %v1924 = vsel %vm678, %v1898, 0
      %1926 = vmatpush.bf16.xpose.msra.mxu0 %v1924
      %1927 = vmatpush.bf16.xpose.msra.mxu0 %v1921
      %1928 = vmatpush.bf16.xpose.msra.mxu0 %v1918
      %1929 = vmatpush.bf16.xpose.msra.mxu0 %v1915
      %1930 = vmatpush.bf16.xpose.msra.mxu0 %v1912
      %1931 = vmatpush.bf16.xpose.msra.mxu0 %v1909
      %1932 = vmatpush.bf16.xpose.msra.mxu0 %v1906
      %1933 = vmatpush.bf16.xpose.msra.mxu0 %v1903
      %1934 = vmatmul.bf16.gmra.mxu0 %v1900
      %v1935 = vpop.f32.mrf.mxu0
      %v1936 = vadd.f32 %v1618, %v1935
      %v1937 = vpop.f32.mrf.mxu0
      %1938 = vdwg.mxu0
      %v1940 = vunpack.c.l.b16 %v1581
      %v1941 = vpack.c.b16 %v1940, %v1940
      %1942 = vrot.lane.b32.xlu0 %v1941, 120
      %v1943 = vpop.permute.xlu0 %1942
      %1944 = vrot.lane.b32.xlu0 %v1734, 120
      %v1945 = vpop.permute.xlu0 %1944
      %1946 = vrot.lane.b32.xlu0 %v1735, 120
      %v1947 = vpop.permute.xlu0 %1946
      %1948 = vrot.lane.b32.xlu0 %v1736, 120
      %v1949 = vpop.permute.xlu0 %1948
      %1950 = vrot.lane.b32.xlu0 %v1737, 120
      %v1951 = vpop.permute.xlu0 %1950
      %1952 = vrot.lane.b32.xlu0 %v1738, 120
      %v1953 = vpop.permute.xlu0 %1952
      %1954 = vrot.lane.b32.xlu0 %v1739, 120
      %v1955 = vpop.permute.xlu0 %1954
      %1956 = vrot.lane.b32.xlu0 %v1740, 120
      %v1957 = vpop.permute.xlu0 %1956
      %1958 = vrot.lane.b32.xlu0 %v1741, 120
      %v1959 = vpop.permute.xlu0 %1958
      %v1961 = vsel %vm678, %v1943, 0
      %v1964 = vsel %vm678, %v1945, 0
      %v1967 = vsel %vm678, %v1947, 0
      %v1970 = vsel %vm678, %v1949, 0
      %v1973 = vsel %vm678, %v1951, 0
      %v1976 = vsel %vm678, %v1953, 0
      %v1979 = vsel %vm678, %v1955, 0
      %v1982 = vsel %vm678, %v1957, 0
      %v1985 = vsel %vm678, %v1959, 0
      %1987 = vmatpush.bf16.xpose.msra.mxu0 %v1985
      %1988 = vmatpush.bf16.xpose.msra.mxu0 %v1982
      %1989 = vmatpush.bf16.xpose.msra.mxu0 %v1979
      %1990 = vmatpush.bf16.xpose.msra.mxu0 %v1976
      %1991 = vmatpush.bf16.xpose.msra.mxu0 %v1973
      %1992 = vmatpush.bf16.xpose.msra.mxu0 %v1970
      %1993 = vmatpush.bf16.xpose.msra.mxu0 %v1967
      %1994 = vmatpush.bf16.xpose.msra.mxu0 %v1964
      %1995 = vmatmul.bf16.gmra.mxu0 %v1961
      %v1996 = vpop.f32.mrf.mxu0
      %v1997 = vadd.f32 %v1619, %v1996
      %v1998 = vpop.f32.mrf.mxu0
      %1999 = vdwg.mxu0
      %2000 = vmax.xlane.f32.xlu0 %v1936
      %v2001 = vpop.xlane.xlu0 %2000
      %2002 = vmax.xlane.f32.xlu0 %v1997
      %v2003 = vpop.xlane.xlu0 %2002
      %v2004 = vsub.f32 %v1936, %v2001
      %v2005 = vsub.f32 %v1997, %v2003
      %v2006 = vmul.f32 %v2004, 1.442695
      %v2007 = vpow.pop %v2006
      %v2008 = vmul.f32 %v2005, 1.442695
      %v2009 = vpow.pop %v2008
      %2010 = vadd.xlane.f32.xlu0 %v2007
      %v2011 = vpop.xlane.xlu0 %2010
      %2012 = vadd.xlane.f32.xlu0 %v2009
      %v2013 = vpop.xlane.xlu0 %2012
      %v2014 = vrcp.pop %v2011
      %v2015 = vrcp.pop %v2013
      %v2016 = vmul.f32 %v2007, %v2014
      %v2017 = vmul.f32 %v2009, %v2015
      %v2018 = vpack.c.bf16 %v2016, %v2016
      %v2019 = vpack.c.bf16 %v2017, %v2017
      %2020 = vrot.lane.b32.xlu0 %v1654, 88
      %v2021 = vpop.permute.xlu0 %2020
      %2022 = vrot.lane.b32.xlu0 %v1655, 88
      %v2023 = vpop.permute.xlu0 %2022
      %2024 = vrot.lane.b32.xlu0 %v1656, 88
      %v2025 = vpop.permute.xlu0 %2024
      %2026 = vrot.lane.b32.xlu0 %v1657, 88
      %v2027 = vpop.permute.xlu0 %2026
      %2028 = vrot.lane.b32.xlu0 %v1658, 88
      %v2029 = vpop.permute.xlu0 %2028
      %2030 = vrot.lane.b32.xlu0 %v1659, 88
      %v2031 = vpop.permute.xlu0 %2030
      %2032 = vrot.lane.b32.xlu0 %v1660, 88
      %v2033 = vpop.permute.xlu0 %2032
      %2034 = vrot.lane.b32.xlu0 %v1661, 88
      %v2035 = vpop.permute.xlu0 %2034
      %2044 = vmatpush.bf16.msra.mxu0 %v2035
      %2045 = vmatpush.bf16.msra.mxu0 %v2033
      %2046 = vmatpush.bf16.msra.mxu0 %v2031
      %2047 = vmatpush.bf16.msra.mxu0 %v2029
      %2048 = vmatpush.bf16.msra.mxu0 %v2027
      %2049 = vmatpush.bf16.msra.mxu0 %v2025
      %2050 = vmatpush.bf16.msra.mxu0 %v2023
      %2051 = vmatpush.bf16.msra.mxu0 %v2021
      %2052 = vmatmul.bf16.gmra.mxu0 %v2018
      %v2053 = vpop.f32.mrf.mxu0
      %v2054 = vadd.f32 0.0, %v2053
      %v2055 = vpop.f32.mrf.mxu0
      %2056 = vdwg.mxu0
      %2057 = vrot.lane.b32.xlu0 %v1734, 88
      %v2058 = vpop.permute.xlu0 %2057
      %2059 = vrot.lane.b32.xlu0 %v1735, 88
      %v2060 = vpop.permute.xlu0 %2059
      %2061 = vrot.lane.b32.xlu0 %v1736, 88
      %v2062 = vpop.permute.xlu0 %2061
      %2063 = vrot.lane.b32.xlu0 %v1737, 88
      %v2064 = vpop.permute.xlu0 %2063
      %2065 = vrot.lane.b32.xlu0 %v1738, 88
      %v2066 = vpop.permute.xlu0 %2065
      %2067 = vrot.lane.b32.xlu0 %v1739, 88
      %v2068 = vpop.permute.xlu0 %2067
      %2069 = vrot.lane.b32.xlu0 %v1740, 88
      %v2070 = vpop.permute.xlu0 %2069
      %2071 = vrot.lane.b32.xlu0 %v1741, 88
      %v2072 = vpop.permute.xlu0 %2071
      %2081 = vmatpush.bf16.msra.mxu0 %v2072
      %2082 = vmatpush.bf16.msra.mxu0 %v2070
      %2083 = vmatpush.bf16.msra.mxu0 %v2068
      %2084 = vmatpush.bf16.msra.mxu0 %v2066
      %2085 = vmatpush.bf16.msra.mxu0 %v2064
      %2086 = vmatpush.bf16.msra.mxu0 %v2062
      %2087 = vmatpush.bf16.msra.mxu0 %v2060
      %2088 = vmatpush.bf16.msra.mxu0 %v2058
      %2089 = vmatmul.bf16.gmra.mxu0 %v2019
      %v2090 = vpop.f32.mrf.mxu0
      %v2091 = vadd.f32 0.0, %v2090
      %v2092 = vpop.f32.mrf.mxu0
      %2093 = vdwg.mxu0
      %v2094 = vpack.c.bf16 %v2091, %v2054
      %v2095 = vld [vmem:[%s602 + $0x4] sm:$0xf]
      %v2097 = vsel %vm678, %v2094, 0
      %v2100 = vsel %vm751, %v2095, 0
      %2102 = vmatpush.bf16.msra.mxu0 0
      %2103 = vmatpush.bf16.msra.mxu0 0
      %2104 = vmatpush.bf16.msra.mxu0 0
      %2105 = vmatpush.bf16.msra.mxu0 0
      %2106 = vmatpush.bf16.msra.mxu0 0
      %2107 = vmatpush.bf16.msra.mxu0 0
      %2108 = vmatpush.bf16.msra.mxu0 0
      %2109 = vmatpush.bf16.msra.mxu0 %v2100
      %2110 = vmatmul.bf16.gmra.mxu0 %v2097
      %v2111 = vpop.f32.mrf.mxu0
      %v2112 = vadd.f32 0.0, %v2111
      %v2113 = vpop.f32.mrf.mxu0
      %v2114 = vadd.f32 0.0, %v2113
      %2115 = vdwg.mxu0
      %v2117 = vsel %vm678, %v1876, 0
      %v2120 = vsel %vm751, %v1877, 0
      %2122 = vmatpush.bf16.msra.mxu0 0
      %2123 = vmatpush.bf16.msra.mxu0 0
      %2124 = vmatpush.bf16.msra.mxu0 0
      %2125 = vmatpush.bf16.msra.mxu0 0
      %2126 = vmatpush.bf16.msra.mxu0 0
      %2127 = vmatpush.bf16.msra.mxu0 0
      %2128 = vmatpush.bf16.msra.mxu0 0
      %2129 = vmatpush.bf16.msra.mxu0 %v2120
      %2130 = vmatmul.bf16.gmra.mxu0 %v2117
      %v2131 = vpop.f32.mrf.mxu0
      %v2132 = vadd.f32 %v2112, %v2131
      %v2133 = vpop.f32.mrf.mxu0
      %v2134 = vadd.f32 %v2114, %v2133
      %2135 = vdwg.mxu0
      %2136 = vrot.lane.b32.xlu0 %v1880, 112
      %v2137 = vpop.permute.xlu0 %2136
      %2138 = vrot.lane.b32.xlu0 %v1654, 112
      %v2139 = vpop.permute.xlu0 %2138
      %2140 = vrot.lane.b32.xlu0 %v1655, 112
      %v2141 = vpop.permute.xlu0 %2140
      %2142 = vrot.lane.b32.xlu0 %v1656, 112
      %v2143 = vpop.permute.xlu0 %2142
      %2144 = vrot.lane.b32.xlu0 %v1657, 112
      %v2145 = vpop.permute.xlu0 %2144
      %2146 = vrot.lane.b32.xlu0 %v1658, 112
      %v2147 = vpop.permute.xlu0 %2146
      %2148 = vrot.lane.b32.xlu0 %v1659, 112
      %v2149 = vpop.permute.xlu0 %2148
      %2150 = vrot.lane.b32.xlu0 %v1660, 112
      %v2151 = vpop.permute.xlu0 %2150
      %2152 = vrot.lane.b32.xlu0 %v1661, 112
      %v2153 = vpop.permute.xlu0 %2152
      %v2155 = vsel %vm678, %v2137, 0
      %v2158 = vsel %vm678, %v2139, 0
      %v2161 = vsel %vm678, %v2141, 0
      %v2164 = vsel %vm678, %v2143, 0
      %v2167 = vsel %vm678, %v2145, 0
      %v2170 = vsel %vm678, %v2147, 0
      %v2173 = vsel %vm678, %v2149, 0
      %v2176 = vsel %vm678, %v2151, 0
      %v2179 = vsel %vm678, %v2153, 0
      %2181 = vmatpush.bf16.xpose.msra.mxu0 %v2179
      %2182 = vmatpush.bf16.xpose.msra.mxu0 %v2176
      %2183 = vmatpush.bf16.xpose.msra.mxu0 %v2173
      %2184 = vmatpush.bf16.xpose.msra.mxu0 %v2170
      %2185 = vmatpush.bf16.xpose.msra.mxu0 %v2167
      %2186 = vmatpush.bf16.xpose.msra.mxu0 %v2164
      %2187 = vmatpush.bf16.xpose.msra.mxu0 %v2161
      %2188 = vmatpush.bf16.xpose.msra.mxu0 %v2158
      %2189 = vmatmul.bf16.gmra.mxu0 %v2155
      %v2190 = vpop.f32.mrf.mxu0
      %v2191 = vadd.f32 %v1618, %v2190
      %v2192 = vpop.f32.mrf.mxu0
      %2193 = vdwg.mxu0
      %2194 = vrot.lane.b32.xlu0 %v1941, 112
      %v2195 = vpop.permute.xlu0 %2194
      %2196 = vrot.lane.b32.xlu0 %v1734, 112
      %v2197 = vpop.permute.xlu0 %2196
      %2198 = vrot.lane.b32.xlu0 %v1735, 112
      %v2199 = vpop.permute.xlu0 %2198
      %2200 = vrot.lane.b32.xlu0 %v1736, 112
      %v2201 = vpop.permute.xlu0 %2200
      %2202 = vrot.lane.b32.xlu0 %v1737, 112
      %v2203 = vpop.permute.xlu0 %2202
      %2204 = vrot.lane.b32.xlu0 %v1738, 112
      %v2205 = vpop.permute.xlu0 %2204
      %2206 = vrot.lane.b32.xlu0 %v1739, 112
      %v2207 = vpop.permute.xlu0 %2206
      %2208 = vrot.lane.b32.xlu0 %v1740, 112
      %v2209 = vpop.permute.xlu0 %2208
      %2210 = vrot.lane.b32.xlu0 %v1741, 112
      %v2211 = vpop.permute.xlu0 %2210
      %v2213 = vsel %vm678, %v2195, 0
      %v2216 = vsel %vm678, %v2197, 0
      %v2219 = vsel %vm678, %v2199, 0
      %v2222 = vsel %vm678, %v2201, 0
      %v2225 = vsel %vm678, %v2203, 0
      %v2228 = vsel %vm678, %v2205, 0
      %v2231 = vsel %vm678, %v2207, 0
      %v2234 = vsel %vm678, %v2209, 0
      %v2237 = vsel %vm678, %v2211, 0
      %2239 = vmatpush.bf16.xpose.msra.mxu0 %v2237
      %2240 = vmatpush.bf16.xpose.msra.mxu0 %v2234
      %2241 = vmatpush.bf16.xpose.msra.mxu0 %v2231
      %2242 = vmatpush.bf16.xpose.msra.mxu0 %v2228
      %2243 = vmatpush.bf16.xpose.msra.mxu0 %v2225
      %2244 = vmatpush.bf16.xpose.msra.mxu0 %v2222
      %2245 = vmatpush.bf16.xpose.msra.mxu0 %v2219
      %2246 = vmatpush.bf16.xpose.msra.mxu0 %v2216
      %2247 = vmatmul.bf16.gmra.mxu0 %v2213
      %v2248 = vpop.f32.mrf.mxu0
      %v2249 = vadd.f32 %v1619, %v2248
      %v2250 = vpop.f32.mrf.mxu0
      %2251 = vdwg.mxu0
      %2252 = vmax.xlane.f32.xlu0 %v2191
      %v2253 = vpop.xlane.xlu0 %2252
      %2254 = vmax.xlane.f32.xlu0 %v2249
      %v2255 = vpop.xlane.xlu0 %2254
      %v2256 = vsub.f32 %v2191, %v2253
      %v2257 = vsub.f32 %v2249, %v2255
      %v2258 = vmul.f32 %v2256, 1.442695
      %v2259 = vpow.pop %v2258
      %v2260 = vmul.f32 %v2257, 1.442695
      %v2261 = vpow.pop %v2260
      %2262 = vadd.xlane.f32.xlu0 %v2259
      %v2263 = vpop.xlane.xlu0 %2262
      %2264 = vadd.xlane.f32.xlu0 %v2261
      %v2265 = vpop.xlane.xlu0 %2264
      %v2266 = vrcp.pop %v2263
      %v2267 = vrcp.pop %v2265
      %v2268 = vmul.f32 %v2259, %v2266
      %v2269 = vmul.f32 %v2261, %v2267
      %v2270 = vpack.c.bf16 %v2268, %v2268
      %v2271 = vpack.c.bf16 %v2269, %v2269
      %2272 = vrot.lane.b32.xlu0 %v1654, 80
      %v2273 = vpop.permute.xlu0 %2272
      %2274 = vrot.lane.b32.xlu0 %v1655, 80
      %v2275 = vpop.permute.xlu0 %2274
      %2276 = vrot.lane.b32.xlu0 %v1656, 80
      %v2277 = vpop.permute.xlu0 %2276
      %2278 = vrot.lane.b32.xlu0 %v1657, 80
      %v2279 = vpop.permute.xlu0 %2278
      %2280 = vrot.lane.b32.xlu0 %v1658, 80
      %v2281 = vpop.permute.xlu0 %2280
      %2282 = vrot.lane.b32.xlu0 %v1659, 80
      %v2283 = vpop.permute.xlu0 %2282
      %2284 = vrot.lane.b32.xlu0 %v1660, 80
      %v2285 = vpop.permute.xlu0 %2284
      %2286 = vrot.lane.b32.xlu0 %v1661, 80
      %v2287 = vpop.permute.xlu0 %2286
      %2296 = vmatpush.bf16.msra.mxu0 %v2287
      %2297 = vmatpush.bf16.msra.mxu0 %v2285
      %2298 = vmatpush.bf16.msra.mxu0 %v2283
      %2299 = vmatpush.bf16.msra.mxu0 %v2281
      %2300 = vmatpush.bf16.msra.mxu0 %v2279
      %2301 = vmatpush.bf16.msra.mxu0 %v2277
      %2302 = vmatpush.bf16.msra.mxu0 %v2275
      %2303 = vmatpush.bf16.msra.mxu0 %v2273
      %2304 = vmatmul.bf16.gmra.mxu0 %v2270
      %v2305 = vpop.f32.mrf.mxu0
      %v2306 = vadd.f32 0.0, %v2305
      %v2307 = vpop.f32.mrf.mxu0
      %2308 = vdwg.mxu0
      %2309 = vrot.lane.b32.xlu0 %v1734, 80
      %v2310 = vpop.permute.xlu0 %2309
      %2311 = vrot.lane.b32.xlu0 %v1735, 80
      %v2312 = vpop.permute.xlu0 %2311
      %2313 = vrot.lane.b32.xlu0 %v1736, 80
      %v2314 = vpop.permute.xlu0 %2313
      %2315 = vrot.lane.b32.xlu0 %v1737, 80
      %v2316 = vpop.permute.xlu0 %2315
      %2317 = vrot.lane.b32.xlu0 %v1738, 80
      %v2318 = vpop.permute.xlu0 %2317
      %2319 = vrot.lane.b32.xlu0 %v1739, 80
      %v2320 = vpop.permute.xlu0 %2319
      %2321 = vrot.lane.b32.xlu0 %v1740, 80
      %v2322 = vpop.permute.xlu0 %2321
      %2323 = vrot.lane.b32.xlu0 %v1741, 80
      %v2324 = vpop.permute.xlu0 %2323
      %2333 = vmatpush.bf16.msra.mxu0 %v2324
      %2334 = vmatpush.bf16.msra.mxu0 %v2322
      %2335 = vmatpush.bf16.msra.mxu0 %v2320
      %2336 = vmatpush.bf16.msra.mxu0 %v2318
      %2337 = vmatpush.bf16.msra.mxu0 %v2316
      %2338 = vmatpush.bf16.msra.mxu0 %v2314
      %2339 = vmatpush.bf16.msra.mxu0 %v2312
      %2340 = vmatpush.bf16.msra.mxu0 %v2310
      %2341 = vmatmul.bf16.gmra.mxu0 %v2271
      %v2342 = vpop.f32.mrf.mxu0
      %v2343 = vadd.f32 0.0, %v2342
      %v2344 = vpop.f32.mrf.mxu0
      %2345 = vdwg.mxu0
      %v2346 = vpack.c.bf16 %v2343, %v2306
      %v2347 = vld [vmem:[%s602 + $0x8] sm:$0xf]
      %v2349 = vsel %vm678, %v2346, 0
      %v2352 = vsel %vm751, %v2347, 0
      %2354 = vmatpush.bf16.msra.mxu0 0
      %2355 = vmatpush.bf16.msra.mxu0 0
      %2356 = vmatpush.bf16.msra.mxu0 0
      %2357 = vmatpush.bf16.msra.mxu0 0
      %2358 = vmatpush.bf16.msra.mxu0 0
      %2359 = vmatpush.bf16.msra.mxu0 0
      %2360 = vmatpush.bf16.msra.mxu0 0
      %2361 = vmatpush.bf16.msra.mxu0 %v2352
      %2362 = vmatmul.bf16.gmra.mxu0 %v2349
      %v2363 = vpop.f32.mrf.mxu0
      %v2364 = vadd.f32 0.0, %v2363
      %v2365 = vpop.f32.mrf.mxu0
      %v2366 = vadd.f32 0.0, %v2365
      %2367 = vdwg.mxu0
      %v2368 = vadd.f32 %v2132, %v2364
      %v2369 = vadd.f32 %v2134, %v2366
      %2370 = vrot.lane.b32.xlu0 %v1880, 104
      %v2371 = vpop.permute.xlu0 %2370
      %2372 = vrot.lane.b32.xlu0 %v1654, 104
      %v2373 = vpop.permute.xlu0 %2372
      %2374 = vrot.lane.b32.xlu0 %v1655, 104
      %v2375 = vpop.permute.xlu0 %2374
      %2376 = vrot.lane.b32.xlu0 %v1656, 104
      %v2377 = vpop.permute.xlu0 %2376
      %2378 = vrot.lane.b32.xlu0 %v1657, 104
      %v2379 = vpop.permute.xlu0 %2378
      %2380 = vrot.lane.b32.xlu0 %v1658, 104
      %v2381 = vpop.permute.xlu0 %2380
      %2382 = vrot.lane.b32.xlu0 %v1659, 104
      %v2383 = vpop.permute.xlu0 %2382
      %2384 = vrot.lane.b32.xlu0 %v1660, 104
      %v2385 = vpop.permute.xlu0 %2384
      %2386 = vrot.lane.b32.xlu0 %v1661, 104
      %v2387 = vpop.permute.xlu0 %2386
      %v2389 = vsel %vm678, %v2371, 0
      %v2392 = vsel %vm678, %v2373, 0
      %v2395 = vsel %vm678, %v2375, 0
      %v2398 = vsel %vm678, %v2377, 0
      %v2401 = vsel %vm678, %v2379, 0
      %v2404 = vsel %vm678, %v2381, 0
      %v2407 = vsel %vm678, %v2383, 0
      %v2410 = vsel %vm678, %v2385, 0
      %v2413 = vsel %vm678, %v2387, 0
      %2415 = vmatpush.bf16.xpose.msra.mxu0 %v2413
      %2416 = vmatpush.bf16.xpose.msra.mxu0 %v2410
      %2417 = vmatpush.bf16.xpose.msra.mxu0 %v2407
      %2418 = vmatpush.bf16.xpose.msra.mxu0 %v2404
      %2419 = vmatpush.bf16.xpose.msra.mxu0 %v2401
      %2420 = vmatpush.bf16.xpose.msra.mxu0 %v2398
      %2421 = vmatpush.bf16.xpose.msra.mxu0 %v2395
      %2422 = vmatpush.bf16.xpose.msra.mxu0 %v2392
      %2423 = vmatmul.bf16.gmra.mxu0 %v2389
      %v2424 = vpop.f32.mrf.mxu0
      %v2425 = vadd.f32 %v1618, %v2424
      %v2426 = vpop.f32.mrf.mxu0
      %2427 = vdwg.mxu0
      %2428 = vrot.lane.b32.xlu0 %v1941, 104
      %v2429 = vpop.permute.xlu0 %2428
      %2430 = vrot.lane.b32.xlu0 %v1734, 104
      %v2431 = vpop.permute.xlu0 %2430
      %2432 = vrot.lane.b32.xlu0 %v1735, 104
      %v2433 = vpop.permute.xlu0 %2432
      %2434 = vrot.lane.b32.xlu0 %v1736, 104
      %v2435 = vpop.permute.xlu0 %2434
      %2436 = vrot.lane.b32.xlu0 %v1737, 104
      %v2437 = vpop.permute.xlu0 %2436
      %2438 = vrot.lane.b32.xlu0 %v1738, 104
      %v2439 = vpop.permute.xlu0 %2438
      %2440 = vrot.lane.b32.xlu0 %v1739, 104
      %v2441 = vpop.permute.xlu0 %2440
      %2442 = vrot.lane.b32.xlu0 %v1740, 104
      %v2443 = vpop.permute.xlu0 %2442
      %2444 = vrot.lane.b32.xlu0 %v1741, 104
      %v2445 = vpop.permute.xlu0 %2444
      %v2447 = vsel %vm678, %v2429, 0
      %v2450 = vsel %vm678, %v2431, 0
      %v2453 = vsel %vm678, %v2433, 0
      %v2456 = vsel %vm678, %v2435, 0
      %v2459 = vsel %vm678, %v2437, 0
      %v2462 = vsel %vm678, %v2439, 0
      %v2465 = vsel %vm678, %v2441, 0
      %v2468 = vsel %vm678, %v2443, 0
      %v2471 = vsel %vm678, %v2445, 0
      %2473 = vmatpush.bf16.xpose.msra.mxu0 %v2471
      %2474 = vmatpush.bf16.xpose.msra.mxu0 %v2468
      %2475 = vmatpush.bf16.xpose.msra.mxu0 %v2465
      %2476 = vmatpush.bf16.xpose.msra.mxu0 %v2462
      %2477 = vmatpush.bf16.xpose.msra.mxu0 %v2459
      %2478 = vmatpush.bf16.xpose.msra.mxu0 %v2456
      %2479 = vmatpush.bf16.xpose.msra.mxu0 %v2453
      %2480 = vmatpush.bf16.xpose.msra.mxu0 %v2450
      %2481 = vmatmul.bf16.gmra.mxu0 %v2447
      %v2482 = vpop.f32.mrf.mxu0
      %v2483 = vadd.f32 %v1619, %v2482
      %v2484 = vpop.f32.mrf.mxu0
      %2485 = vdwg.mxu0
      %2486 = vmax.xlane.f32.xlu0 %v2425
      %v2487 = vpop.xlane.xlu0 %2486
      %2488 = vmax.xlane.f32.xlu0 %v2483
      %v2489 = vpop.xlane.xlu0 %2488
      %v2490 = vsub.f32 %v2425, %v2487
      %v2491 = vsub.f32 %v2483, %v2489
      %v2492 = vmul.f32 %v2490, 1.442695
      %v2493 = vpow.pop %v2492
      %v2494 = vmul.f32 %v2491, 1.442695
      %v2495 = vpow.pop %v2494
      %2496 = vadd.xlane.f32.xlu0 %v2493
      %v2497 = vpop.xlane.xlu0 %2496
      %2498 = vadd.xlane.f32.xlu0 %v2495
      %v2499 = vpop.xlane.xlu0 %2498
      %v2500 = vrcp.pop %v2497
      %v2501 = vrcp.pop %v2499
      %v2502 = vmul.f32 %v2493, %v2500
      %v2503 = vmul.f32 %v2495, %v2501
      %v2504 = vpack.c.bf16 %v2502, %v2502
      %v2505 = vpack.c.bf16 %v2503, %v2503
      %2506 = vrot.lane.b32.xlu0 %v1654, 72
      %v2507 = vpop.permute.xlu0 %2506
      %2508 = vrot.lane.b32.xlu0 %v1655, 72
      %v2509 = vpop.permute.xlu0 %2508
      %2510 = vrot.lane.b32.xlu0 %v1656, 72
      %v2511 = vpop.permute.xlu0 %2510
      %2512 = vrot.lane.b32.xlu0 %v1657, 72
      %v2513 = vpop.permute.xlu0 %2512
      %2514 = vrot.lane.b32.xlu0 %v1658, 72
      %v2515 = vpop.permute.xlu0 %2514
      %2516 = vrot.lane.b32.xlu0 %v1659, 72
      %v2517 = vpop.permute.xlu0 %2516
      %2518 = vrot.lane.b32.xlu0 %v1660, 72
      %v2519 = vpop.permute.xlu0 %2518
      %2520 = vrot.lane.b32.xlu0 %v1661, 72
      %v2521 = vpop.permute.xlu0 %2520
      %2530 = vmatpush.bf16.msra.mxu0 %v2521
      %2531 = vmatpush.bf16.msra.mxu0 %v2519
      %2532 = vmatpush.bf16.msra.mxu0 %v2517
      %2533 = vmatpush.bf16.msra.mxu0 %v2515
      %2534 = vmatpush.bf16.msra.mxu0 %v2513
      %2535 = vmatpush.bf16.msra.mxu0 %v2511
      %2536 = vmatpush.bf16.msra.mxu0 %v2509
      %2537 = vmatpush.bf16.msra.mxu0 %v2507
      %2538 = vmatmul.bf16.gmra.mxu0 %v2504
      %v2539 = vpop.f32.mrf.mxu0
      %v2540 = vadd.f32 0.0, %v2539
      %v2541 = vpop.f32.mrf.mxu0
      %2542 = vdwg.mxu0
      %2543 = vrot.lane.b32.xlu0 %v1734, 72
      %v2544 = vpop.permute.xlu0 %2543
      %2545 = vrot.lane.b32.xlu0 %v1735, 72
      %v2546 = vpop.permute.xlu0 %2545
      %2547 = vrot.lane.b32.xlu0 %v1736, 72
      %v2548 = vpop.permute.xlu0 %2547
      %2549 = vrot.lane.b32.xlu0 %v1737, 72
      %v2550 = vpop.permute.xlu0 %2549
      %2551 = vrot.lane.b32.xlu0 %v1738, 72
      %v2552 = vpop.permute.xlu0 %2551
      %2553 = vrot.lane.b32.xlu0 %v1739, 72
      %v2554 = vpop.permute.xlu0 %2553
      %2555 = vrot.lane.b32.xlu0 %v1740, 72
      %v2556 = vpop.permute.xlu0 %2555
      %2557 = vrot.lane.b32.xlu0 %v1741, 72
      %v2558 = vpop.permute.xlu0 %2557
      %2567 = vmatpush.bf16.msra.mxu0 %v2558
      %2568 = vmatpush.bf16.msra.mxu0 %v2556
      %2569 = vmatpush.bf16.msra.mxu0 %v2554
      %2570 = vmatpush.bf16.msra.mxu0 %v2552
      %2571 = vmatpush.bf16.msra.mxu0 %v2550
      %2572 = vmatpush.bf16.msra.mxu0 %v2548
      %2573 = vmatpush.bf16.msra.mxu0 %v2546
      %2574 = vmatpush.bf16.msra.mxu0 %v2544
      %2575 = vmatmul.bf16.gmra.mxu0 %v2505
      %v2576 = vpop.f32.mrf.mxu0
      %v2577 = vadd.f32 0.0, %v2576
      %v2578 = vpop.f32.mrf.mxu0
      %2579 = vdwg.mxu0
      %v2580 = vpack.c.bf16 %v2577, %v2540
      %v2581 = vld [vmem:[%s602 + $0xc] sm:$0xf]
      %v2583 = vsel %vm678, %v2580, 0
      %v2586 = vsel %vm751, %v2581, 0
      %2588 = vmatpush.bf16.msra.mxu0 0
      %2589 = vmatpush.bf16.msra.mxu0 0
      %2590 = vmatpush.bf16.msra.mxu0 0
      %2591 = vmatpush.bf16.msra.mxu0 0
      %2592 = vmatpush.bf16.msra.mxu0 0
      %2593 = vmatpush.bf16.msra.mxu0 0
      %2594 = vmatpush.bf16.msra.mxu0 0
      %2595 = vmatpush.bf16.msra.mxu0 %v2586
      %2596 = vmatmul.bf16.gmra.mxu0 %v2583
      %v2597 = vpop.f32.mrf.mxu0
      %v2598 = vadd.f32 0.0, %v2597
      %v2599 = vpop.f32.mrf.mxu0
      %v2600 = vadd.f32 0.0, %v2599
      %2601 = vdwg.mxu0
      %v2602 = vadd.f32 %v2368, %v2598
      %v2603 = vadd.f32 %v2369, %v2600
      %v2604 = vadd.f32 %v1277, %v2602
      %v2605 = vadd.f32 %v1278, %v2603
      %v2606 = vperm.slane %v629, 6
      %v2607 = vadd.f32 %v2604, %v2606
      %v2608 = vadd.f32 %v2605, %v2606
      %v2609 = vsel %vm651, %v2607, 0.0
      %2610 = vadd.xlane.f32.xlu0 %v2609
      %v2611 = vpop.xlane.xlu0 %2610
      %v2612 = vsel %vm651, %v2608, 0.0
      %2613 = vadd.xlane.f32.xlu0 %v2612
      %v2614 = vpop.xlane.xlu0 %2613
      %v2615 = vmul.f32 %v2611, %v1234
      %v2616 = vmul.f32 %v2614, %v1234
      %v2617 = vsub.f32 %v2607, %v2615
      %v2618 = vsub.f32 %v2608, %v2616
      %v2619 = vmul.f32 %v2617, %v2617
      %v2620 = vmul.f32 %v2618, %v2618
      %v2621 = vsel %vm651, %v2619, 0.0
      %2622 = vadd.xlane.f32.xlu0 %v2621
      %v2623 = vpop.xlane.xlu0 %2622
      %v2624 = vsel %vm651, %v2620, 0.0
      %2625 = vadd.xlane.f32.xlu0 %v2624
      %v2626 = vpop.xlane.xlu0 %2625
      %v2627 = vmul.f32 %v2623, %v1234
      %v2628 = vmul.f32 %v2626, %v1234
      %v2629 = vadd.f32 %v2627, 1e-05
      %v2630 = vadd.f32 %v2628, 1e-05
      %v2631 = vrsqrt.pop %v2629
      %v2632 = vmul.f32 %v2631, %v2629
      %v2633 = vmul.f32 %v2632, %v2631
      %v2634 = vmul.f32 0.5, %v2633
      %v2635 = vsub.f32 1.5, %v2634
      %v2636 = vmul.f32 %v2631, %v2635
      %vm2637 = vweird.f32 %v2629
      %vm2638 = vweird.f32 %v2631
      %vm2639 = vmor %vm2637, %vm2638
      %v2640 = vsel %vm2639, %v2631, %v2636
      %v2641 = vrsqrt.pop %v2630
      %v2642 = vmul.f32 %v2641, %v2630
      %v2643 = vmul.f32 %v2642, %v2641
      %v2644 = vmul.f32 0.5, %v2643
      %v2645 = vsub.f32 1.5, %v2644
      %v2646 = vmul.f32 %v2641, %v2645
      %vm2647 = vweird.f32 %v2630
      %vm2648 = vweird.f32 %v2641
      %vm2649 = vmor %vm2647, %vm2648
      %v2650 = vsel %vm2649, %v2641, %v2646
      %v2651 = vmul.f32 %v2617, %v2640
      %v2652 = vmul.f32 %v2618, %v2650
      %v2653 = vperm.slane %v629, 7
      %v2654 = vmul.f32 %v2651, %v2653
      %v2655 = vmul.f32 %v2652, %v2653
      %v2656 = vperm.slane %v630, 0
      %v2657 = vadd.f32 %v2654, %v2656
      %v2658 = vadd.f32 %v2655, %v2656
      %v2659 = vpack.c.bf16 %v2658, %v2657
      %v2660 = vld [vmem:[%s607] sm:$0xf]
      %v2661 = vld [vmem:[%s607 + $0x4] sm:$0xf]
      %v2662 = vld [vmem:[%s607 + $0x8] sm:$0xf]
      %v2663 = vld [vmem:[%s607 + $0xc] sm:$0xf]
      %v2664 = vperm.slane %v630, 1
      %v2669 = vunpack.c.l.b16 %v2660
      %v2670 = vunpack.c.l.b16 %v2661
      %v2671 = vunpack.c.l.b16 %v2662
      %v2672 = vunpack.c.l.b16 %v2663
      %v2673 = vpack.c.b16 %v2670, %v2669
      %v2674 = vpack.c.b16 %v2672, %v2671
      %v2678 = vsel %vm651, %v2659, 0
      %2680 = vmatpush.bf16.msra.mxu0 0
      %2681 = vmatpush.bf16.msra.mxu0 0
      %2682 = vmatpush.bf16.msra.mxu0 0
      %2683 = vmatpush.bf16.msra.mxu0 0
      %2684 = vmatpush.bf16.msra.mxu0 0
      %2685 = vmatpush.bf16.msra.mxu0 0
      %2686 = vmatpush.bf16.msra.mxu0 %v2674
      %2687 = vmatpush.bf16.msra.mxu0 %v2673
      %2688 = vmatmul.bf16.gmra.mxu0 %v2678
      %v2689 = vpop.f32.mrf.mxu0
      %v2690 = vadd.f32 %v2664, %v2689
      %v2691 = vpop.f32.mrf.mxu0
      %v2692 = vadd.f32 %v2664, %v2691
      %2693 = vdwg.mxu0
      %v2694 = vmax.f32 %v2690, 0.0
      %v2695 = vmax.f32 %v2692, 0.0
      %v2696 = vpack.c.bf16 %v2695, %v2694
      %v2697 = vld [vmem:[%s612] sm:$0xf]
      %v2698 = vld [vmem:[%s612 + $0x4] sm:$0xf]
      %v2699 = vld [vmem:[%s612 + $0x8] sm:$0xf]
      %v2700 = vld [vmem:[%s612 + $0xc] sm:$0xf]
      %v2701 = vld [vmem:[%s612 + $0x10] sm:$0xf]
      %v2702 = vld [vmem:[%s612 + $0x14] sm:$0xf]
      %v2703 = vld [vmem:[%s612 + $0x18] sm:$0xf]
      %v2704 = vld [vmem:[%s612 + $0x1c] sm:$0xf]
      %v2705 = vperm.slane %v630, 2
      %v2714 = vunpack.c.l.b16 %v2697
      %v2715 = vunpack.c.l.b16 %v2698
      %v2716 = vunpack.c.l.b16 %v2699
      %v2717 = vunpack.c.l.b16 %v2700
      %v2718 = vunpack.c.l.b16 %v2701
      %v2719 = vunpack.c.l.b16 %v2702
      %v2720 = vunpack.c.l.b16 %v2703
      %v2721 = vunpack.c.l.b16 %v2704
      %v2722 = vpack.c.b16 %v2715, %v2714
      %v2723 = vpack.c.b16 %v2717, %v2716
      %v2724 = vpack.c.b16 %v2719, %v2718
      %v2725 = vpack.c.b16 %v2721, %v2720
      %vm2730 = vcmask 523264
      %v2732 = vsel %vm2730, %v2696, 0
      %2734 = vmatpush.bf16.msra.mxu0 0
      %2735 = vmatpush.bf16.msra.mxu0 0
      %2736 = vmatpush.bf16.msra.mxu0 0
      %2737 = vmatpush.bf16.msra.mxu0 0
      %2738 = vmatpush.bf16.msra.mxu0 %v2725
      %2739 = vmatpush.bf16.msra.mxu0 %v2724
      %2740 = vmatpush.bf16.msra.mxu0 %v2723
      %2741 = vmatpush.bf16.msra.mxu0 %v2722
      %2742 = vmatmul.bf16.gmra.mxu0 %v2732
      %v2743 = vpop.f32.mrf.mxu0
      %v2744 = vadd.f32 %v2705, %v2743
      %v2745 = vpop.f32.mrf.mxu0
      %v2746 = vadd.f32 %v2705, %v2745
      %2747 = vdwg.mxu0
      %v2748 = vadd.f32 %v2657, %v2744
      %v2749 = vadd.f32 %v2658, %v2746
      %v2750 = vsel %vm651, %v2748, 0.0
      %2751 = vadd.xlane.f32.xlu0 %v2750
      %v2752 = vpop.xlane.xlu0 %2751
      %v2753 = vsel %vm651, %v2749, 0.0
      %2754 = vadd.xlane.f32.xlu0 %v2753
      %v2755 = vpop.xlane.xlu0 %2754
      %v2756 = vmul.f32 %v2752, %v1234
      %v2757 = vmul.f32 %v2755, %v1234
      %v2758 = vsub.f32 %v2748, %v2756
      %v2759 = vsub.f32 %v2749, %v2757
      %v2760 = vmul.f32 %v2758, %v2758
      %v2761 = vmul.f32 %v2759, %v2759
      %v2762 = vsel %vm651, %v2760, 0.0
      %2763 = vadd.xlane.f32.xlu0 %v2762
      %v2764 = vpop.xlane.xlu0 %2763
      %v2765 = vsel %vm651, %v2761, 0.0
      %2766 = vadd.xlane.f32.xlu0 %v2765
      %v2767 = vpop.xlane.xlu0 %2766
      %v2768 = vmul.f32 %v2764, %v1234
      %v2769 = vmul.f32 %v2767, %v1234
      %v2770 = vadd.f32 %v2768, 1e-05
      %v2771 = vadd.f32 %v2769, 1e-05
      %v2772 = vrsqrt.pop %v2770
      %v2773 = vmul.f32 %v2772, %v2770
      %v2774 = vmul.f32 %v2773, %v2772
      %v2775 = vmul.f32 0.5, %v2774
      %v2776 = vsub.f32 1.5, %v2775
      %v2777 = vmul.f32 %v2772, %v2776
      %vm2778 = vweird.f32 %v2770
      %vm2779 = vweird.f32 %v2772
      %vm2780 = vmor %vm2778, %vm2779
      %v2781 = vsel %vm2780, %v2772, %v2777
      %v2782 = vrsqrt.pop %v2771
      %v2783 = vmul.f32 %v2782, %v2771
      %v2784 = vmul.f32 %v2783, %v2782
      %v2785 = vmul.f32 0.5, %v2784
      %v2786 = vsub.f32 1.5, %v2785
      %v2787 = vmul.f32 %v2782, %v2786
      %vm2788 = vweird.f32 %v2771
      %vm2789 = vweird.f32 %v2782
      %vm2790 = vmor %vm2788, %vm2789
      %v2791 = vsel %vm2790, %v2782, %v2787
      %v2792 = vmul.f32 %v2758, %v2781
      %v2793 = vmul.f32 %v2759, %v2791
      %v2794 = vperm.slane %v630, 3
      %v2795 = vmul.f32 %v2792, %v2794
      %v2796 = vmul.f32 %v2793, %v2794
      %v2797 = vperm.slane %v630, 4
      %v2798 = vadd.f32 %v2795, %v2797
      %v2799 = vadd.f32 %v2796, %v2797
      %2800 = vst.msk [vmem:[#allocation2] sm:$0xff] %vm651, %v2798
      %2801 = vst.msk [vmem:[#allocation2 + $0x8] sm:$0xff] %vm651, %v2799
      // Predicated region
      $region81: #{decoder_forward.1} parent=75 // pred_check
        %p2802 = pneg %p619
      $region82: #{decoder_forward.1} parent=75 // pred_check_branch
        %2804 = sbr.rel (%p2802) target = $region84
      $region83: #{decoder_forward.1} parent=75 // pred_region
        %2805 = vst [vmem:[%s15] sm:$0xff] %v1798
        %2806 = vst [vmem:[%s15 + $0x8] sm:$0xff] %v1799
        %s2807 = scalar_lea.vmem %s15, 16
        %2808 = vst [vmem:[%s2807] sm:$0xff] %v2016
        %2809 = vst [vmem:[%s2807 + $0x8] sm:$0xff] %v2017
        %s2810 = scalar_lea.vmem %s15, 32
        %2811 = vst [vmem:[%s2810] sm:$0xff] %v2268
        %2812 = vst [vmem:[%s2810 + $0x8] sm:$0xff] %v2269
        %s2813 = scalar_lea.vmem %s15, 48
        %2814 = vst [vmem:[%s2813] sm:$0xff] %v2502
        %2815 = vst [vmem:[%s2813 + $0x8] sm:$0xff] %v2503
        %v2816 = vpack.c.bf16 %v2799, %v2798
        %v2817 = vld [vmem:[%s12] sm:$0xf]
        %v2818 = vld [vmem:[%s12 + $0x4] sm:$0xf]
        %v2819 = vld [vmem:[%s12 + $0x8] sm:$0xf]
        %v2820 = vld [vmem:[%s12 + $0xc] sm:$0xf]
        %v2821 = vld [vmem:[%s13] sm:$0x1]
        %v2823 = vperm.slane %v2821, 0
        %v2829 = vunpack.c.l.b16 %v2817
        %v2830 = vunpack.c.l.b16 %v2818
        %v2831 = vunpack.c.l.b16 %v2819
        %v2832 = vunpack.c.l.b16 %v2820
        %v2833 = vpack.c.b16 %v2830, %v2829
        %v2834 = vpack.c.b16 %v2832, %v2831
        %v2838 = vsel %vm651, %v2816, 0
        %2840 = vmatpush.bf16.msra.mxu0 0
        %2841 = vmatpush.bf16.msra.mxu0 0
        %2842 = vmatpush.bf16.msra.mxu0 0
        %2843 = vmatpush.bf16.msra.mxu0 0
        %2844 = vmatpush.bf16.msra.mxu0 0
        %2845 = vmatpush.bf16.msra.mxu0 0
        %2846 = vmatpush.bf16.msra.mxu0 %v2834
        %2847 = vmatpush.bf16.msra.mxu0 %v2833
        %2848 = vmatmul.bf16.gmra.mxu0 %v2838
        %v2849 = vpop.f32.mrf.mxu0
        %v2850 = vadd.f32 %v2823, %v2849
        %v2851 = vpop.f32.mrf.mxu0
        %v2852 = vadd.f32 %v2823, %v2851
        %2853 = vdwg.mxu0
        %2854 = vst [vmem:[%s14] sm:$0xff] %v2850
        %2855 = vst [vmem:[%s14 + $0x8] sm:$0xff] %v2852
      $region84: #{decoder_forward.1} parent=75 // pred_fallthru
        _
      // Predicated region
      $region85: #{decoder_forward.1} parent=75 // pred_check
        %p2856 = pneg %p374
      $region86: #{decoder_forward.1} parent=75 // pred_check_branch
        %2858 = sbr.rel (%p2856) target = $region88
      $region87: #{decoder_forward.1} parent=75 // pred_region
        _
      $region88: #{decoder_forward.1} parent=75 // pred_fallthru
        _
      // Predicated region
      $region89: #{decoder_forward.1} parent=75 // pred_check
        %p2859 = pneg %p395
      $region90: #{decoder_forward.1} parent=75 // pred_check_branch
        %2861 = sbr.rel (%p2859) target = $region92
      $region91: #{decoder_forward.1} parent=75 // pred_region
        _
      $region92: #{decoder_forward.1} parent=75 // pred_fallthru
        _
      // Predicated region
      $region93: #{decoder_forward.1} parent=75 // pred_check
        %p2862 = pneg %p374
      $region94: #{decoder_forward.1} parent=75 // pred_check_branch
        %2864 = sbr.rel (%p2862) target = $region96
      $region95: #{decoder_forward.1} parent=75 // pred_region
        _
      $region96: #{decoder_forward.1} parent=75 // pred_fallthru
        _
      // Predicated region
      $region97: #{decoder_forward.1} parent=75 // pred_check
        %p2865 = pneg %p395
      $region98: #{decoder_forward.1} parent=75 // pred_check_branch
        %2867 = sbr.rel (%p2865) target = $region100
      $region99: #{decoder_forward.1} parent=75 // pred_region
        _
      $region100: #{decoder_forward.1} parent=75 // pred_fallthru
        _
    $region76: #{decoder_forward.1} parent=5 // pred_fallthru
      _
    %p2868 = scmp.le.s32.totalorder 2, %s22
    // Predicated region
    $region101: #{decoder_forward.1} parent=5 // pred_check
      %p2869 = pneg %p2868
    $region102: #{decoder_forward.1} parent=5 // pred_check_branch
      %2871 = sbr.rel (%p2869) target = $region104
    $region103: #{decoder_forward.1} parent=5 // pred_region
      %s2872 = ssub.s32 %s22, 2
    $region104: #{decoder_forward.1} parent=5 // pred_fallthru
      _
  $region6: #{decoder_forward.1} parent=0 // loop_footer
    %s26 = sadd.s32 1, %s22
  $region7: #{decoder_forward.1} parent=0 // loop_footer_branch
    %21 = sbr.rel target = $region3
  $region8: #{decoder_forward.1} parent=0 // loop_exit
    _

</llo_original>
